<compile_context>
chip_gen: v7x
topology: tpu7x:2x2x1
jax: 0.10.0
libtpu: 0.0.40
codegen_flags: <defaults>
</compile_context>

<pallas_src>
import jax
import jax.numpy as jnp
from jax.experimental import pallas as pl
from jax.experimental.pallas import tpu as pltpu  # noqa: F401  (TPU backend assumed)

# ---------------- config (small, consistent with the module's forward) ----------------
VEC      = 128                                   # data/vec_size (word embedding dim)
FILTERS  = 32                                    # model/filters
N_GRAMS  = (2, 3)                                # model/n_grams
TERM_H   = 32                                    # model/term_hidden_size (GRU hidden)
HIDDEN   = 64                                    # model/hidden_size (LSTM hidden)
ENC_IN   = 256                                   # stand-in for 76800 flattened BERT features
BATCH    = 2                                     # train batch
BS       = 4                                     # number of children at the current tree node
SYP_LEN  = 16                                    # model/syp_max_len
TERM_LEN = 8                                     # model/term_max_len
DEC_IN   = FILTERS * len(N_GRAMS) + TERM_H       # decoder LSTM input dim = 96
PAD_B    = 8                                     # pad sublane (batch) dims to 8
N_POS    = sum(N_GRAMS)                          # total conv position-slices = 5
GATES3   = 3 * TERM_H                            # fused GRU gate width = 96
GATES4   = 4 * HIDDEN                            # fused LSTM gate width = 256
OUT_W    = 4 * HIDDEN                            # packed output slab width = 256 (lane-dense)


def full_spec(shape):
    """BlockSpec covering the full array (block == array, grid=(1,))."""
    n = len(shape)
    return pl.BlockSpec(shape, lambda *_, n=n: (0,) * n)


# ---------------- fused node-step kernel ----------------
def node_step_kernel(enc_ref, efw_ref, efb_ref,
                     sym_ref, cw_ref, cb_ref,
                     term_ref, gwih_ref, gwhh_ref, gbih_ref, gbhh_ref,
                     lwih_ref, lwhh_ref, lb_ref, fcw_ref, fcb_ref,
                     out_ref):
    f32 = jnp.float32
    Bp, L, D = sym_ref.shape            # (8, SYP_LEN, VEC)
    _, T, _ = term_ref.shape            # (8, TERM_LEN, VEC)
    F, Ht, H = FILTERS, TERM_H, HIDDEN

    # ---- encoder_fc: Linear(ENC_IN, HIDDEN) -----------------------------------------
    enc_fc = (jnp.dot(enc_ref[...], efw_ref[...], preferred_element_type=f32)
              + efb_ref[...])                                           # (8, 64)

    # ---- TextEncoder: Conv2d(1,F,(g,D)) + ReLU + max-over-time, grams (2,3) ----------
    # W_conv columns = per-position slices [g2p0|g2p1|g3p0|g3p1|g3p2], each (VEC, F).
    # (Equivalent to PyTorch conv weight (F,1,g,D) with W[:, pos*F:(pos+1)*F] = w[:,0,j,:].T)
    proj = jnp.dot(sym_ref[...].reshape(Bp * L, D), cw_ref[...],
                   preferred_element_type=f32).reshape(Bp, L, N_POS * F)
    conv_outs = []
    off = 0
    for gi, g in enumerate(N_GRAMS):
        Tg = L - g + 1
        acc = proj[:, 0:Tg, off * F:(off + 1) * F]
        for j in range(1, g):
            acc = acc + proj[:, j:j + Tg, (off + j) * F:(off + j + 1) * F]
        acc = jnp.maximum(acc + cb_ref[:, gi * F:(gi + 1) * F][:, None, :], 0.0)
        conv_outs.append(jnp.max(acc, axis=1))                          # (8, 32)
        off += g
    enc_sym = jnp.concatenate(conv_outs, axis=1)                        # (8, 64)

    # ---- TermEncoder: single-layer GRU (PyTorch gate order r, z, n), last hidden -----
    xg = (jnp.dot(term_ref[...].reshape(Bp * T, D), gwih_ref[...],
                  preferred_element_type=f32)
          + gbih_ref[...]).reshape(Bp, T, GATES3)                       # (8, T, 96)
    whh = gwhh_ref[...]
    bhh = gbhh_ref[...]
    h = jnp.zeros((Bp, Ht), f32)
    for t in range(T):                                                  # static unroll, T=8
        xg_t = xg[:, t, :]                                              # (8, 96)
        hg = jnp.dot(h, whh, preferred_element_type=f32) + bhh          # (8, 96)
        r = jax.nn.sigmoid(xg_t[:, 0:Ht] + hg[:, 0:Ht])
        z = jax.nn.sigmoid(xg_t[:, Ht:2 * Ht] + hg[:, Ht:2 * Ht])
        n = jnp.tanh(xg_t[:, 2 * Ht:] + r * hg[:, 2 * Ht:])             # b_hn inside r*(...)
        h = (1.0 - z) * n + z * h
    enc_term = h                                                        # (8, 32)

    # ---- raw_decoder: one LSTM step (gate order i,f,g,o) + Linear(H,1) + sigmoid -----
    dec_in = jnp.concatenate([enc_sym, enc_term], axis=1)               # (8, 96)
    h0 = jnp.broadcast_to(enc_fc[0:1, :], (Bp, H))      # last_h.repeat(1, bs, 1), batch elem 0
    c0 = jnp.zeros((Bp, H), f32)                        # h_0 (zeros) repeated
    # lb_ref is b_ih + b_hh pre-summed (PyTorch keeps them separate).
    gates = (jnp.dot(dec_in, lwih_ref[...], preferred_element_type=f32)
             + jnp.dot(h0, lwhh_ref[...], preferred_element_type=f32)
             + lb_ref[...])                                             # (8, 256)
    i_g = jax.nn.sigmoid(gates[:, 0:H])
    f_g = jax.nn.sigmoid(gates[:, H:2 * H])
    g_g = jnp.tanh(gates[:, 2 * H:3 * H])
    o_g = jax.nn.sigmoid(gates[:, 3 * H:4 * H])
    c_new = f_g * c0 + i_g * g_g
    h_new = o_g * jnp.tanh(c_new)
    logits = jnp.sum(h_new * fcw_ref[...], axis=-1, keepdims=True) + fcb_ref[...]
    dec_out = jax.nn.sigmoid(logits)                                    # (8, 1)

    # ---- single lane-dense (8, 256) packed output slab [h | c | enc_fc | dec_out] ----
    out_ref[...] = jnp.concatenate(
        [h_new, c_new, enc_fc, jnp.broadcast_to(dec_out, (Bp, H))], axis=1)


# ---------------- wrapper ----------------
def _pad_rows(x, n):
    return jnp.pad(x, [(0, n - x.shape[0])] + [(0, 0)] * (x.ndim - 1))


def node_step(encoded, params, symptom_doc, term_doc):
    """One fused node step. Returns (dec_out (BS,1), h_out (BS,H), c_out (BS,H), enc_fc (BATCH,H))."""
    (efw, efb, cw, cb, gwih, gwhh, gbih, gbhh, lwih, lwhh, lb, fcw, fcb) = params
    enc_p = _pad_rows(encoded, PAD_B)
    sym_p = _pad_rows(symptom_doc, PAD_B)
    term_p = _pad_rows(term_doc, PAD_B)
    args = (enc_p, efw, efb, sym_p, cw, cb, term_p,
            gwih, gwhh, gbih, gbhh, lwih, lwhh, lb, fcw, fcb)
    out_shape = jax.ShapeDtypeStruct((PAD_B, OUT_W), jnp.float32)
    out = pl.pallas_call(
        node_step_kernel,
        out_shape=out_shape,
        grid=(1,),
        in_specs=[full_spec(a.shape) for a in args],
        out_specs=full_spec(out_shape.shape),
    )(*args)
    h_out = out[:BS, 0:HIDDEN]
    c_out = out[:BS, HIDDEN:2 * HIDDEN]
    enc_fc = out[:BATCH, 2 * HIDDEN:3 * HIDDEN]
    dec_out = out[:BS, 3 * HIDDEN:3 * HIDDEN + 1]
    return dec_out, h_out, c_out, enc_fc


# ---------------- pure-JAX reference (same math, for parity check) ----------------
def node_step_ref(encoded, params, symptom_doc, term_doc):
    (efw, efb, cw, cb, gwih, gwhh, gbih, gbhh, lwih, lwhh, lb, fcw, fcb) = params
    enc_fc = encoded @ efw + efb
    outs = []
    off = 0
    for gi, g in enumerate(N_GRAMS):
        T = SYP_LEN - g + 1
        y = jnp.zeros((BS, T, FILTERS), jnp.float32)
        for j in range(g):
            wj = cw[:, (off + j) * FILTERS:(off + j + 1) * FILTERS]
            y = y + symptom_doc[:, j:j + T, :] @ wj
        y = jnp.maximum(y + cb[:, gi * FILTERS:(gi + 1) * FILTERS][:, None, :], 0.0)
        outs.append(jnp.max(y, axis=1))
        off += g
    enc_sym = jnp.concatenate(outs, axis=1)
    h = jnp.zeros((BS, TERM_H), jnp.float32)
    for t in range(TERM_LEN):
        xg = term_doc[:, t, :] @ gwih + gbih
        hg = h @ gwhh + gbhh
        r = jax.nn.sigmoid(xg[:, :TERM_H] + hg[:, :TERM_H])
        z = jax.nn.sigmoid(xg[:, TERM_H:2 * TERM_H] + hg[:, TERM_H:2 * TERM_H])
        n = jnp.tanh(xg[:, 2 * TERM_H:] + r * hg[:, 2 * TERM_H:])
        h = (1.0 - z) * n + z * h
    enc_term = h
    dec_in = jnp.concatenate([enc_sym, enc_term], axis=1)
    h0 = jnp.broadcast_to(enc_fc[0:1, :], (BS, HIDDEN))
    c0 = jnp.zeros((BS, HIDDEN), jnp.float32)
    gates = dec_in @ lwih + h0 @ lwhh + lb
    i_g = jax.nn.sigmoid(gates[:, :HIDDEN])
    f_g = jax.nn.sigmoid(gates[:, HIDDEN:2 * HIDDEN])
    g_g = jnp.tanh(gates[:, 2 * HIDDEN:3 * HIDDEN])
    o_g = jax.nn.sigmoid(gates[:, 3 * HIDDEN:])
    c_new = f_g * c0 + i_g * g_g
    h_new = o_g * jnp.tanh(c_new)
    dec_out = jax.nn.sigmoid(jnp.sum(h_new * fcw, axis=-1, keepdims=True) + fcb)
    return dec_out, h_new, c_new, enc_fc


# ---------------- driver ----------------
if __name__ == "__main__":
    key = jax.random.PRNGKey(0)
    ks = jax.random.split(key, 20)
    nrm = lambda k, s: (0.05 * jax.random.normal(k, s)).astype(jnp.float32)

    params = (
        nrm(ks[0], (ENC_IN, HIDDEN)),             # encoder_fc weight (in, out)
        nrm(ks[1], (1, HIDDEN)),                  # encoder_fc bias
        nrm(ks[2], (VEC, N_POS * FILTERS)),       # fused conv weights [g2p0|g2p1|g3p0|g3p1|g3p2]
        nrm(ks[3], (1, len(N_GRAMS) * FILTERS)),  # conv biases [b_g2 | b_g3]
        nrm(ks[4], (VEC, GATES3)),                # GRU W_ih fused (r|z|n)
        nrm(ks[5], (TERM_H, GATES3)),             # GRU W_hh fused
        nrm(ks[6], (1, GATES3)),                  # GRU b_ih
        nrm(ks[7], (1, GATES3)),                  # GRU b_hh
        nrm(ks[8], (DEC_IN, GATES4)),             # LSTM W_ih fused (i|f|g|o)
        nrm(ks[9], (HIDDEN, GATES4)),             # LSTM W_hh fused
        nrm(ks[10], (1, GATES4)),                 # LSTM bias (b_ih + b_hh pre-summed)
        nrm(ks[11], (1, HIDDEN)),                 # Linear(hidden,1) weight as a row (lane sum)
        nrm(ks[12], (1, 1)),                      # Linear(hidden,1) bias
    )

    # synthetic inputs
    encoded = jax.random.normal(ks[13], (BATCH, ENC_IN), jnp.float32)   # TODO(synk): BERT output stand-in
    symptom_doc = jax.random.normal(ks[14], (BS, SYP_LEN, VEC), jnp.float32)
    term_doc = jax.random.normal(ks[15], (BS, TERM_LEN, VEC), jnp.float32)

    # MODEL_V1 forward: one fused node step (root node, batch element 0)
    dec_out, h_out, c_out, enc_fc = node_step(encoded, params, symptom_doc, term_doc)
    jax.block_until_ready((dec_out, h_out, c_out, enc_fc))

    # parity vs pure-JAX reference of the same node step
    r_dec, r_h, r_c, r_fc = node_step_ref(encoded, params, symptom_doc, term_doc)
    for a, b in ((dec_out, r_dec), (h_out, r_h), (c_out, r_c), (enc_fc, r_fc)):
        assert a.shape == b.shape
        assert float(jnp.max(jnp.abs(a - b))) < 1e-2

    assert dec_out.shape == (BS, 1) and h_out.shape == (BS, HIDDEN) and c_out.shape == (BS, HIDDEN)
    print("KERNEL_OK")
</pallas_src>

<mosaic_0001>
module attributes {stable_mosaic.version = 11 : i64} {
  func.func @node_step_kernel(%arg0: i32, %arg1: memref<8x256xf32, #tpu.memory_space<vmem>>, %arg2: memref<256x64xf32, #tpu.memory_space<vmem>>, %arg3: memref<1x64xf32, #tpu.memory_space<vmem>>, %arg4: memref<8x16x128xf32, #tpu.memory_space<vmem>>, %arg5: memref<128x160xf32, #tpu.memory_space<vmem>>, %arg6: memref<1x64xf32, #tpu.memory_space<vmem>>, %arg7: memref<8x8x128xf32, #tpu.memory_space<vmem>>, %arg8: memref<128x96xf32, #tpu.memory_space<vmem>>, %arg9: memref<32x96xf32, #tpu.memory_space<vmem>>, %arg10: memref<1x96xf32, #tpu.memory_space<vmem>>, %arg11: memref<1x96xf32, #tpu.memory_space<vmem>>, %arg12: memref<96x256xf32, #tpu.memory_space<vmem>>, %arg13: memref<64x256xf32, #tpu.memory_space<vmem>>, %arg14: memref<1x256xf32, #tpu.memory_space<vmem>>, %arg15: memref<1x64xf32, #tpu.memory_space<vmem>>, %arg16: memref<1x1xf32, #tpu.memory_space<vmem>>, %arg17: memref<8x256xf32, #tpu.memory_space<vmem>>) attributes {dimension_semantics = [#tpu.dimension_semantics<arbitrary>], iteration_bounds = array<i64: 1>, scalar_prefetch = 0 : i64, scratch_operands = 0 : i64, tpu.core_type = #tpu.core_type<tc>, window_params = [{pipeline_mode = #tpu.pipeline_mode<synchronous>, transform_indices = @transform_0, window_bounds = array<i64: 8, 256>}, {pipeline_mode = #tpu.pipeline_mode<synchronous>, transform_indices = @transform_1, window_bounds = array<i64: 256, 64>}, {pipeline_mode = #tpu.pipeline_mode<synchronous>, transform_indices = @transform_2, window_bounds = array<i64: 1, 64>}, {pipeline_mode = #tpu.pipeline_mode<synchronous>, transform_indices = @transform_3, window_bounds = array<i64: 8, 16, 128>}, {pipeline_mode = #tpu.pipeline_mode<synchronous>, transform_indices = @transform_4, window_bounds = array<i64: 128, 160>}, {pipeline_mode = #tpu.pipeline_mode<synchronous>, transform_indices = @transform_5, window_bounds = array<i64: 1, 64>}, {pipeline_mode = #tpu.pipeline_mode<synchronous>, transform_indices = @transform_6, window_bounds = array<i64: 8, 8, 128>}, {pipeline_mode = #tpu.pipeline_mode<synchronous>, transform_indices = @transform_7, window_bounds = array<i64: 128, 96>}, {pipeline_mode = #tpu.pipeline_mode<synchronous>, transform_indices = @transform_8, window_bounds = array<i64: 32, 96>}, {pipeline_mode = #tpu.pipeline_mode<synchronous>, transform_indices = @transform_9, window_bounds = array<i64: 1, 96>}, {pipeline_mode = #tpu.pipeline_mode<synchronous>, transform_indices = @transform_10, window_bounds = array<i64: 1, 96>}, {pipeline_mode = #tpu.pipeline_mode<synchronous>, transform_indices = @transform_11, window_bounds = array<i64: 96, 256>}, {pipeline_mode = #tpu.pipeline_mode<synchronous>, transform_indices = @transform_12, window_bounds = array<i64: 64, 256>}, {pipeline_mode = #tpu.pipeline_mode<synchronous>, transform_indices = @transform_13, window_bounds = array<i64: 1, 256>}, {pipeline_mode = #tpu.pipeline_mode<synchronous>, transform_indices = @transform_14, window_bounds = array<i64: 1, 64>}, {pipeline_mode = #tpu.pipeline_mode<synchronous>, transform_indices = @transform_15, window_bounds = array<i64: 1, 1>}, {pipeline_mode = #tpu.pipeline_mode<synchronous>, transform_indices = @transform_16, window_bounds = array<i64: 8, 256>}]} {
    %c0 = arith.constant 0 : index
    %c0_0 = arith.constant 0 : index
    %0 = vector.load %arg1[%c0, %c0_0] : memref<8x256xf32, #tpu.memory_space<vmem>>, vector<8x256xf32>
    %c0_1 = arith.constant 0 : index
    %c0_2 = arith.constant 0 : index
    %1 = vector.load %arg2[%c0_1, %c0_2] : memref<256x64xf32, #tpu.memory_space<vmem>>, vector<256x64xf32>
    %cst = arith.constant dense<0.000000e+00> : vector<8x64xf32>
    %2 = tpu.matmul %0, %1, %cst {dimension_numbers = #tpu.dot_dimension_numbers<[1], [0], [0], [1], [0, 0, 1, 1], [], []>} : vector<8x256xf32>, vector<256x64xf32>, vector<8x64xf32> -> vector<8x64xf32>
    %c0_3 = arith.constant 0 : index
    %c0_4 = arith.constant 0 : index
    %3 = vector.load %arg3[%c0_3, %c0_4] : memref<1x64xf32, #tpu.memory_space<vmem>>, vector<1x64xf32>
    %4 = vector.broadcast %3 : vector<1x64xf32> to vector<8x64xf32>
    %5 = arith.addf %2, %4 : vector<8x64xf32>
    %c0_5 = arith.constant 0 : index
    %c0_6 = arith.constant 0 : index
    %c0_7 = arith.constant 0 : index
    %6 = vector.load %arg4[%c0_5, %c0_6, %c0_7] : memref<8x16x128xf32, #tpu.memory_space<vmem>>, vector<8x16x128xf32>
    %7 = vector.shape_cast %6 : vector<8x16x128xf32> to vector<128x128xf32>
    %c0_8 = arith.constant 0 : index
    %c0_9 = arith.constant 0 : index
    %8 = vector.load %arg5[%c0_8, %c0_9] : memref<128x160xf32, #tpu.memory_space<vmem>>, vector<128x160xf32>
    %cst_10 = arith.constant dense<0.000000e+00> : vector<128x160xf32>
    %9 = tpu.matmul %7, %8, %cst_10 {dimension_numbers = #tpu.dot_dimension_numbers<[1], [0], [0], [1], [0, 0, 1, 1], [], []>} : vector<128x128xf32>, vector<128x160xf32>, vector<128x160xf32> -> vector<128x160xf32>
    %10 = vector.shape_cast %9 : vector<128x160xf32> to vector<8x16x160xf32>
    %11 = vector.extract_strided_slice %10 {offsets = [0, 0, 0], sizes = [8, 15, 32], strides = [1, 1, 1]} : vector<8x16x160xf32> to vector<8x15x32xf32>
    %12 = vector.extract_strided_slice %10 {offsets = [0, 1, 32], sizes = [8, 15, 32], strides = [1, 1, 1]} : vector<8x16x160xf32> to vector<8x15x32xf32>
    %13 = arith.addf %11, %12 : vector<8x15x32xf32>
    %c0_11 = arith.constant 0 : index
    %c0_12 = arith.constant 0 : index
    %14 = vector.load %arg6[%c0_11, %c0_12] : memref<1x64xf32, #tpu.memory_space<vmem>>, vector<1x32xf32>
    %15 = vector.shape_cast %14 : vector<1x32xf32> to vector<1x1x32xf32>
    %16 = vector.broadcast %15 : vector<1x1x32xf32> to vector<8x15x32xf32>
    %17 = arith.addf %13, %16 : vector<8x15x32xf32>
    %cst_13 = arith.constant 0.000000e+00 : f32
    %18 = vector.broadcast %cst_13 : f32 to vector<8x15x32xf32>
    %19 = arith.maximumf %17, %18 : vector<8x15x32xf32>
    %cst_14 = arith.constant dense<0xFF800000> : vector<8x32xf32>
    %20 = vector.multi_reduction <maximumf>, %19, %cst_14 [1] : vector<8x15x32xf32> to vector<8x32xf32>
    %21 = vector.extract_strided_slice %10 {offsets = [0, 0, 64], sizes = [8, 14, 32], strides = [1, 1, 1]} : vector<8x16x160xf32> to vector<8x14x32xf32>
    %22 = vector.extract_strided_slice %10 {offsets = [0, 1, 96], sizes = [8, 14, 32], strides = [1, 1, 1]} : vector<8x16x160xf32> to vector<8x14x32xf32>
    %23 = arith.addf %21, %22 : vector<8x14x32xf32>
    %24 = vector.extract_strided_slice %10 {offsets = [0, 2, 128], sizes = [8, 14, 32], strides = [1, 1, 1]} : vector<8x16x160xf32> to vector<8x14x32xf32>
    %25 = arith.addf %23, %24 : vector<8x14x32xf32>
    %c0_15 = arith.constant 0 : index
    %c32 = arith.constant 32 : index
    %26 = vector.load %arg6[%c0_15, %c32] : memref<1x64xf32, #tpu.memory_space<vmem>>, vector<1x32xf32>
    %27 = vector.shape_cast %26 : vector<1x32xf32> to vector<1x1x32xf32>
    %28 = vector.broadcast %27 : vector<1x1x32xf32> to vector<8x14x32xf32>
    %29 = arith.addf %25, %28 : vector<8x14x32xf32>
    %cst_16 = arith.constant 0.000000e+00 : f32
    %30 = vector.broadcast %cst_16 : f32 to vector<8x14x32xf32>
    %31 = arith.maximumf %29, %30 : vector<8x14x32xf32>
    %cst_17 = arith.constant dense<0xFF800000> : vector<8x32xf32>
    %32 = vector.multi_reduction <maximumf>, %31, %cst_17 [1] : vector<8x14x32xf32> to vector<8x32xf32>
    %33 = tpu.concatenate %20, %32 in 1 : vector<8x32xf32>, vector<8x32xf32> -> vector<8x64xf32>
    %c0_18 = arith.constant 0 : index
    %c0_19 = arith.constant 0 : index
    %c0_20 = arith.constant 0 : index
    %34 = vector.load %arg7[%c0_18, %c0_19, %c0_20] : memref<8x8x128xf32, #tpu.memory_space<vmem>>, vector<8x8x128xf32>
    %35 = vector.shape_cast %34 : vector<8x8x128xf32> to vector<64x128xf32>
    %c0_21 = arith.constant 0 : index
    %c0_22 = arith.constant 0 : index
    %36 = vector.load %arg8[%c0_21, %c0_22] : memref<128x96xf32, #tpu.memory_space<vmem>>, vector<128x96xf32>
    %cst_23 = arith.constant dense<0.000000e+00> : vector<64x96xf32>
    %37 = tpu.matmul %35, %36, %cst_23 {dimension_numbers = #tpu.dot_dimension_numbers<[1], [0], [0], [1], [0, 0, 1, 1], [], []>} : vector<64x128xf32>, vector<128x96xf32>, vector<64x96xf32> -> vector<64x96xf32>
    %c0_24 = arith.constant 0 : index
    %c0_25 = arith.constant 0 : index
    %38 = vector.load %arg10[%c0_24, %c0_25] : memref<1x96xf32, #tpu.memory_space<vmem>>, vector<1x96xf32>
    %39 = vector.broadcast %38 : vector<1x96xf32> to vector<64x96xf32>
    %40 = arith.addf %37, %39 : vector<64x96xf32>
    %41 = vector.shape_cast %40 : vector<64x96xf32> to vector<8x8x96xf32>
    %c0_26 = arith.constant 0 : index
    %c0_27 = arith.constant 0 : index
    %42 = vector.load %arg9[%c0_26, %c0_27] : memref<32x96xf32, #tpu.memory_space<vmem>>, vector<32x96xf32>
    %c0_28 = arith.constant 0 : index
    %c0_29 = arith.constant 0 : index
    %43 = vector.load %arg11[%c0_28, %c0_29] : memref<1x96xf32, #tpu.memory_space<vmem>>, vector<1x96xf32>
    %cst_30 = arith.constant 0.000000e+00 : f32
    %44 = vector.broadcast %cst_30 : f32 to vector<8x32xf32>
    %45 = vector.extract_strided_slice %41 {offsets = [0, 0, 0], sizes = [8, 1, 96], strides = [1, 1, 1]} : vector<8x8x96xf32> to vector<8x1x96xf32>
    %46 = vector.shape_cast %45 : vector<8x1x96xf32> to vector<8x96xf32>
    %cst_31 = arith.constant dense<0.000000e+00> : vector<8x96xf32>
    %47 = tpu.matmul %44, %42, %cst_31 {dimension_numbers = #tpu.dot_dimension_numbers<[1], [0], [0], [1], [0, 0, 1, 1], [], []>} : vector<8x32xf32>, vector<32x96xf32>, vector<8x96xf32> -> vector<8x96xf32>
    %48 = vector.broadcast %43 : vector<1x96xf32> to vector<8x96xf32>
    %49 = arith.addf %47, %48 : vector<8x96xf32>
    %50 = vector.extract_strided_slice %46 {offsets = [0, 0], sizes = [8, 32], strides = [1, 1]} : vector<8x96xf32> to vector<8x32xf32>
    %51 = vector.extract_strided_slice %49 {offsets = [0, 0], sizes = [8, 32], strides = [1, 1]} : vector<8x96xf32> to vector<8x32xf32>
    %52 = arith.addf %50, %51 : vector<8x32xf32>
    %53 = arith.negf %52 : vector<8x32xf32>
    %54 = math.exp %53 : vector<8x32xf32>
    %cst_32 = arith.constant 1.000000e+00 : f32
    %55 = vector.broadcast %cst_32 : f32 to vector<8x32xf32>
    %56 = arith.addf %55, %54 : vector<8x32xf32>
    %57 = arith.divf %55, %56 : vector<8x32xf32>
    %58 = vector.extract_strided_slice %46 {offsets = [0, 32], sizes = [8, 32], strides = [1, 1]} : vector<8x96xf32> to vector<8x32xf32>
    %59 = vector.extract_strided_slice %49 {offsets = [0, 32], sizes = [8, 32], strides = [1, 1]} : vector<8x96xf32> to vector<8x32xf32>
    %60 = arith.addf %58, %59 : vector<8x32xf32>
    %61 = arith.negf %60 : vector<8x32xf32>
    %62 = math.exp %61 : vector<8x32xf32>
    %cst_33 = arith.constant 1.000000e+00 : f32
    %63 = vector.broadcast %cst_33 : f32 to vector<8x32xf32>
    %64 = arith.addf %63, %62 : vector<8x32xf32>
    %65 = arith.divf %63, %64 : vector<8x32xf32>
    %66 = vector.extract_strided_slice %46 {offsets = [0, 64], sizes = [8, 32], strides = [1, 1]} : vector<8x96xf32> to vector<8x32xf32>
    %67 = vector.extract_strided_slice %49 {offsets = [0, 64], sizes = [8, 32], strides = [1, 1]} : vector<8x96xf32> to vector<8x32xf32>
    %68 = arith.mulf %57, %67 : vector<8x32xf32>
    %69 = arith.addf %66, %68 : vector<8x32xf32>
    %70 = math.tanh %69 : vector<8x32xf32>
    %cst_34 = arith.constant 1.000000e+00 : f32
    %71 = vector.broadcast %cst_34 : f32 to vector<8x32xf32>
    %72 = arith.subf %71, %65 : vector<8x32xf32>
    %73 = arith.mulf %72, %70 : vector<8x32xf32>
    %74 = arith.mulf %65, %44 : vector<8x32xf32>
    %75 = arith.addf %73, %74 : vector<8x32xf32>
    %76 = vector.extract_strided_slice %41 {offsets = [0, 1, 0], sizes = [8, 1, 96], strides = [1, 1, 1]} : vector<8x8x96xf32> to vector<8x1x96xf32>
    %77 = vector.shape_cast %76 : vector<8x1x96xf32> to vector<8x96xf32>
    %cst_35 = arith.constant dense<0.000000e+00> : vector<8x96xf32>
    %78 = tpu.matmul %75, %42, %cst_35 {dimension_numbers = #tpu.dot_dimension_numbers<[1], [0], [0], [1], [0, 0, 1, 1], [], []>} : vector<8x32xf32>, vector<32x96xf32>, vector<8x96xf32> -> vector<8x96xf32>
    %79 = vector.broadcast %43 : vector<1x96xf32> to vector<8x96xf32>
    %80 = arith.addf %78, %79 : vector<8x96xf32>
    %81 = vector.extract_strided_slice %77 {offsets = [0, 0], sizes = [8, 32], strides = [1, 1]} : vector<8x96xf32> to vector<8x32xf32>
    %82 = vector.extract_strided_slice %80 {offsets = [0, 0], sizes = [8, 32], strides = [1, 1]} : vector<8x96xf32> to vector<8x32xf32>
    %83 = arith.addf %81, %82 : vector<8x32xf32>
    %84 = arith.negf %83 : vector<8x32xf32>
    %85 = math.exp %84 : vector<8x32xf32>
    %cst_36 = arith.constant 1.000000e+00 : f32
    %86 = vector.broadcast %cst_36 : f32 to vector<8x32xf32>
    %87 = arith.addf %86, %85 : vector<8x32xf32>
    %88 = arith.divf %86, %87 : vector<8x32xf32>
    %89 = vector.extract_strided_slice %77 {offsets = [0, 32], sizes = [8, 32], strides = [1, 1]} : vector<8x96xf32> to vector<8x32xf32>
    %90 = vector.extract_strided_slice %80 {offsets = [0, 32], sizes = [8, 32], strides = [1, 1]} : vector<8x96xf32> to vector<8x32xf32>
    %91 = arith.addf %89, %90 : vector<8x32xf32>
    %92 = arith.negf %91 : vector<8x32xf32>
    %93 = math.exp %92 : vector<8x32xf32>
    %cst_37 = arith.constant 1.000000e+00 : f32
    %94 = vector.broadcast %cst_37 : f32 to vector<8x32xf32>
    %95 = arith.addf %94, %93 : vector<8x32xf32>
    %96 = arith.divf %94, %95 : vector<8x32xf32>
    %97 = vector.extract_strided_slice %77 {offsets = [0, 64], sizes = [8, 32], strides = [1, 1]} : vector<8x96xf32> to vector<8x32xf32>
    %98 = vector.extract_strided_slice %80 {offsets = [0, 64], sizes = [8, 32], strides = [1, 1]} : vector<8x96xf32> to vector<8x32xf32>
    %99 = arith.mulf %88, %98 : vector<8x32xf32>
    %100 = arith.addf %97, %99 : vector<8x32xf32>
    %101 = math.tanh %100 : vector<8x32xf32>
    %cst_38 = arith.constant 1.000000e+00 : f32
    %102 = vector.broadcast %cst_38 : f32 to vector<8x32xf32>
    %103 = arith.subf %102, %96 : vector<8x32xf32>
    %104 = arith.mulf %103, %101 : vector<8x32xf32>
    %105 = arith.mulf %96, %75 : vector<8x32xf32>
    %106 = arith.addf %104, %105 : vector<8x32xf32>
    %107 = vector.extract_strided_slice %41 {offsets = [0, 2, 0], sizes = [8, 1, 96], strides = [1, 1, 1]} : vector<8x8x96xf32> to vector<8x1x96xf32>
    %108 = vector.shape_cast %107 : vector<8x1x96xf32> to vector<8x96xf32>
    %cst_39 = arith.constant dense<0.000000e+00> : vector<8x96xf32>
    %109 = tpu.matmul %106, %42, %cst_39 {dimension_numbers = #tpu.dot_dimension_numbers<[1], [0], [0], [1], [0, 0, 1, 1], [], []>} : vector<8x32xf32>, vector<32x96xf32>, vector<8x96xf32> -> vector<8x96xf32>
    %110 = vector.broadcast %43 : vector<1x96xf32> to vector<8x96xf32>
    %111 = arith.addf %109, %110 : vector<8x96xf32>
    %112 = vector.extract_strided_slice %108 {offsets = [0, 0], sizes = [8, 32], strides = [1, 1]} : vector<8x96xf32> to vector<8x32xf32>
    %113 = vector.extract_strided_slice %111 {offsets = [0, 0], sizes = [8, 32], strides = [1, 1]} : vector<8x96xf32> to vector<8x32xf32>
    %114 = arith.addf %112, %113 : vector<8x32xf32>
    %115 = arith.negf %114 : vector<8x32xf32>
    %116 = math.exp %115 : vector<8x32xf32>
    %cst_40 = arith.constant 1.000000e+00 : f32
    %117 = vector.broadcast %cst_40 : f32 to vector<8x32xf32>
    %118 = arith.addf %117, %116 : vector<8x32xf32>
    %119 = arith.divf %117, %118 : vector<8x32xf32>
    %120 = vector.extract_strided_slice %108 {offsets = [0, 32], sizes = [8, 32], strides = [1, 1]} : vector<8x96xf32> to vector<8x32xf32>
    %121 = vector.extract_strided_slice %111 {offsets = [0, 32], sizes = [8, 32], strides = [1, 1]} : vector<8x96xf32> to vector<8x32xf32>
    %122 = arith.addf %120, %121 : vector<8x32xf32>
    %123 = arith.negf %122 : vector<8x32xf32>
    %124 = math.exp %123 : vector<8x32xf32>
    %cst_41 = arith.constant 1.000000e+00 : f32
    %125 = vector.broadcast %cst_41 : f32 to vector<8x32xf32>
    %126 = arith.addf %125, %124 : vector<8x32xf32>
    %127 = arith.divf %125, %126 : vector<8x32xf32>
    %128 = vector.extract_strided_slice %108 {offsets = [0, 64], sizes = [8, 32], strides = [1, 1]} : vector<8x96xf32> to vector<8x32xf32>
    %129 = vector.extract_strided_slice %111 {offsets = [0, 64], sizes = [8, 32], strides = [1, 1]} : vector<8x96xf32> to vector<8x32xf32>
    %130 = arith.mulf %119, %129 : vector<8x32xf32>
    %131 = arith.addf %128, %130 : vector<8x32xf32>
    %132 = math.tanh %131 : vector<8x32xf32>
    %cst_42 = arith.constant 1.000000e+00 : f32
    %133 = vector.broadcast %cst_42 : f32 to vector<8x32xf32>
    %134 = arith.subf %133, %127 : vector<8x32xf32>
    %135 = arith.mulf %134, %132 : vector<8x32xf32>
    %136 = arith.mulf %127, %106 : vector<8x32xf32>
    %137 = arith.addf %135, %136 : vector<8x32xf32>
    %138 = vector.extract_strided_slice %41 {offsets = [0, 3, 0], sizes = [8, 1, 96], strides = [1, 1, 1]} : vector<8x8x96xf32> to vector<8x1x96xf32>
    %139 = vector.shape_cast %138 : vector<8x1x96xf32> to vector<8x96xf32>
    %cst_43 = arith.constant dense<0.000000e+00> : vector<8x96xf32>
    %140 = tpu.matmul %137, %42, %cst_43 {dimension_numbers = #tpu.dot_dimension_numbers<[1], [0], [0], [1], [0, 0, 1, 1], [], []>} : vector<8x32xf32>, vector<32x96xf32>, vector<8x96xf32> -> vector<8x96xf32>
    %141 = vector.broadcast %43 : vector<1x96xf32> to vector<8x96xf32>
    %142 = arith.addf %140, %141 : vector<8x96xf32>
    %143 = vector.extract_strided_slice %139 {offsets = [0, 0], sizes = [8, 32], strides = [1, 1]} : vector<8x96xf32> to vector<8x32xf32>
    %144 = vector.extract_strided_slice %142 {offsets = [0, 0], sizes = [8, 32], strides = [1, 1]} : vector<8x96xf32> to vector<8x32xf32>
    %145 = arith.addf %143, %144 : vector<8x32xf32>
    %146 = arith.negf %145 : vector<8x32xf32>
    %147 = math.exp %146 : vector<8x32xf32>
    %cst_44 = arith.constant 1.000000e+00 : f32
    %148 = vector.broadcast %cst_44 : f32 to vector<8x32xf32>
    %149 = arith.addf %148, %147 : vector<8x32xf32>
    %150 = arith.divf %148, %149 : vector<8x32xf32>
    %151 = vector.extract_strided_slice %139 {offsets = [0, 32], sizes = [8, 32], strides = [1, 1]} : vector<8x96xf32> to vector<8x32xf32>
    %152 = vector.extract_strided_slice %142 {offsets = [0, 32], sizes = [8, 32], strides = [1, 1]} : vector<8x96xf32> to vector<8x32xf32>
    %153 = arith.addf %151, %152 : vector<8x32xf32>
    %154 = arith.negf %153 : vector<8x32xf32>
    %155 = math.exp %154 : vector<8x32xf32>
    %cst_45 = arith.constant 1.000000e+00 : f32
    %156 = vector.broadcast %cst_45 : f32 to vector<8x32xf32>
    %157 = arith.addf %156, %155 : vector<8x32xf32>
    %158 = arith.divf %156, %157 : vector<8x32xf32>
    %159 = vector.extract_strided_slice %139 {offsets = [0, 64], sizes = [8, 32], strides = [1, 1]} : vector<8x96xf32> to vector<8x32xf32>
    %160 = vector.extract_strided_slice %142 {offsets = [0, 64], sizes = [8, 32], strides = [1, 1]} : vector<8x96xf32> to vector<8x32xf32>
    %161 = arith.mulf %150, %160 : vector<8x32xf32>
    %162 = arith.addf %159, %161 : vector<8x32xf32>
    %163 = math.tanh %162 : vector<8x32xf32>
    %cst_46 = arith.constant 1.000000e+00 : f32
    %164 = vector.broadcast %cst_46 : f32 to vector<8x32xf32>
    %165 = arith.subf %164, %158 : vector<8x32xf32>
    %166 = arith.mulf %165, %163 : vector<8x32xf32>
    %167 = arith.mulf %158, %137 : vector<8x32xf32>
    %168 = arith.addf %166, %167 : vector<8x32xf32>
    %169 = vector.extract_strided_slice %41 {offsets = [0, 4, 0], sizes = [8, 1, 96], strides = [1, 1, 1]} : vector<8x8x96xf32> to vector<8x1x96xf32>
    %170 = vector.shape_cast %169 : vector<8x1x96xf32> to vector<8x96xf32>
    %cst_47 = arith.constant dense<0.000000e+00> : vector<8x96xf32>
    %171 = tpu.matmul %168, %42, %cst_47 {dimension_numbers = #tpu.dot_dimension_numbers<[1], [0], [0], [1], [0, 0, 1, 1], [], []>} : vector<8x32xf32>, vector<32x96xf32>, vector<8x96xf32> -> vector<8x96xf32>
    %172 = vector.broadcast %43 : vector<1x96xf32> to vector<8x96xf32>
    %173 = arith.addf %171, %172 : vector<8x96xf32>
    %174 = vector.extract_strided_slice %170 {offsets = [0, 0], sizes = [8, 32], strides = [1, 1]} : vector<8x96xf32> to vector<8x32xf32>
    %175 = vector.extract_strided_slice %173 {offsets = [0, 0], sizes = [8, 32], strides = [1, 1]} : vector<8x96xf32> to vector<8x32xf32>
    %176 = arith.addf %174, %175 : vector<8x32xf32>
    %177 = arith.negf %176 : vector<8x32xf32>
    %178 = math.exp %177 : vector<8x32xf32>
    %cst_48 = arith.constant 1.000000e+00 : f32
    %179 = vector.broadcast %cst_48 : f32 to vector<8x32xf32>
    %180 = arith.addf %179, %178 : vector<8x32xf32>
    %181 = arith.divf %179, %180 : vector<8x32xf32>
    %182 = vector.extract_strided_slice %170 {offsets = [0, 32], sizes = [8, 32], strides = [1, 1]} : vector<8x96xf32> to vector<8x32xf32>
    %183 = vector.extract_strided_slice %173 {offsets = [0, 32], sizes = [8, 32], strides = [1, 1]} : vector<8x96xf32> to vector<8x32xf32>
    %184 = arith.addf %182, %183 : vector<8x32xf32>
    %185 = arith.negf %184 : vector<8x32xf32>
    %186 = math.exp %185 : vector<8x32xf32>
    %cst_49 = arith.constant 1.000000e+00 : f32
    %187 = vector.broadcast %cst_49 : f32 to vector<8x32xf32>
    %188 = arith.addf %187, %186 : vector<8x32xf32>
    %189 = arith.divf %187, %188 : vector<8x32xf32>
    %190 = vector.extract_strided_slice %170 {offsets = [0, 64], sizes = [8, 32], strides = [1, 1]} : vector<8x96xf32> to vector<8x32xf32>
    %191 = vector.extract_strided_slice %173 {offsets = [0, 64], sizes = [8, 32], strides = [1, 1]} : vector<8x96xf32> to vector<8x32xf32>
    %192 = arith.mulf %181, %191 : vector<8x32xf32>
    %193 = arith.addf %190, %192 : vector<8x32xf32>
    %194 = math.tanh %193 : vector<8x32xf32>
    %cst_50 = arith.constant 1.000000e+00 : f32
    %195 = vector.broadcast %cst_50 : f32 to vector<8x32xf32>
    %196 = arith.subf %195, %189 : vector<8x32xf32>
    %197 = arith.mulf %196, %194 : vector<8x32xf32>
    %198 = arith.mulf %189, %168 : vector<8x32xf32>
    %199 = arith.addf %197, %198 : vector<8x32xf32>
    %200 = vector.extract_strided_slice %41 {offsets = [0, 5, 0], sizes = [8, 1, 96], strides = [1, 1, 1]} : vector<8x8x96xf32> to vector<8x1x96xf32>
    %201 = vector.shape_cast %200 : vector<8x1x96xf32> to vector<8x96xf32>
    %cst_51 = arith.constant dense<0.000000e+00> : vector<8x96xf32>
    %202 = tpu.matmul %199, %42, %cst_51 {dimension_numbers = #tpu.dot_dimension_numbers<[1], [0], [0], [1], [0, 0, 1, 1], [], []>} : vector<8x32xf32>, vector<32x96xf32>, vector<8x96xf32> -> vector<8x96xf32>
    %203 = vector.broadcast %43 : vector<1x96xf32> to vector<8x96xf32>
    %204 = arith.addf %202, %203 : vector<8x96xf32>
    %205 = vector.extract_strided_slice %201 {offsets = [0, 0], sizes = [8, 32], strides = [1, 1]} : vector<8x96xf32> to vector<8x32xf32>
    %206 = vector.extract_strided_slice %204 {offsets = [0, 0], sizes = [8, 32], strides = [1, 1]} : vector<8x96xf32> to vector<8x32xf32>
    %207 = arith.addf %205, %206 : vector<8x32xf32>
    %208 = arith.negf %207 : vector<8x32xf32>
    %209 = math.exp %208 : vector<8x32xf32>
    %cst_52 = arith.constant 1.000000e+00 : f32
    %210 = vector.broadcast %cst_52 : f32 to vector<8x32xf32>
    %211 = arith.addf %210, %209 : vector<8x32xf32>
    %212 = arith.divf %210, %211 : vector<8x32xf32>
    %213 = vector.extract_strided_slice %201 {offsets = [0, 32], sizes = [8, 32], strides = [1, 1]} : vector<8x96xf32> to vector<8x32xf32>
    %214 = vector.extract_strided_slice %204 {offsets = [0, 32], sizes = [8, 32], strides = [1, 1]} : vector<8x96xf32> to vector<8x32xf32>
    %215 = arith.addf %213, %214 : vector<8x32xf32>
    %216 = arith.negf %215 : vector<8x32xf32>
    %217 = math.exp %216 : vector<8x32xf32>
    %cst_53 = arith.constant 1.000000e+00 : f32
    %218 = vector.broadcast %cst_53 : f32 to vector<8x32xf32>
    %219 = arith.addf %218, %217 : vector<8x32xf32>
    %220 = arith.divf %218, %219 : vector<8x32xf32>
    %221 = vector.extract_strided_slice %201 {offsets = [0, 64], sizes = [8, 32], strides = [1, 1]} : vector<8x96xf32> to vector<8x32xf32>
    %222 = vector.extract_strided_slice %204 {offsets = [0, 64], sizes = [8, 32], strides = [1, 1]} : vector<8x96xf32> to vector<8x32xf32>
    %223 = arith.mulf %212, %222 : vector<8x32xf32>
    %224 = arith.addf %221, %223 : vector<8x32xf32>
    %225 = math.tanh %224 : vector<8x32xf32>
    %cst_54 = arith.constant 1.000000e+00 : f32
    %226 = vector.broadcast %cst_54 : f32 to vector<8x32xf32>
    %227 = arith.subf %226, %220 : vector<8x32xf32>
    %228 = arith.mulf %227, %225 : vector<8x32xf32>
    %229 = arith.mulf %220, %199 : vector<8x32xf32>
    %230 = arith.addf %228, %229 : vector<8x32xf32>
    %231 = vector.extract_strided_slice %41 {offsets = [0, 6, 0], sizes = [8, 1, 96], strides = [1, 1, 1]} : vector<8x8x96xf32> to vector<8x1x96xf32>
    %232 = vector.shape_cast %231 : vector<8x1x96xf32> to vector<8x96xf32>
    %cst_55 = arith.constant dense<0.000000e+00> : vector<8x96xf32>
    %233 = tpu.matmul %230, %42, %cst_55 {dimension_numbers = #tpu.dot_dimension_numbers<[1], [0], [0], [1], [0, 0, 1, 1], [], []>} : vector<8x32xf32>, vector<32x96xf32>, vector<8x96xf32> -> vector<8x96xf32>
    %234 = vector.broadcast %43 : vector<1x96xf32> to vector<8x96xf32>
    %235 = arith.addf %233, %234 : vector<8x96xf32>
    %236 = vector.extract_strided_slice %232 {offsets = [0, 0], sizes = [8, 32], strides = [1, 1]} : vector<8x96xf32> to vector<8x32xf32>
    %237 = vector.extract_strided_slice %235 {offsets = [0, 0], sizes = [8, 32], strides = [1, 1]} : vector<8x96xf32> to vector<8x32xf32>
    %238 = arith.addf %236, %237 : vector<8x32xf32>
    %239 = arith.negf %238 : vector<8x32xf32>
    %240 = math.exp %239 : vector<8x32xf32>
    %cst_56 = arith.constant 1.000000e+00 : f32
    %241 = vector.broadcast %cst_56 : f32 to vector<8x32xf32>
    %242 = arith.addf %241, %240 : vector<8x32xf32>
    %243 = arith.divf %241, %242 : vector<8x32xf32>
    %244 = vector.extract_strided_slice %232 {offsets = [0, 32], sizes = [8, 32], strides = [1, 1]} : vector<8x96xf32> to vector<8x32xf32>
    %245 = vector.extract_strided_slice %235 {offsets = [0, 32], sizes = [8, 32], strides = [1, 1]} : vector<8x96xf32> to vector<8x32xf32>
    %246 = arith.addf %244, %245 : vector<8x32xf32>
    %247 = arith.negf %246 : vector<8x32xf32>
    %248 = math.exp %247 : vector<8x32xf32>
    %cst_57 = arith.constant 1.000000e+00 : f32
    %249 = vector.broadcast %cst_57 : f32 to vector<8x32xf32>
    %250 = arith.addf %249, %248 : vector<8x32xf32>
    %251 = arith.divf %249, %250 : vector<8x32xf32>
    %252 = vector.extract_strided_slice %232 {offsets = [0, 64], sizes = [8, 32], strides = [1, 1]} : vector<8x96xf32> to vector<8x32xf32>
    %253 = vector.extract_strided_slice %235 {offsets = [0, 64], sizes = [8, 32], strides = [1, 1]} : vector<8x96xf32> to vector<8x32xf32>
    %254 = arith.mulf %243, %253 : vector<8x32xf32>
    %255 = arith.addf %252, %254 : vector<8x32xf32>
    %256 = math.tanh %255 : vector<8x32xf32>
    %cst_58 = arith.constant 1.000000e+00 : f32
    %257 = vector.broadcast %cst_58 : f32 to vector<8x32xf32>
    %258 = arith.subf %257, %251 : vector<8x32xf32>
    %259 = arith.mulf %258, %256 : vector<8x32xf32>
    %260 = arith.mulf %251, %230 : vector<8x32xf32>
    %261 = arith.addf %259, %260 : vector<8x32xf32>
    %262 = vector.extract_strided_slice %41 {offsets = [0, 7, 0], sizes = [8, 1, 96], strides = [1, 1, 1]} : vector<8x8x96xf32> to vector<8x1x96xf32>
    %263 = vector.shape_cast %262 : vector<8x1x96xf32> to vector<8x96xf32>
    %cst_59 = arith.constant dense<0.000000e+00> : vector<8x96xf32>
    %264 = tpu.matmul %261, %42, %cst_59 {dimension_numbers = #tpu.dot_dimension_numbers<[1], [0], [0], [1], [0, 0, 1, 1], [], []>} : vector<8x32xf32>, vector<32x96xf32>, vector<8x96xf32> -> vector<8x96xf32>
    %265 = vector.broadcast %43 : vector<1x96xf32> to vector<8x96xf32>
    %266 = arith.addf %264, %265 : vector<8x96xf32>
    %267 = vector.extract_strided_slice %263 {offsets = [0, 0], sizes = [8, 32], strides = [1, 1]} : vector<8x96xf32> to vector<8x32xf32>
    %268 = vector.extract_strided_slice %266 {offsets = [0, 0], sizes = [8, 32], strides = [1, 1]} : vector<8x96xf32> to vector<8x32xf32>
    %269 = arith.addf %267, %268 : vector<8x32xf32>
    %270 = arith.negf %269 : vector<8x32xf32>
    %271 = math.exp %270 : vector<8x32xf32>
    %cst_60 = arith.constant 1.000000e+00 : f32
    %272 = vector.broadcast %cst_60 : f32 to vector<8x32xf32>
    %273 = arith.addf %272, %271 : vector<8x32xf32>
    %274 = arith.divf %272, %273 : vector<8x32xf32>
    %275 = vector.extract_strided_slice %263 {offsets = [0, 32], sizes = [8, 32], strides = [1, 1]} : vector<8x96xf32> to vector<8x32xf32>
    %276 = vector.extract_strided_slice %266 {offsets = [0, 32], sizes = [8, 32], strides = [1, 1]} : vector<8x96xf32> to vector<8x32xf32>
    %277 = arith.addf %275, %276 : vector<8x32xf32>
    %278 = arith.negf %277 : vector<8x32xf32>
    %279 = math.exp %278 : vector<8x32xf32>
    %cst_61 = arith.constant 1.000000e+00 : f32
    %280 = vector.broadcast %cst_61 : f32 to vector<8x32xf32>
    %281 = arith.addf %280, %279 : vector<8x32xf32>
    %282 = arith.divf %280, %281 : vector<8x32xf32>
    %283 = vector.extract_strided_slice %263 {offsets = [0, 64], sizes = [8, 32], strides = [1, 1]} : vector<8x96xf32> to vector<8x32xf32>
    %284 = vector.extract_strided_slice %266 {offsets = [0, 64], sizes = [8, 32], strides = [1, 1]} : vector<8x96xf32> to vector<8x32xf32>
    %285 = arith.mulf %274, %284 : vector<8x32xf32>
    %286 = arith.addf %283, %285 : vector<8x32xf32>
    %287 = math.tanh %286 : vector<8x32xf32>
    %cst_62 = arith.constant 1.000000e+00 : f32
    %288 = vector.broadcast %cst_62 : f32 to vector<8x32xf32>
    %289 = arith.subf %288, %282 : vector<8x32xf32>
    %290 = arith.mulf %289, %287 : vector<8x32xf32>
    %291 = arith.mulf %282, %261 : vector<8x32xf32>
    %292 = arith.addf %290, %291 : vector<8x32xf32>
    %293 = tpu.concatenate %33, %292 in 1 : vector<8x64xf32>, vector<8x32xf32> -> vector<8x96xf32>
    %294 = vector.extract_strided_slice %5 {offsets = [0, 0], sizes = [1, 64], strides = [1, 1]} : vector<8x64xf32> to vector<1x64xf32>
    %295 = vector.shape_cast %294 : vector<1x64xf32> to vector<1x64xf32>
    %296 = vector.broadcast %295 : vector<1x64xf32> to vector<8x64xf32>
    %cst_63 = arith.constant 0.000000e+00 : f32
    %297 = vector.broadcast %cst_63 : f32 to vector<8x64xf32>
    %c0_64 = arith.constant 0 : index
    %c0_65 = arith.constant 0 : index
    %298 = vector.load %arg12[%c0_64, %c0_65] : memref<96x256xf32, #tpu.memory_space<vmem>>, vector<96x256xf32>
    %cst_66 = arith.constant dense<0.000000e+00> : vector<8x256xf32>
    %299 = tpu.matmul %293, %298, %cst_66 {dimension_numbers = #tpu.dot_dimension_numbers<[1], [0], [0], [1], [0, 0, 1, 1], [], []>} : vector<8x96xf32>, vector<96x256xf32>, vector<8x256xf32> -> vector<8x256xf32>
    %c0_67 = arith.constant 0 : index
    %c0_68 = arith.constant 0 : index
    %300 = vector.load %arg13[%c0_67, %c0_68] : memref<64x256xf32, #tpu.memory_space<vmem>>, vector<64x256xf32>
    %cst_69 = arith.constant dense<0.000000e+00> : vector<8x256xf32>
    %301 = tpu.matmul %296, %300, %cst_69 {dimension_numbers = #tpu.dot_dimension_numbers<[1], [0], [0], [1], [0, 0, 1, 1], [], []>} : vector<8x64xf32>, vector<64x256xf32>, vector<8x256xf32> -> vector<8x256xf32>
    %302 = arith.addf %299, %301 : vector<8x256xf32>
    %c0_70 = arith.constant 0 : index
    %c0_71 = arith.constant 0 : index
    %303 = vector.load %arg14[%c0_70, %c0_71] : memref<1x256xf32, #tpu.memory_space<vmem>>, vector<1x256xf32>
    %304 = vector.broadcast %303 : vector<1x256xf32> to vector<8x256xf32>
    %305 = arith.addf %302, %304 : vector<8x256xf32>
    %306 = vector.extract_strided_slice %305 {offsets = [0, 0], sizes = [8, 64], strides = [1, 1]} : vector<8x256xf32> to vector<8x64xf32>
    %307 = arith.negf %306 : vector<8x64xf32>
    %308 = math.exp %307 : vector<8x64xf32>
    %cst_72 = arith.constant 1.000000e+00 : f32
    %309 = vector.broadcast %cst_72 : f32 to vector<8x64xf32>
    %310 = arith.addf %309, %308 : vector<8x64xf32>
    %311 = arith.divf %309, %310 : vector<8x64xf32>
    %312 = vector.extract_strided_slice %305 {offsets = [0, 64], sizes = [8, 64], strides = [1, 1]} : vector<8x256xf32> to vector<8x64xf32>
    %313 = arith.negf %312 : vector<8x64xf32>
    %314 = math.exp %313 : vector<8x64xf32>
    %cst_73 = arith.constant 1.000000e+00 : f32
    %315 = vector.broadcast %cst_73 : f32 to vector<8x64xf32>
    %316 = arith.addf %315, %314 : vector<8x64xf32>
    %317 = arith.divf %315, %316 : vector<8x64xf32>
    %318 = vector.extract_strided_slice %305 {offsets = [0, 128], sizes = [8, 64], strides = [1, 1]} : vector<8x256xf32> to vector<8x64xf32>
    %319 = math.tanh %318 : vector<8x64xf32>
    %320 = vector.extract_strided_slice %305 {offsets = [0, 192], sizes = [8, 64], strides = [1, 1]} : vector<8x256xf32> to vector<8x64xf32>
    %321 = arith.negf %320 : vector<8x64xf32>
    %322 = math.exp %321 : vector<8x64xf32>
    %cst_74 = arith.constant 1.000000e+00 : f32
    %323 = vector.broadcast %cst_74 : f32 to vector<8x64xf32>
    %324 = arith.addf %323, %322 : vector<8x64xf32>
    %325 = arith.divf %323, %324 : vector<8x64xf32>
    %326 = arith.mulf %317, %297 : vector<8x64xf32>
    %327 = arith.mulf %311, %319 : vector<8x64xf32>
    %328 = arith.addf %326, %327 : vector<8x64xf32>
    %329 = math.tanh %328 : vector<8x64xf32>
    %330 = arith.mulf %325, %329 : vector<8x64xf32>
    %c0_75 = arith.constant 0 : index
    %c0_76 = arith.constant 0 : index
    %331 = vector.load %arg15[%c0_75, %c0_76] : memref<1x64xf32, #tpu.memory_space<vmem>>, vector<1x64xf32>
    %332 = vector.broadcast %331 : vector<1x64xf32> to vector<8x64xf32>
    %333 = arith.mulf %330, %332 : vector<8x64xf32>
    %cst_77 = arith.constant dense<0.000000e+00> : vector<8xf32>
    %334 = vector.multi_reduction <add>, %333, %cst_77 [1] : vector<8x64xf32> to vector<8xf32>
    %335 = vector.shape_cast %334 : vector<8xf32> to vector<8x1xf32>
    %c0_78 = arith.constant 0 : index
    %c0_79 = arith.constant 0 : index
    %336 = vector.load %arg16[%c0_78, %c0_79] : memref<1x1xf32, #tpu.memory_space<vmem>>, vector<1x1xf32>
    %337 = vector.broadcast %336 : vector<1x1xf32> to vector<8x1xf32>
    %338 = arith.addf %335, %337 : vector<8x1xf32>
    %339 = arith.negf %338 : vector<8x1xf32>
    %340 = math.exp %339 : vector<8x1xf32>
    %cst_80 = arith.constant 1.000000e+00 : f32
    %341 = vector.broadcast %cst_80 : f32 to vector<8x1xf32>
    %342 = arith.addf %341, %340 : vector<8x1xf32>
    %343 = arith.divf %341, %342 : vector<8x1xf32>
    %344 = vector.shape_cast %343 : vector<8x1xf32> to vector<8x1xf32>
    %345 = vector.broadcast %344 : vector<8x1xf32> to vector<8x64xf32>
    %346 = tpu.concatenate %330, %328, %5, %345 in 1 : vector<8x64xf32>, vector<8x64xf32>, vector<8x64xf32>, vector<8x64xf32> -> vector<8x256xf32>
    %c0_81 = arith.constant 0 : index
    %c0_82 = arith.constant 0 : index
    %347 = vector.load %arg17[%c0_81, %c0_82] : memref<8x256xf32, #tpu.memory_space<vmem>>, vector<8x256xf32>
    tpu.vector_store %arg17[%c0_81, %c0_82], %346 {strides = array<i32>} : memref<8x256xf32, #tpu.memory_space<vmem>>, vector<8x256xf32>,
    return
  }
  func.func @transform_0(%arg0: i32) -> (i32, i32) {
    %c0_i32 = arith.constant 0 : i32
    %c0_i32_0 = arith.constant 0 : i32
    %c0_i32_1 = arith.constant 0 : i32
    return %c0_i32, %c0_i32_0 : i32, i32
  }
  func.func @transform_1(%arg0: i32) -> (i32, i32) {
    %c0_i32 = arith.constant 0 : i32
    %c0_i32_0 = arith.constant 0 : i32
    %c0_i32_1 = arith.constant 0 : i32
    return %c0_i32, %c0_i32_0 : i32, i32
  }
  func.func @transform_2(%arg0: i32) -> (i32, i32) {
    %c0_i32 = arith.constant 0 : i32
    %c0_i32_0 = arith.constant 0 : i32
    %c0_i32_1 = arith.constant 0 : i32
    return %c0_i32, %c0_i32_0 : i32, i32
  }
  func.func @transform_3(%arg0: i32) -> (i32, i32, i32) {
    %c0_i32 = arith.constant 0 : i32
    %c0_i32_0 = arith.constant 0 : i32
    %c0_i32_1 = arith.constant 0 : i32
    %c0_i32_2 = arith.constant 0 : i32
    return %c0_i32, %c0_i32_0, %c0_i32_1 : i32, i32, i32
  }
  func.func @transform_4(%arg0: i32) -> (i32, i32) {
    %c0_i32 = arith.constant 0 : i32
    %c0_i32_0 = arith.constant 0 : i32
    %c0_i32_1 = arith.constant 0 : i32
    return %c0_i32, %c0_i32_0 : i32, i32
  }
  func.func @transform_5(%arg0: i32) -> (i32, i32) {
    %c0_i32 = arith.constant 0 : i32
    %c0_i32_0 = arith.constant 0 : i32
    %c0_i32_1 = arith.constant 0 : i32
    return %c0_i32, %c0_i32_0 : i32, i32
  }
  func.func @transform_6(%arg0: i32) -> (i32, i32, i32) {
    %c0_i32 = arith.constant 0 : i32
    %c0_i32_0 = arith.constant 0 : i32
    %c0_i32_1 = arith.constant 0 : i32
    %c0_i32_2 = arith.constant 0 : i32
    return %c0_i32, %c0_i32_0, %c0_i32_1 : i32, i32, i32
  }
  func.func @transform_7(%arg0: i32) -> (i32, i32) {
    %c0_i32 = arith.constant 0 : i32
    %c0_i32_0 = arith.constant 0 : i32
    %c0_i32_1 = arith.constant 0 : i32
    return %c0_i32, %c0_i32_0 : i32, i32
  }
  func.func @transform_8(%arg0: i32) -> (i32, i32) {
    %c0_i32 = arith.constant 0 : i32
    %c0_i32_0 = arith.constant 0 : i32
    %c0_i32_1 = arith.constant 0 : i32
    return %c0_i32, %c0_i32_0 : i32, i32
  }
  func.func @transform_9(%arg0: i32) -> (i32, i32) {
    %c0_i32 = arith.constant 0 : i32
    %c0_i32_0 = arith.constant 0 : i32
    %c0_i32_1 = arith.constant 0 : i32
    return %c0_i32, %c0_i32_0 : i32, i32
  }
  func.func @transform_10(%arg0: i32) -> (i32, i32) {
    %c0_i32 = arith.constant 0 : i32
    %c0_i32_0 = arith.constant 0 : i32
    %c0_i32_1 = arith.constant 0 : i32
    return %c0_i32, %c0_i32_0 : i32, i32
  }
  func.func @transform_11(%arg0: i32) -> (i32, i32) {
    %c0_i32 = arith.constant 0 : i32
    %c0_i32_0 = arith.constant 0 : i32
    %c0_i32_1 = arith.constant 0 : i32
    return %c0_i32, %c0_i32_0 : i32, i32
  }
  func.func @transform_12(%arg0: i32) -> (i32, i32) {
    %c0_i32 = arith.constant 0 : i32
    %c0_i32_0 = arith.constant 0 : i32
    %c0_i32_1 = arith.constant 0 : i32
    return %c0_i32, %c0_i32_0 : i32, i32
  }
  func.func @transform_13(%arg0: i32) -> (i32, i32) {
    %c0_i32 = arith.constant 0 : i32
    %c0_i32_0 = arith.constant 0 : i32
    %c0_i32_1 = arith.constant 0 : i32
    return %c0_i32, %c0_i32_0 : i32, i32
  }
  func.func @transform_14(%arg0: i32) -> (i32, i32) {
    %c0_i32 = arith.constant 0 : i32
    %c0_i32_0 = arith.constant 0 : i32
    %c0_i32_1 = arith.constant 0 : i32
    return %c0_i32, %c0_i32_0 : i32, i32
  }
  func.func @transform_15(%arg0: i32) -> (i32, i32) {
    %c0_i32 = arith.constant 0 : i32
    %c0_i32_0 = arith.constant 0 : i32
    %c0_i32_1 = arith.constant 0 : i32
    return %c0_i32, %c0_i32_0 : i32, i32
  }
  func.func @transform_16(%arg0: i32) -> (i32, i32) {
    %c0_i32 = arith.constant 0 : i32
    %c0_i32_0 = arith.constant 0 : i32
    %c0_i32_1 = arith.constant 0 : i32
    return %c0_i32, %c0_i32_0 : i32, i32
  }
}

</mosaic_0001>

<llo_original>
// kernel: tpu_custom_call.1
$region0: #{tpu_custom_call.1}
  #allocation0 [shape = 'u32[]', space=smem, size = 0x4, offset = 0x4, fixed_abs, tag = 'smem constant byte address 0x4 - core index']
  #allocation1 [shape = 'u32[144,128]{1,0:T(1,128)}', space=vmem, size = 0x12000, scoped, tag = 'internal scratch']
  #allocation2 [shape = 'f32[1,1]{1,0:T(1,128)S(1)}', space=vmem, size = 0x200, scoped, tag = 'scoped memory for tpu_custom_call.1']
  %s0 = inlined_call_operand.vmem [shape: f32[8,256], index: 0, kind: input, shape index: {}]
  %s1 = inlined_call_operand.vmem [shape: f32[256,64], index: 1, kind: input, shape index: {}]
  %s2 = inlined_call_operand.vmem [shape: f32[1,64], index: 2, kind: input, shape index: {}]
  %s3 = inlined_call_operand.vmem [shape: f32[8,16,128], index: 3, kind: input, shape index: {}]
  %s4 = inlined_call_operand.vmem [shape: f32[128,160], index: 4, kind: input, shape index: {}]
  %s5 = inlined_call_operand.vmem [shape: f32[1,64], index: 5, kind: input, shape index: {}]
  %s6 = inlined_call_operand.vmem [shape: f32[8,8,128], index: 6, kind: input, shape index: {}]
  %s7 = inlined_call_operand.vmem [shape: f32[128,96], index: 7, kind: input, shape index: {}]
  %s8 = inlined_call_operand.vmem [shape: f32[32,96], index: 8, kind: input, shape index: {}]
  %s9 = inlined_call_operand.vmem [shape: f32[1,96], index: 9, kind: input, shape index: {}]
  %s10 = inlined_call_operand.vmem [shape: f32[1,96], index: 10, kind: input, shape index: {}]
  %s11 = inlined_call_operand.vmem [shape: f32[96,256], index: 11, kind: input, shape index: {}]
  %s12 = inlined_call_operand.vmem [shape: f32[64,256], index: 12, kind: input, shape index: {}]
  %s13 = inlined_call_operand.vmem [shape: f32[1,256], index: 13, kind: input, shape index: {}]
  %s14 = inlined_call_operand.vmem [shape: f32[1,64], index: 14, kind: input, shape index: {}]
  %s15 = inlined_call_operand.<no memory space> [shape: f32[1,1], index: 15, kind: input, shape index: {}]
  %s16 = inlined_call_operand.hbm [shape: f32[8,256], index: 16, kind: output, shape index: {}]
  %s17 = sld [smem:[#allocation0]]
  $region74: #{tpu_custom_call.1} parent=0
    _
  %s19 = ssub.s32 1, %s17
  %s20 = scalar_select 0, %s19, %s17
  %v21 = vstv %s15
  %22 = vst [vmem:[#allocation2] sm:$0x1] %v21
  $region1: #{tpu_custom_call.1} parent=0
    #allocation3 [shape = 'u8[8192]{0}', space=vmem, size = 0x2000, scoped, tag = 'output window, operand 0, single buffered']
    #allocation4 [shape = 's32[1]{0}', space=sflag, size = 0x4, scoped, tag = 'scoped memory for tpu_custom_call.1']
    %23 = vsyncpa [#allocation4], 0
    // Predicated region
    $region2: #{tpu_custom_call.1} parent=1 // pred_check
      _
    $region3: #{tpu_custom_call.1} parent=1 // pred_check_branch
      %25 = sbr.rel (0) target = $region5
    $region4: #{tpu_custom_call.1} parent=1 // pred_region
      _
    $region5: #{tpu_custom_call.1} parent=1 // pred_fallthru
      _
    // Predicated region
    $region6: #{tpu_custom_call.1} parent=1 // pred_check
      _
    $region7: #{tpu_custom_call.1} parent=1 // pred_check_branch
      %27 = sbr.rel (0) target = $region9
    $region8: #{tpu_custom_call.1} parent=1 // pred_region
      _
    $region9: #{tpu_custom_call.1} parent=1 // pred_fallthru
      _
    // Predicated region
    $region10: #{tpu_custom_call.1} parent=1 // pred_check
      _
    $region11: #{tpu_custom_call.1} parent=1 // pred_check_branch
      %29 = sbr.rel (0) target = $region13
    $region12: #{tpu_custom_call.1} parent=1 // pred_region
      _
    $region13: #{tpu_custom_call.1} parent=1 // pred_fallthru
      _
    // Predicated region
    $region14: #{tpu_custom_call.1} parent=1 // pred_check
      _
    $region15: #{tpu_custom_call.1} parent=1 // pred_check_branch
      %31 = sbr.rel (0) target = $region17
    $region16: #{tpu_custom_call.1} parent=1 // pred_region
      _
    $region17: #{tpu_custom_call.1} parent=1 // pred_fallthru
      _
    // Predicated region
    $region18: #{tpu_custom_call.1} parent=1 // pred_check
      _
    $region19: #{tpu_custom_call.1} parent=1 // pred_check_branch
      %33 = sbr.rel (0) target = $region21
    $region20: #{tpu_custom_call.1} parent=1 // pred_region
      _
    $region21: #{tpu_custom_call.1} parent=1 // pred_fallthru
      _
    // Predicated region
    $region22: #{tpu_custom_call.1} parent=1 // pred_check
      _
    $region23: #{tpu_custom_call.1} parent=1 // pred_check_branch
      %35 = sbr.rel (0) target = $region25
    $region24: #{tpu_custom_call.1} parent=1 // pred_region
      _
    $region25: #{tpu_custom_call.1} parent=1 // pred_fallthru
      _
    // Predicated region
    $region26: #{tpu_custom_call.1} parent=1 // pred_check
      _
    $region27: #{tpu_custom_call.1} parent=1 // pred_check_branch
      %37 = sbr.rel (0) target = $region29
    $region28: #{tpu_custom_call.1} parent=1 // pred_region
      _
    $region29: #{tpu_custom_call.1} parent=1 // pred_fallthru
      _
    // Predicated region
    $region30: #{tpu_custom_call.1} parent=1 // pred_check
      _
    $region31: #{tpu_custom_call.1} parent=1 // pred_check_branch
      %39 = sbr.rel (0) target = $region33
    $region32: #{tpu_custom_call.1} parent=1 // pred_region
      _
    $region33: #{tpu_custom_call.1} parent=1 // pred_fallthru
      _
    // Predicated region
    $region34: #{tpu_custom_call.1} parent=1 // pred_check
      _
    $region35: #{tpu_custom_call.1} parent=1 // pred_check_branch
      %41 = sbr.rel (0) target = $region37
    $region36: #{tpu_custom_call.1} parent=1 // pred_region
      _
    $region37: #{tpu_custom_call.1} parent=1 // pred_fallthru
      _
    // Predicated region
    $region38: #{tpu_custom_call.1} parent=1 // pred_check
      _
    $region39: #{tpu_custom_call.1} parent=1 // pred_check_branch
      %43 = sbr.rel (0) target = $region41
    $region40: #{tpu_custom_call.1} parent=1 // pred_region
      _
    $region41: #{tpu_custom_call.1} parent=1 // pred_fallthru
      _
    // Predicated region
    $region42: #{tpu_custom_call.1} parent=1 // pred_check
      _
    $region43: #{tpu_custom_call.1} parent=1 // pred_check_branch
      %45 = sbr.rel (0) target = $region45
    $region44: #{tpu_custom_call.1} parent=1 // pred_region
      _
    $region45: #{tpu_custom_call.1} parent=1 // pred_fallthru
      _
    // Predicated region
    $region46: #{tpu_custom_call.1} parent=1 // pred_check
      _
    $region47: #{tpu_custom_call.1} parent=1 // pred_check_branch
      %47 = sbr.rel (0) target = $region49
    $region48: #{tpu_custom_call.1} parent=1 // pred_region
      _
    $region49: #{tpu_custom_call.1} parent=1 // pred_fallthru
      _
    // Predicated region
    $region50: #{tpu_custom_call.1} parent=1 // pred_check
      _
    $region51: #{tpu_custom_call.1} parent=1 // pred_check_branch
      %49 = sbr.rel (0) target = $region53
    $region52: #{tpu_custom_call.1} parent=1 // pred_region
      _
    $region53: #{tpu_custom_call.1} parent=1 // pred_fallthru
      _
    // Predicated region
    $region54: #{tpu_custom_call.1} parent=1 // pred_check
      _
    $region55: #{tpu_custom_call.1} parent=1 // pred_check_branch
      %51 = sbr.rel (0) target = $region57
    $region56: #{tpu_custom_call.1} parent=1 // pred_region
      _
    $region57: #{tpu_custom_call.1} parent=1 // pred_fallthru
      _
    // Predicated region
    $region58: #{tpu_custom_call.1} parent=1 // pred_check
      _
    $region59: #{tpu_custom_call.1} parent=1 // pred_check_branch
      %53 = sbr.rel (0) target = $region61
    $region60: #{tpu_custom_call.1} parent=1 // pred_region
      _
    $region61: #{tpu_custom_call.1} parent=1 // pred_fallthru
      _
    // Predicated region
    $region62: #{tpu_custom_call.1} parent=1 // pred_check
      _
    $region63: #{tpu_custom_call.1} parent=1 // pred_check_branch
      %55 = sbr.rel (0) target = $region65
    $region64: #{tpu_custom_call.1} parent=1 // pred_region
      _
    $region65: #{tpu_custom_call.1} parent=1 // pred_fallthru
      _
    %v56 = vld [vmem:[%s0] sm:$0xff]
    %v57 = vld [vmem:[%s0 + $0x8] sm:$0xff]
    %v58 = vld [vmem:[%s1] sm:$0xff]
    %v59 = vld [vmem:[%s1 + $0x8] sm:$0xff]
    %v60 = vld [vmem:[%s1 + $0x10] sm:$0xff]
    %v61 = vld [vmem:[%s1 + $0x18] sm:$0xff]
    %v62 = vld [vmem:[%s1 + $0x20] sm:$0xff]
    %v63 = vld [vmem:[%s1 + $0x28] sm:$0xff]
    %v64 = vld [vmem:[%s1 + $0x30] sm:$0xff]
    %v65 = vld [vmem:[%s1 + $0x38] sm:$0xff]
    %v66 = vld [vmem:[%s1 + $0x40] sm:$0xff]
    %v67 = vld [vmem:[%s1 + $0x48] sm:$0xff]
    %v68 = vld [vmem:[%s1 + $0x50] sm:$0xff]
    %v69 = vld [vmem:[%s1 + $0x58] sm:$0xff]
    %v70 = vld [vmem:[%s1 + $0x60] sm:$0xff]
    %v71 = vld [vmem:[%s1 + $0x68] sm:$0xff]
    %v72 = vld [vmem:[%s1 + $0x70] sm:$0xff]
    %v73 = vld [vmem:[%s1 + $0x78] sm:$0xff]
    %v74 = vld [vmem:[%s1 + $0x80] sm:$0xff]
    %v75 = vld [vmem:[%s1 + $0x88] sm:$0xff]
    %v76 = vld [vmem:[%s1 + $0x90] sm:$0xff]
    %v77 = vld [vmem:[%s1 + $0x98] sm:$0xff]
    %v78 = vld [vmem:[%s1 + $0xa0] sm:$0xff]
    %v79 = vld [vmem:[%s1 + $0xa8] sm:$0xff]
    %v80 = vld [vmem:[%s1 + $0xb0] sm:$0xff]
    %v81 = vld [vmem:[%s1 + $0xb8] sm:$0xff]
    %v82 = vld [vmem:[%s1 + $0xc0] sm:$0xff]
    %v83 = vld [vmem:[%s1 + $0xc8] sm:$0xff]
    %v84 = vld [vmem:[%s1 + $0xd0] sm:$0xff]
    %v85 = vld [vmem:[%s1 + $0xd8] sm:$0xff]
    %v86 = vld [vmem:[%s1 + $0xe0] sm:$0xff]
    %v87 = vld [vmem:[%s1 + $0xe8] sm:$0xff]
    %v88 = vld [vmem:[%s1 + $0xf0] sm:$0xff]
    %v89 = vld [vmem:[%s1 + $0xf8] sm:$0xff]
    %v90 = vld [vmem:[%s2] sm:$0x1]
    %v92 = vlaneseq
    %v93 = vshrl.u32 %v92, 7
    %v94 = vsub.s32 0, %v93
    %v95 = vrot.slane %v90, %v94
    %97 = vmatprep.subr.mxu0 0.0
    %98 = vmatpush1.msra.mxu0 %v58
    %99 = vmatprep.subr.mxu0 0.0
    %100 = vmatpush1.msra.mxu0 %v59
    %101 = vmatprep.subr.mxu0 0.0
    %102 = vmatpush1.msra.mxu0 %v60
    %103 = vmatprep.subr.mxu0 0.0
    %104 = vmatpush1.msra.mxu0 %v61
    %105 = vmatprep.subr.mxu0 0.0
    %106 = vmatpush1.msra.mxu0 %v62
    %107 = vmatprep.subr.mxu0 0.0
    %108 = vmatpush1.msra.mxu0 %v63
    %109 = vmatprep.subr.mxu0 0.0
    %110 = vmatpush1.msra.mxu0 %v64
    %111 = vmatprep.subr.mxu0 0.0
    %112 = vmatpush1.msra.mxu0 %v65
    %113 = vmatprep.subr.mxu0 0.0
    %114 = vmatpush1.msra.mxu0 %v66
    %115 = vmatprep.subr.mxu0 0.0
    %116 = vmatpush1.msra.mxu0 %v67
    %117 = vmatprep.subr.mxu0 0.0
    %118 = vmatpush1.msra.mxu0 %v68
    %119 = vmatprep.subr.mxu0 0.0
    %120 = vmatpush1.msra.mxu0 %v69
    %121 = vmatprep.subr.mxu0 0.0
    %122 = vmatpush1.msra.mxu0 %v70
    %123 = vmatprep.subr.mxu0 0.0
    %124 = vmatpush1.msra.mxu0 %v71
    %125 = vmatprep.subr.mxu0 0.0
    %126 = vmatpush1.msra.mxu0 %v72
    %127 = vmatprep.subr.mxu0 0.0
    %128 = vmatpush1.msra.mxu0 %v73
    %129 = vmatprep.subr.mxu0 0.0
    %130 = vmatpush1.msra.mxu0 %v74
    %131 = vmatprep.subr.mxu0 0.0
    %132 = vmatpush1.msra.mxu0 %v75
    %133 = vmatprep.subr.mxu0 0.0
    %134 = vmatpush1.msra.mxu0 %v76
    %135 = vmatprep.subr.mxu0 0.0
    %136 = vmatpush1.msra.mxu0 %v77
    %137 = vmatprep.subr.mxu0 0.0
    %138 = vmatpush1.msra.mxu0 %v78
    %139 = vmatprep.subr.mxu0 0.0
    %140 = vmatpush1.msra.mxu0 %v79
    %141 = vmatprep.subr.mxu0 0.0
    %142 = vmatpush1.msra.mxu0 %v80
    %143 = vmatprep.subr.mxu0 0.0
    %144 = vmatpush1.msra.mxu0 %v81
    %145 = vmatprep.subr.mxu0 0.0
    %146 = vmatpush1.msra.mxu0 %v82
    %147 = vmatprep.subr.mxu0 0.0
    %148 = vmatpush1.msra.mxu0 %v83
    %149 = vmatprep.subr.mxu0 0.0
    %150 = vmatpush1.msra.mxu0 %v84
    %151 = vmatprep.subr.mxu0 0.0
    %152 = vmatpush1.msra.mxu0 %v85
    %153 = vmatprep.subr.mxu0 0.0
    %154 = vmatpush1.msra.mxu0 %v86
    %155 = vmatprep.subr.mxu0 0.0
    %156 = vmatpush1.msra.mxu0 %v87
    %157 = vmatprep.subr.mxu0 0.0
    %158 = vmatpush1.msra.mxu0 %v88
    %159 = vmatprep.subr.mxu0 0.0
    %160 = vmatpush1.msra.mxu0 %v89
    %161 = vmatprep.mubr.f32.mxu0 %v57
    %162 = vmatmul.mubr.f32.gmra.mrb[0].mxu0 %v56
    %v163 = vpop.f32.mrb[0].mxu0
    %v164 = vadd.f32 %v95, %v163
    %v165 = vpop.f32.mrb[0].mxu0
    %166 = vdwg.mxu0
    %v167 = vld [vmem:[%s3] sm:$0xff]
    %v168 = vld [vmem:[%s3 + $0x8] sm:$0xff]
    %v169 = vld [vmem:[%s3 + $0x10] sm:$0xff]
    %v170 = vld [vmem:[%s3 + $0x18] sm:$0xff]
    %v171 = vld [vmem:[%s3 + $0x20] sm:$0xff]
    %v172 = vld [vmem:[%s3 + $0x28] sm:$0xff]
    %v173 = vld [vmem:[%s3 + $0x30] sm:$0xff]
    %v174 = vld [vmem:[%s3 + $0x38] sm:$0xff]
    %v175 = vld [vmem:[%s3 + $0x40] sm:$0xff]
    %v176 = vld [vmem:[%s3 + $0x48] sm:$0xff]
    %v177 = vld [vmem:[%s3 + $0x50] sm:$0xff]
    %v178 = vld [vmem:[%s3 + $0x58] sm:$0xff]
    %v179 = vld [vmem:[%s3 + $0x60] sm:$0xff]
    %v180 = vld [vmem:[%s3 + $0x68] sm:$0xff]
    %v181 = vld [vmem:[%s3 + $0x70] sm:$0xff]
    %v182 = vld [vmem:[%s3 + $0x78] sm:$0xff]
    %v183 = vld [vmem:[%s4] sm:$0xff]
    %v184 = vld [vmem:[%s4 + $0x8] sm:$0xff]
    %v185 = vld [vmem:[%s4 + $0x10] sm:$0xff]
    %v186 = vld [vmem:[%s4 + $0x18] sm:$0xff]
    %v187 = vld [vmem:[%s4 + $0x20] sm:$0xff]
    %v188 = vld [vmem:[%s4 + $0x28] sm:$0xff]
    %v189 = vld [vmem:[%s4 + $0x30] sm:$0xff]
    %v190 = vld [vmem:[%s4 + $0x38] sm:$0xff]
    %v191 = vld [vmem:[%s4 + $0x40] sm:$0xff]
    %v192 = vld [vmem:[%s4 + $0x48] sm:$0xff]
    %v193 = vld [vmem:[%s4 + $0x50] sm:$0xff]
    %v194 = vld [vmem:[%s4 + $0x58] sm:$0xff]
    %v195 = vld [vmem:[%s4 + $0x60] sm:$0xff]
    %v196 = vld [vmem:[%s4 + $0x68] sm:$0xff]
    %v197 = vld [vmem:[%s4 + $0x70] sm:$0xff]
    %v198 = vld [vmem:[%s4 + $0x78] sm:$0xff]
    %v199 = vld [vmem:[%s4 + $0x80] sm:$0xff]
    %v200 = vld [vmem:[%s4 + $0x88] sm:$0xff]
    %v201 = vld [vmem:[%s4 + $0x90] sm:$0xff]
    %v202 = vld [vmem:[%s4 + $0x98] sm:$0xff]
    %v203 = vld [vmem:[%s4 + $0xa0] sm:$0xff]
    %v204 = vld [vmem:[%s4 + $0xa8] sm:$0xff]
    %v205 = vld [vmem:[%s4 + $0xb0] sm:$0xff]
    %v206 = vld [vmem:[%s4 + $0xb8] sm:$0xff]
    %v207 = vld [vmem:[%s4 + $0xc0] sm:$0xff]
    %v208 = vld [vmem:[%s4 + $0xc8] sm:$0xff]
    %v209 = vld [vmem:[%s4 + $0xd0] sm:$0xff]
    %v210 = vld [vmem:[%s4 + $0xd8] sm:$0xff]
    %v211 = vld [vmem:[%s4 + $0xe0] sm:$0xff]
    %v212 = vld [vmem:[%s4 + $0xe8] sm:$0xff]
    %v213 = vld [vmem:[%s4 + $0xf0] sm:$0xff]
    %v214 = vld [vmem:[%s4 + $0xf8] sm:$0xff]
    %215 = vmatprep.subr.mxu0 %v184
    %216 = vmatpush1.msra.mxu0 %v183
    %217 = vmatprep.subr.mxu0 %v186
    %218 = vmatpush1.msra.mxu0 %v185
    %219 = vmatprep.subr.mxu0 %v188
    %220 = vmatpush1.msra.mxu0 %v187
    %221 = vmatprep.subr.mxu0 %v190
    %222 = vmatpush1.msra.mxu0 %v189
    %223 = vmatprep.subr.mxu0 %v192
    %224 = vmatpush1.msra.mxu0 %v191
    %225 = vmatprep.subr.mxu0 %v194
    %226 = vmatpush1.msra.mxu0 %v193
    %227 = vmatprep.subr.mxu0 %v196
    %228 = vmatpush1.msra.mxu0 %v195
    %229 = vmatprep.subr.mxu0 %v198
    %230 = vmatpush1.msra.mxu0 %v197
    %231 = vmatprep.subr.mxu0 %v200
    %232 = vmatpush1.msra.mxu0 %v199
    %233 = vmatprep.subr.mxu0 %v202
    %234 = vmatpush1.msra.mxu0 %v201
    %235 = vmatprep.subr.mxu0 %v204
    %236 = vmatpush1.msra.mxu0 %v203
    %237 = vmatprep.subr.mxu0 %v206
    %238 = vmatpush1.msra.mxu0 %v205
    %239 = vmatprep.subr.mxu0 %v208
    %240 = vmatpush1.msra.mxu0 %v207
    %241 = vmatprep.subr.mxu0 %v210
    %242 = vmatpush1.msra.mxu0 %v209
    %243 = vmatprep.subr.mxu0 %v212
    %244 = vmatpush1.msra.mxu0 %v211
    %245 = vmatprep.subr.mxu0 %v214
    %246 = vmatpush1.msra.mxu0 %v213
    %247 = vmatprep.subr.mxu0 0.0
    %248 = vmatpush1.msra.mxu0 0.0
    %249 = vmatprep.subr.mxu0 0.0
    %250 = vmatpush1.msra.mxu0 0.0
    %251 = vmatprep.subr.mxu0 0.0
    %252 = vmatpush1.msra.mxu0 0.0
    %253 = vmatprep.subr.mxu0 0.0
    %254 = vmatpush1.msra.mxu0 0.0
    %255 = vmatprep.subr.mxu0 0.0
    %256 = vmatpush1.msra.mxu0 0.0
    %257 = vmatprep.subr.mxu0 0.0
    %258 = vmatpush1.msra.mxu0 0.0
    %259 = vmatprep.subr.mxu0 0.0
    %260 = vmatpush1.msra.mxu0 0.0
    %261 = vmatprep.subr.mxu0 0.0
    %262 = vmatpush1.msra.mxu0 0.0
    %263 = vmatprep.subr.mxu0 0.0
    %264 = vmatpush1.msra.mxu0 0.0
    %265 = vmatprep.subr.mxu0 0.0
    %266 = vmatpush1.msra.mxu0 0.0
    %267 = vmatprep.subr.mxu0 0.0
    %268 = vmatpush1.msra.mxu0 0.0
    %269 = vmatprep.subr.mxu0 0.0
    %270 = vmatpush1.msra.mxu0 0.0
    %271 = vmatprep.subr.mxu0 0.0
    %272 = vmatpush1.msra.mxu0 0.0
    %273 = vmatprep.subr.mxu0 0.0
    %274 = vmatpush1.msra.mxu0 0.0
    %275 = vmatprep.subr.mxu0 0.0
    %276 = vmatpush1.msra.mxu0 0.0
    %277 = vmatprep.subr.mxu0 0.0
    %278 = vmatpush1.msra.mxu0 0.0
    %279 = vmatprep.mubr.f32.mxu0 0.0
    %280 = vmatmul.mubr.f32.gmra.mrb[0].mxu0 %v167
    %v281 = vpop.f32.mrb[0].mxu0
    %v282 = vadd.f32 0.0, %v281
    %v283 = vpop.f32.mrb[0].mxu0
    %v284 = vadd.f32 0.0, %v283
    %285 = vmatprep.mubr.f32.mxu0 0.0
    %286 = vmatmul.mubr.f32.gmra.mrb[0].mxu0 %v168
    %v287 = vpop.f32.mrb[0].mxu0
    %v288 = vadd.f32 0.0, %v287
    %v289 = vpop.f32.mrb[0].mxu0
    %v290 = vadd.f32 0.0, %v289
    %291 = vmatprep.mubr.f32.mxu0 0.0
    %292 = vmatmul.mubr.f32.gmra.mrb[0].mxu0 %v169
    %v293 = vpop.f32.mrb[0].mxu0
    %v294 = vadd.f32 0.0, %v293
    %v295 = vpop.f32.mrb[0].mxu0
    %v296 = vadd.f32 0.0, %v295
    %297 = vmatprep.mubr.f32.mxu0 0.0
    %298 = vmatmul.mubr.f32.gmra.mrb[0].mxu0 %v170
    %v299 = vpop.f32.mrb[0].mxu0
    %v300 = vadd.f32 0.0, %v299
    %v301 = vpop.f32.mrb[0].mxu0
    %v302 = vadd.f32 0.0, %v301
    %303 = vmatprep.mubr.f32.mxu0 0.0
    %304 = vmatmul.mubr.f32.gmra.mrb[0].mxu0 %v171
    %v305 = vpop.f32.mrb[0].mxu0
    %v306 = vadd.f32 0.0, %v305
    %v307 = vpop.f32.mrb[0].mxu0
    %v308 = vadd.f32 0.0, %v307
    %309 = vmatprep.mubr.f32.mxu0 0.0
    %310 = vmatmul.mubr.f32.gmra.mrb[0].mxu0 %v172
    %v311 = vpop.f32.mrb[0].mxu0
    %v312 = vadd.f32 0.0, %v311
    %v313 = vpop.f32.mrb[0].mxu0
    %v314 = vadd.f32 0.0, %v313
    %315 = vmatprep.mubr.f32.mxu0 0.0
    %316 = vmatmul.mubr.f32.gmra.mrb[0].mxu0 %v173
    %v317 = vpop.f32.mrb[0].mxu0
    %v318 = vadd.f32 0.0, %v317
    %v319 = vpop.f32.mrb[0].mxu0
    %v320 = vadd.f32 0.0, %v319
    %321 = vmatprep.mubr.f32.mxu0 0.0
    %322 = vmatmul.mubr.f32.gmra.mrb[0].mxu0 %v174
    %v323 = vpop.f32.mrb[0].mxu0
    %v324 = vadd.f32 0.0, %v323
    %v325 = vpop.f32.mrb[0].mxu0
    %v326 = vadd.f32 0.0, %v325
    %327 = vmatprep.mubr.f32.mxu0 0.0
    %328 = vmatmul.mubr.f32.gmra.mrb[0].mxu0 %v175
    %v329 = vpop.f32.mrb[0].mxu0
    %v330 = vadd.f32 0.0, %v329
    %v331 = vpop.f32.mrb[0].mxu0
    %v332 = vadd.f32 0.0, %v331
    %333 = vmatprep.mubr.f32.mxu0 0.0
    %334 = vmatmul.mubr.f32.gmra.mrb[0].mxu0 %v176
    %v335 = vpop.f32.mrb[0].mxu0
    %v336 = vadd.f32 0.0, %v335
    %v337 = vpop.f32.mrb[0].mxu0
    %v338 = vadd.f32 0.0, %v337
    %339 = vmatprep.mubr.f32.mxu0 0.0
    %340 = vmatmul.mubr.f32.gmra.mrb[0].mxu0 %v177
    %v341 = vpop.f32.mrb[0].mxu0
    %v342 = vadd.f32 0.0, %v341
    %v343 = vpop.f32.mrb[0].mxu0
    %v344 = vadd.f32 0.0, %v343
    %345 = vmatprep.mubr.f32.mxu0 0.0
    %346 = vmatmul.mubr.f32.gmra.mrb[0].mxu0 %v178
    %v347 = vpop.f32.mrb[0].mxu0
    %v348 = vadd.f32 0.0, %v347
    %v349 = vpop.f32.mrb[0].mxu0
    %v350 = vadd.f32 0.0, %v349
    %351 = vmatprep.mubr.f32.mxu0 0.0
    %352 = vmatmul.mubr.f32.gmra.mrb[0].mxu0 %v179
    %v353 = vpop.f32.mrb[0].mxu0
    %v354 = vadd.f32 0.0, %v353
    %v355 = vpop.f32.mrb[0].mxu0
    %v356 = vadd.f32 0.0, %v355
    %357 = vmatprep.mubr.f32.mxu0 0.0
    %358 = vmatmul.mubr.f32.gmra.mrb[0].mxu0 %v180
    %v359 = vpop.f32.mrb[0].mxu0
    %v360 = vadd.f32 0.0, %v359
    %v361 = vpop.f32.mrb[0].mxu0
    %v362 = vadd.f32 0.0, %v361
    %363 = vmatprep.mubr.f32.mxu0 0.0
    %364 = vmatmul.mubr.f32.gmra.mrb[0].mxu0 %v181
    %v365 = vpop.f32.mrb[0].mxu0
    %v366 = vadd.f32 0.0, %v365
    %v367 = vpop.f32.mrb[0].mxu0
    %v368 = vadd.f32 0.0, %v367
    %369 = vmatprep.mubr.f32.mxu0 0.0
    %370 = vmatmul.mubr.f32.gmra.mrb[0].mxu0 %v182
    %v371 = vpop.f32.mrb[0].mxu0
    %v372 = vadd.f32 0.0, %v371
    %v373 = vpop.f32.mrb[0].mxu0
    %v374 = vadd.f32 0.0, %v373
    %375 = vdwg.mxu0
    %vm392 = vcmask 1046528
    %v393 = vrot.slane %v282, 1
    %v394 = vrot.slane %v288, 1
    %v395 = vsel %vm392, %v393, %v394
    %v396 = vrot.slane %v294, 1
    %v397 = vrot.slane %v300, 1
    %v398 = vsel %vm392, %v396, %v397
    %v399 = vrot.slane %v306, 1
    %v400 = vrot.slane %v312, 1
    %v401 = vsel %vm392, %v399, %v400
    %v402 = vrot.slane %v318, 1
    %v403 = vrot.slane %v324, 1
    %v404 = vsel %vm392, %v402, %v403
    %v405 = vrot.slane %v330, 1
    %v406 = vrot.slane %v336, 1
    %v407 = vsel %vm392, %v405, %v406
    %v408 = vrot.slane %v342, 1
    %v409 = vrot.slane %v348, 1
    %v410 = vsel %vm392, %v408, %v409
    %v411 = vrot.slane %v354, 1
    %v412 = vrot.slane %v360, 1
    %v413 = vsel %vm392, %v411, %v412
    %v414 = vrot.slane %v366, 1
    %v415 = vrot.slane %v372, 1
    %v416 = vsel %vm392, %v414, %v415
    %417 = vrot.lane.b32.xlu0 %v395, 96
    %v418 = vpop.permute.xlu0 %417
    %419 = vrot.lane.b32.xlu0 %v394, 96
    %v420 = vpop.permute.xlu0 %419
    %421 = vrot.lane.b32.xlu0 %v398, 96
    %v422 = vpop.permute.xlu0 %421
    %423 = vrot.lane.b32.xlu0 %v397, 96
    %v424 = vpop.permute.xlu0 %423
    %425 = vrot.lane.b32.xlu0 %v401, 96
    %v426 = vpop.permute.xlu0 %425
    %427 = vrot.lane.b32.xlu0 %v400, 96
    %v428 = vpop.permute.xlu0 %427
    %429 = vrot.lane.b32.xlu0 %v404, 96
    %v430 = vpop.permute.xlu0 %429
    %431 = vrot.lane.b32.xlu0 %v403, 96
    %v432 = vpop.permute.xlu0 %431
    %433 = vrot.lane.b32.xlu0 %v407, 96
    %v434 = vpop.permute.xlu0 %433
    %435 = vrot.lane.b32.xlu0 %v406, 96
    %v436 = vpop.permute.xlu0 %435
    %437 = vrot.lane.b32.xlu0 %v410, 96
    %v438 = vpop.permute.xlu0 %437
    %439 = vrot.lane.b32.xlu0 %v409, 96
    %v440 = vpop.permute.xlu0 %439
    %441 = vrot.lane.b32.xlu0 %v413, 96
    %v442 = vpop.permute.xlu0 %441
    %443 = vrot.lane.b32.xlu0 %v412, 96
    %v444 = vpop.permute.xlu0 %443
    %445 = vrot.lane.b32.xlu0 %v416, 96
    %v446 = vpop.permute.xlu0 %445
    %447 = vrot.lane.b32.xlu0 %v415, 96
    %v448 = vpop.permute.xlu0 %447
    %v465 = vadd.f32 %v282, %v418
    %v466 = vadd.f32 %v288, %v420
    %v467 = vadd.f32 %v294, %v422
    %v468 = vadd.f32 %v300, %v424
    %v469 = vadd.f32 %v306, %v426
    %v470 = vadd.f32 %v312, %v428
    %v471 = vadd.f32 %v318, %v430
    %v472 = vadd.f32 %v324, %v432
    %v473 = vadd.f32 %v330, %v434
    %v474 = vadd.f32 %v336, %v436
    %v475 = vadd.f32 %v342, %v438
    %v476 = vadd.f32 %v348, %v440
    %v477 = vadd.f32 %v354, %v442
    %v478 = vadd.f32 %v360, %v444
    %v479 = vadd.f32 %v366, %v446
    %v480 = vadd.f32 %v372, %v448
    %v481 = vld [vmem:[%s5] sm:$0x1]
    %v483 = vlaneseq
    %v484 = vshrl.u32 %v483, 7
    %v485 = vsub.s32 0, %v484
    %v486 = vrot.slane %v481, %v485
    %v488 = vadd.f32 %v465, %v486
    %v489 = vadd.f32 %v466, %v486
    %v490 = vadd.f32 %v467, %v486
    %v491 = vadd.f32 %v468, %v486
    %v492 = vadd.f32 %v469, %v486
    %v493 = vadd.f32 %v470, %v486
    %v494 = vadd.f32 %v471, %v486
    %v495 = vadd.f32 %v472, %v486
    %v496 = vadd.f32 %v473, %v486
    %v497 = vadd.f32 %v474, %v486
    %v498 = vadd.f32 %v475, %v486
    %v499 = vadd.f32 %v476, %v486
    %v500 = vadd.f32 %v477, %v486
    %v501 = vadd.f32 %v478, %v486
    %v502 = vadd.f32 %v479, %v486
    %v503 = vadd.f32 %v480, %v486
    %v504 = vmax.f32 %v488, 0.0
    %v505 = vmax.f32 %v489, 0.0
    %v506 = vmax.f32 %v490, 0.0
    %v507 = vmax.f32 %v491, 0.0
    %v508 = vmax.f32 %v492, 0.0
    %v509 = vmax.f32 %v493, 0.0
    %v510 = vmax.f32 %v494, 0.0
    %v511 = vmax.f32 %v495, 0.0
    %v512 = vmax.f32 %v496, 0.0
    %v513 = vmax.f32 %v497, 0.0
    %v514 = vmax.f32 %v498, 0.0
    %v515 = vmax.f32 %v499, 0.0
    %v516 = vmax.f32 %v500, 0.0
    %v517 = vmax.f32 %v501, 0.0
    %v518 = vmax.f32 %v502, 0.0
    %v519 = vmax.f32 %v503, 0.0
    %vm520 = vcmask 261120
    %v521 = vsel %vm520, %v504, -inf
    %vm522 = vcmask 260096
    %v523 = vsel %vm522, %v505, -inf
    %v524 = vmax.f32 %v521, %v523
    %v525 = vrot.slane %v524, 4
    %v526 = vmax.f32 %v524, %v525
    %v527 = vrot.slane %v526, 2
    %v528 = vmax.f32 %v526, %v527
    %v529 = vrot.slane %v528, 1
    %v530 = vmax.f32 %v528, %v529
    %v531 = vsel %vm520, %v506, -inf
    %v532 = vsel %vm522, %v507, -inf
    %v533 = vmax.f32 %v531, %v532
    %v534 = vrot.slane %v533, 4
    %v535 = vmax.f32 %v533, %v534
    %v536 = vrot.slane %v535, 2
    %v537 = vmax.f32 %v535, %v536
    %v538 = vrot.slane %v537, 1
    %v539 = vmax.f32 %v537, %v538
    %v540 = vsel %vm520, %v508, -inf
    %v541 = vsel %vm522, %v509, -inf
    %v542 = vmax.f32 %v540, %v541
    %v543 = vrot.slane %v542, 4
    %v544 = vmax.f32 %v542, %v543
    %v545 = vrot.slane %v544, 2
    %v546 = vmax.f32 %v544, %v545
    %v547 = vrot.slane %v546, 1
    %v548 = vmax.f32 %v546, %v547
    %v549 = vsel %vm520, %v510, -inf
    %v550 = vsel %vm522, %v511, -inf
    %v551 = vmax.f32 %v549, %v550
    %v552 = vrot.slane %v551, 4
    %v553 = vmax.f32 %v551, %v552
    %v554 = vrot.slane %v553, 2
    %v555 = vmax.f32 %v553, %v554
    %v556 = vrot.slane %v555, 1
    %v557 = vmax.f32 %v555, %v556
    %v558 = vsel %vm520, %v512, -inf
    %v559 = vsel %vm522, %v513, -inf
    %v560 = vmax.f32 %v558, %v559
    %v561 = vrot.slane %v560, 4
    %v562 = vmax.f32 %v560, %v561
    %v563 = vrot.slane %v562, 2
    %v564 = vmax.f32 %v562, %v563
    %v565 = vrot.slane %v564, 1
    %v566 = vmax.f32 %v564, %v565
    %v567 = vsel %vm520, %v514, -inf
    %v568 = vsel %vm522, %v515, -inf
    %v569 = vmax.f32 %v567, %v568
    %v570 = vrot.slane %v569, 4
    %v571 = vmax.f32 %v569, %v570
    %v572 = vrot.slane %v571, 2
    %v573 = vmax.f32 %v571, %v572
    %v574 = vrot.slane %v573, 1
    %v575 = vmax.f32 %v573, %v574
    %v576 = vsel %vm520, %v516, -inf
    %v577 = vsel %vm522, %v517, -inf
    %v578 = vmax.f32 %v576, %v577
    %v579 = vrot.slane %v578, 4
    %v580 = vmax.f32 %v578, %v579
    %v581 = vrot.slane %v580, 2
    %v582 = vmax.f32 %v580, %v581
    %v583 = vrot.slane %v582, 1
    %v584 = vmax.f32 %v582, %v583
    %v585 = vsel %vm520, %v518, -inf
    %v586 = vsel %vm522, %v519, -inf
    %v587 = vmax.f32 %v585, %v586
    %v588 = vrot.slane %v587, 4
    %v589 = vmax.f32 %v587, %v588
    %v590 = vrot.slane %v589, 2
    %v591 = vmax.f32 %v589, %v590
    %v592 = vrot.slane %v591, 1
    %v593 = vmax.f32 %v591, %v592
    %vm610 = vcmask 1045504
    %v611 = vrot.slane %v284, 2
    %v612 = vrot.slane %v290, 2
    %v613 = vsel %vm610, %v611, %v612
    %v614 = vrot.slane %v296, 2
    %v615 = vrot.slane %v302, 2
    %v616 = vsel %vm610, %v614, %v615
    %v617 = vrot.slane %v308, 2
    %v618 = vrot.slane %v314, 2
    %v619 = vsel %vm610, %v617, %v618
    %v620 = vrot.slane %v320, 2
    %v621 = vrot.slane %v326, 2
    %v622 = vsel %vm610, %v620, %v621
    %v623 = vrot.slane %v332, 2
    %v624 = vrot.slane %v338, 2
    %v625 = vsel %vm610, %v623, %v624
    %v626 = vrot.slane %v344, 2
    %v627 = vrot.slane %v350, 2
    %v628 = vsel %vm610, %v626, %v627
    %v629 = vrot.slane %v356, 2
    %v630 = vrot.slane %v362, 2
    %v631 = vsel %vm610, %v629, %v630
    %v632 = vrot.slane %v368, 2
    %v633 = vrot.slane %v374, 2
    %v634 = vsel %vm610, %v632, %v633
    %635 = vrot.lane.b32.xlu0 %v613, 64
    %v636 = vpop.permute.xlu0 %635
    %637 = vrot.lane.b32.xlu0 %v612, 64
    %v638 = vpop.permute.xlu0 %637
    %639 = vrot.lane.b32.xlu0 %v616, 64
    %v640 = vpop.permute.xlu0 %639
    %641 = vrot.lane.b32.xlu0 %v615, 64
    %v642 = vpop.permute.xlu0 %641
    %643 = vrot.lane.b32.xlu0 %v619, 64
    %v644 = vpop.permute.xlu0 %643
    %645 = vrot.lane.b32.xlu0 %v618, 64
    %v646 = vpop.permute.xlu0 %645
    %647 = vrot.lane.b32.xlu0 %v622, 64
    %v648 = vpop.permute.xlu0 %647
    %649 = vrot.lane.b32.xlu0 %v621, 64
    %v650 = vpop.permute.xlu0 %649
    %651 = vrot.lane.b32.xlu0 %v625, 64
    %v652 = vpop.permute.xlu0 %651
    %653 = vrot.lane.b32.xlu0 %v624, 64
    %v654 = vpop.permute.xlu0 %653
    %655 = vrot.lane.b32.xlu0 %v628, 64
    %v656 = vpop.permute.xlu0 %655
    %657 = vrot.lane.b32.xlu0 %v627, 64
    %v658 = vpop.permute.xlu0 %657
    %659 = vrot.lane.b32.xlu0 %v631, 64
    %v660 = vpop.permute.xlu0 %659
    %661 = vrot.lane.b32.xlu0 %v630, 64
    %v662 = vpop.permute.xlu0 %661
    %663 = vrot.lane.b32.xlu0 %v634, 64
    %v664 = vpop.permute.xlu0 %663
    %665 = vrot.lane.b32.xlu0 %v633, 64
    %v666 = vpop.permute.xlu0 %665
    %v683 = vadd.f32 %v465, %v636
    %v684 = vadd.f32 %v466, %v638
    %v685 = vadd.f32 %v467, %v640
    %v686 = vadd.f32 %v468, %v642
    %v687 = vadd.f32 %v469, %v644
    %v688 = vadd.f32 %v470, %v646
    %v689 = vadd.f32 %v471, %v648
    %v690 = vadd.f32 %v472, %v650
    %v691 = vadd.f32 %v473, %v652
    %v692 = vadd.f32 %v474, %v654
    %v693 = vadd.f32 %v475, %v656
    %v694 = vadd.f32 %v476, %v658
    %v695 = vadd.f32 %v477, %v660
    %v696 = vadd.f32 %v478, %v662
    %v697 = vadd.f32 %v479, %v664
    %v698 = vadd.f32 %v480, %v666
    %699 = vrot.lane.b32.xlu0 %v486, 32
    %v700 = vpop.permute.xlu0 %699
    %v702 = vadd.f32 %v683, %v700
    %v703 = vadd.f32 %v684, %v700
    %v704 = vadd.f32 %v685, %v700
    %v705 = vadd.f32 %v686, %v700
    %v706 = vadd.f32 %v687, %v700
    %v707 = vadd.f32 %v688, %v700
    %v708 = vadd.f32 %v689, %v700
    %v709 = vadd.f32 %v690, %v700
    %v710 = vadd.f32 %v691, %v700
    %v711 = vadd.f32 %v692, %v700
    %v712 = vadd.f32 %v693, %v700
    %v713 = vadd.f32 %v694, %v700
    %v714 = vadd.f32 %v695, %v700
    %v715 = vadd.f32 %v696, %v700
    %v716 = vadd.f32 %v697, %v700
    %v717 = vadd.f32 %v698, %v700
    %v718 = vmax.f32 %v702, 0.0
    %v719 = vmax.f32 %v703, 0.0
    %v720 = vmax.f32 %v704, 0.0
    %v721 = vmax.f32 %v705, 0.0
    %v722 = vmax.f32 %v706, 0.0
    %v723 = vmax.f32 %v707, 0.0
    %v724 = vmax.f32 %v708, 0.0
    %v725 = vmax.f32 %v709, 0.0
    %v726 = vmax.f32 %v710, 0.0
    %v727 = vmax.f32 %v711, 0.0
    %v728 = vmax.f32 %v712, 0.0
    %v729 = vmax.f32 %v713, 0.0
    %v730 = vmax.f32 %v714, 0.0
    %v731 = vmax.f32 %v715, 0.0
    %v732 = vmax.f32 %v716, 0.0
    %v733 = vmax.f32 %v717, 0.0
    %vm734 = vcmask 785920
    %v735 = vsel %vm734, %v718, -inf
    %vm736 = vcmask 783872
    %v737 = vsel %vm736, %v719, -inf
    %v738 = vmax.f32 %v735, %v737
    %v739 = vrot.slane %v738, 4
    %v740 = vmax.f32 %v738, %v739
    %v741 = vrot.slane %v740, 2
    %v742 = vmax.f32 %v740, %v741
    %v743 = vrot.slane %v742, 1
    %v744 = vmax.f32 %v742, %v743
    %v745 = vsel %vm734, %v720, -inf
    %v746 = vsel %vm736, %v721, -inf
    %v747 = vmax.f32 %v745, %v746
    %v748 = vrot.slane %v747, 4
    %v749 = vmax.f32 %v747, %v748
    %v750 = vrot.slane %v749, 2
    %v751 = vmax.f32 %v749, %v750
    %v752 = vrot.slane %v751, 1
    %v753 = vmax.f32 %v751, %v752
    %v754 = vsel %vm734, %v722, -inf
    %v755 = vsel %vm736, %v723, -inf
    %v756 = vmax.f32 %v754, %v755
    %v757 = vrot.slane %v756, 4
    %v758 = vmax.f32 %v756, %v757
    %v759 = vrot.slane %v758, 2
    %v760 = vmax.f32 %v758, %v759
    %v761 = vrot.slane %v760, 1
    %v762 = vmax.f32 %v760, %v761
    %v763 = vsel %vm734, %v724, -inf
    %v764 = vsel %vm736, %v725, -inf
    %v765 = vmax.f32 %v763, %v764
    %v766 = vrot.slane %v765, 4
    %v767 = vmax.f32 %v765, %v766
    %v768 = vrot.slane %v767, 2
    %v769 = vmax.f32 %v767, %v768
    %v770 = vrot.slane %v769, 1
    %v771 = vmax.f32 %v769, %v770
    %v772 = vsel %vm734, %v726, -inf
    %v773 = vsel %vm736, %v727, -inf
    %v774 = vmax.f32 %v772, %v773
    %v775 = vrot.slane %v774, 4
    %v776 = vmax.f32 %v774, %v775
    %v777 = vrot.slane %v776, 2
    %v778 = vmax.f32 %v776, %v777
    %v779 = vrot.slane %v778, 1
    %v780 = vmax.f32 %v778, %v779
    %v781 = vsel %vm734, %v728, -inf
    %v782 = vsel %vm736, %v729, -inf
    %v783 = vmax.f32 %v781, %v782
    %v784 = vrot.slane %v783, 4
    %v785 = vmax.f32 %v783, %v784
    %v786 = vrot.slane %v785, 2
    %v787 = vmax.f32 %v785, %v786
    %v788 = vrot.slane %v787, 1
    %v789 = vmax.f32 %v787, %v788
    %v790 = vsel %vm734, %v730, -inf
    %v791 = vsel %vm736, %v731, -inf
    %v792 = vmax.f32 %v790, %v791
    %v793 = vrot.slane %v792, 4
    %v794 = vmax.f32 %v792, %v793
    %v795 = vrot.slane %v794, 2
    %v796 = vmax.f32 %v794, %v795
    %v797 = vrot.slane %v796, 1
    %v798 = vmax.f32 %v796, %v797
    %v799 = vsel %vm734, %v732, -inf
    %v800 = vsel %vm736, %v733, -inf
    %v801 = vmax.f32 %v799, %v800
    %v802 = vrot.slane %v801, 4
    %v803 = vmax.f32 %v801, %v802
    %v804 = vrot.slane %v803, 2
    %v805 = vmax.f32 %v803, %v804
    %v806 = vrot.slane %v805, 1
    %v807 = vmax.f32 %v805, %v806
    %vm816 = vcmask 1041409
    %v817 = vsel %vm816, %v539, %v530
    %vm818 = vcmask 1042434
    %v819 = vsel %vm818, %v548, %v817
    %vm820 = vcmask 1043459
    %v821 = vsel %vm820, %v557, %v819
    %vm822 = vcmask 1044484
    %v823 = vsel %vm822, %v566, %v821
    %vm824 = vcmask 1045509
    %v825 = vsel %vm824, %v575, %v823
    %vm826 = vcmask 1046534
    %v827 = vsel %vm826, %v584, %v825
    %vm828 = vcmask 1047559
    %v829 = vsel %vm828, %v593, %v827
    %v839 = vsel %vm816, %v753, %v744
    %v840 = vsel %vm818, %v762, %v839
    %v841 = vsel %vm820, %v771, %v840
    %v842 = vsel %vm822, %v780, %v841
    %v843 = vsel %vm824, %v789, %v842
    %v844 = vsel %vm826, %v798, %v843
    %v845 = vsel %vm828, %v807, %v844
    %846 = vrot.lane.b32.xlu0 %v845, 96
    %v847 = vpop.permute.xlu0 %846
    %v849 = vsel %vm520, %v829, %v847
    %v850 = vld [vmem:[%s6] sm:$0xff]
    %v851 = vld [vmem:[%s6 + $0x8] sm:$0xff]
    %v852 = vld [vmem:[%s6 + $0x10] sm:$0xff]
    %v853 = vld [vmem:[%s6 + $0x18] sm:$0xff]
    %v854 = vld [vmem:[%s6 + $0x20] sm:$0xff]
    %v855 = vld [vmem:[%s6 + $0x28] sm:$0xff]
    %v856 = vld [vmem:[%s6 + $0x30] sm:$0xff]
    %v857 = vld [vmem:[%s6 + $0x38] sm:$0xff]
    %v858 = vld [vmem:[%s7] sm:$0xff]
    %v859 = vld [vmem:[%s7 + $0x8] sm:$0xff]
    %v860 = vld [vmem:[%s7 + $0x10] sm:$0xff]
    %v861 = vld [vmem:[%s7 + $0x18] sm:$0xff]
    %v862 = vld [vmem:[%s7 + $0x20] sm:$0xff]
    %v863 = vld [vmem:[%s7 + $0x28] sm:$0xff]
    %v864 = vld [vmem:[%s7 + $0x30] sm:$0xff]
    %v865 = vld [vmem:[%s7 + $0x38] sm:$0xff]
    %v866 = vld [vmem:[%s7 + $0x40] sm:$0xff]
    %v867 = vld [vmem:[%s7 + $0x48] sm:$0xff]
    %v868 = vld [vmem:[%s7 + $0x50] sm:$0xff]
    %v869 = vld [vmem:[%s7 + $0x58] sm:$0xff]
    %v870 = vld [vmem:[%s7 + $0x60] sm:$0xff]
    %v871 = vld [vmem:[%s7 + $0x68] sm:$0xff]
    %v872 = vld [vmem:[%s7 + $0x70] sm:$0xff]
    %v873 = vld [vmem:[%s7 + $0x78] sm:$0xff]
    %v874 = vld [vmem:[%s9] sm:$0x1]
    %v876 = vlaneseq
    %v877 = vshrl.u32 %v876, 7
    %v878 = vsub.s32 0, %v877
    %v879 = vrot.slane %v874, %v878
    %881 = vmatprep.subr.mxu0 0.0
    %882 = vmatpush1.msra.mxu0 %v858
    %883 = vmatprep.subr.mxu0 0.0
    %884 = vmatpush1.msra.mxu0 %v859
    %885 = vmatprep.subr.mxu0 0.0
    %886 = vmatpush1.msra.mxu0 %v860
    %887 = vmatprep.subr.mxu0 0.0
    %888 = vmatpush1.msra.mxu0 %v861
    %889 = vmatprep.subr.mxu0 0.0
    %890 = vmatpush1.msra.mxu0 %v862
    %891 = vmatprep.subr.mxu0 0.0
    %892 = vmatpush1.msra.mxu0 %v863
    %893 = vmatprep.subr.mxu0 0.0
    %894 = vmatpush1.msra.mxu0 %v864
    %895 = vmatprep.subr.mxu0 0.0
    %896 = vmatpush1.msra.mxu0 %v865
    %897 = vmatprep.subr.mxu0 0.0
    %898 = vmatpush1.msra.mxu0 %v866
    %899 = vmatprep.subr.mxu0 0.0
    %900 = vmatpush1.msra.mxu0 %v867
    %901 = vmatprep.subr.mxu0 0.0
    %902 = vmatpush1.msra.mxu0 %v868
    %903 = vmatprep.subr.mxu0 0.0
    %904 = vmatpush1.msra.mxu0 %v869
    %905 = vmatprep.subr.mxu0 0.0
    %906 = vmatpush1.msra.mxu0 %v870
    %907 = vmatprep.subr.mxu0 0.0
    %908 = vmatpush1.msra.mxu0 %v871
    %909 = vmatprep.subr.mxu0 0.0
    %910 = vmatpush1.msra.mxu0 %v872
    %911 = vmatprep.subr.mxu0 0.0
    %912 = vmatpush1.msra.mxu0 %v873
    %913 = vmatprep.subr.mxu0 0.0
    %914 = vmatpush1.msra.mxu0 0.0
    %915 = vmatprep.subr.mxu0 0.0
    %916 = vmatpush1.msra.mxu0 0.0
    %917 = vmatprep.subr.mxu0 0.0
    %918 = vmatpush1.msra.mxu0 0.0
    %919 = vmatprep.subr.mxu0 0.0
    %920 = vmatpush1.msra.mxu0 0.0
    %921 = vmatprep.subr.mxu0 0.0
    %922 = vmatpush1.msra.mxu0 0.0
    %923 = vmatprep.subr.mxu0 0.0
    %924 = vmatpush1.msra.mxu0 0.0
    %925 = vmatprep.subr.mxu0 0.0
    %926 = vmatpush1.msra.mxu0 0.0
    %927 = vmatprep.subr.mxu0 0.0
    %928 = vmatpush1.msra.mxu0 0.0
    %929 = vmatprep.subr.mxu0 0.0
    %930 = vmatpush1.msra.mxu0 0.0
    %931 = vmatprep.subr.mxu0 0.0
    %932 = vmatpush1.msra.mxu0 0.0
    %933 = vmatprep.subr.mxu0 0.0
    %934 = vmatpush1.msra.mxu0 0.0
    %935 = vmatprep.subr.mxu0 0.0
    %936 = vmatpush1.msra.mxu0 0.0
    %937 = vmatprep.subr.mxu0 0.0
    %938 = vmatpush1.msra.mxu0 0.0
    %939 = vmatprep.subr.mxu0 0.0
    %940 = vmatpush1.msra.mxu0 0.0
    %941 = vmatprep.subr.mxu0 0.0
    %942 = vmatpush1.msra.mxu0 0.0
    %943 = vmatprep.subr.mxu0 0.0
    %944 = vmatpush1.msra.mxu0 0.0
    %945 = vmatprep.mubr.f32.mxu0 0.0
    %946 = vmatmul.mubr.f32.gmra.mrb[0].mxu0 %v850
    %v947 = vpop.f32.mrb[0].mxu0
    %v948 = vadd.f32 %v879, %v947
    %v949 = vpop.f32.mrb[0].mxu0
    %950 = vmatprep.mubr.f32.mxu0 0.0
    %951 = vmatmul.mubr.f32.gmra.mrb[0].mxu0 %v851
    %v952 = vpop.f32.mrb[0].mxu0
    %v953 = vadd.f32 %v879, %v952
    %v954 = vpop.f32.mrb[0].mxu0
    %955 = vmatprep.mubr.f32.mxu0 0.0
    %956 = vmatmul.mubr.f32.gmra.mrb[0].mxu0 %v852
    %v957 = vpop.f32.mrb[0].mxu0
    %v958 = vadd.f32 %v879, %v957
    %v959 = vpop.f32.mrb[0].mxu0
    %960 = vmatprep.mubr.f32.mxu0 0.0
    %961 = vmatmul.mubr.f32.gmra.mrb[0].mxu0 %v853
    %v962 = vpop.f32.mrb[0].mxu0
    %v963 = vadd.f32 %v879, %v962
    %v964 = vpop.f32.mrb[0].mxu0
    %965 = vmatprep.mubr.f32.mxu0 0.0
    %966 = vmatmul.mubr.f32.gmra.mrb[0].mxu0 %v854
    %v967 = vpop.f32.mrb[0].mxu0
    %v968 = vadd.f32 %v879, %v967
    %v969 = vpop.f32.mrb[0].mxu0
    %970 = vmatprep.mubr.f32.mxu0 0.0
    %971 = vmatmul.mubr.f32.gmra.mrb[0].mxu0 %v855
    %v972 = vpop.f32.mrb[0].mxu0
    %v973 = vadd.f32 %v879, %v972
    %v974 = vpop.f32.mrb[0].mxu0
    %975 = vmatprep.mubr.f32.mxu0 0.0
    %976 = vmatmul.mubr.f32.gmra.mrb[0].mxu0 %v856
    %v977 = vpop.f32.mrb[0].mxu0
    %v978 = vadd.f32 %v879, %v977
    %v979 = vpop.f32.mrb[0].mxu0
    %980 = vmatprep.mubr.f32.mxu0 0.0
    %981 = vmatmul.mubr.f32.gmra.mrb[0].mxu0 %v857
    %v982 = vpop.f32.mrb[0].mxu0
    %v983 = vadd.f32 %v879, %v982
    %v984 = vpop.f32.mrb[0].mxu0
    %985 = vdwg.mxu0
    %v986 = vld [vmem:[%s8] sm:$0xff]
    %v987 = vld [vmem:[%s8 + $0x8] sm:$0xff]
    %v988 = vld [vmem:[%s8 + $0x10] sm:$0xff]
    %v989 = vld [vmem:[%s8 + $0x18] sm:$0xff]
    %v990 = vld [vmem:[%s10] sm:$0x1]
    %v992 = vlaneseq
    %v993 = vshrl.u32 %v992, 7
    %v994 = vsub.s32 0, %v993
    %v995 = vrot.slane %v990, %v994
    %v998 = vsel %vm520, 0.0, 0
    %1000 = vmatprep.subr.mxu0 0.0
    %1001 = vmatpush1.msra.mxu0 %v986
    %1002 = vmatprep.subr.mxu0 0.0
    %1003 = vmatpush1.msra.mxu0 %v987
    %1004 = vmatprep.subr.mxu0 0.0
    %1005 = vmatpush1.msra.mxu0 %v988
    %1006 = vmatprep.subr.mxu0 0.0
    %1007 = vmatpush1.msra.mxu0 %v989
    %1008 = vmatprep.subr.mxu0 0.0
    %1009 = vmatpush1.msra.mxu0 0.0
    %1010 = vmatprep.subr.mxu0 0.0
    %1011 = vmatpush1.msra.mxu0 0.0
    %1012 = vmatprep.subr.mxu0 0.0
    %1013 = vmatpush1.msra.mxu0 0.0
    %1014 = vmatprep.subr.mxu0 0.0
    %1015 = vmatpush1.msra.mxu0 0.0
    %1016 = vmatprep.subr.mxu0 0.0
    %1017 = vmatpush1.msra.mxu0 0.0
    %1018 = vmatprep.subr.mxu0 0.0
    %1019 = vmatpush1.msra.mxu0 0.0
    %1020 = vmatprep.subr.mxu0 0.0
    %1021 = vmatpush1.msra.mxu0 0.0
    %1022 = vmatprep.subr.mxu0 0.0
    %1023 = vmatpush1.msra.mxu0 0.0
    %1024 = vmatprep.subr.mxu0 0.0
    %1025 = vmatpush1.msra.mxu0 0.0
    %1026 = vmatprep.subr.mxu0 0.0
    %1027 = vmatpush1.msra.mxu0 0.0
    %1028 = vmatprep.subr.mxu0 0.0
    %1029 = vmatpush1.msra.mxu0 0.0
    %1030 = vmatprep.subr.mxu0 0.0
    %1031 = vmatpush1.msra.mxu0 0.0
    %1032 = vmatprep.subr.mxu0 0.0
    %1033 = vmatpush1.msra.mxu0 0.0
    %1034 = vmatprep.subr.mxu0 0.0
    %1035 = vmatpush1.msra.mxu0 0.0
    %1036 = vmatprep.subr.mxu0 0.0
    %1037 = vmatpush1.msra.mxu0 0.0
    %1038 = vmatprep.subr.mxu0 0.0
    %1039 = vmatpush1.msra.mxu0 0.0
    %1040 = vmatprep.subr.mxu0 0.0
    %1041 = vmatpush1.msra.mxu0 0.0
    %1042 = vmatprep.subr.mxu0 0.0
    %1043 = vmatpush1.msra.mxu0 0.0
    %1044 = vmatprep.subr.mxu0 0.0
    %1045 = vmatpush1.msra.mxu0 0.0
    %1046 = vmatprep.subr.mxu0 0.0
    %1047 = vmatpush1.msra.mxu0 0.0
    %1048 = vmatprep.subr.mxu0 0.0
    %1049 = vmatpush1.msra.mxu0 0.0
    %1050 = vmatprep.subr.mxu0 0.0
    %1051 = vmatpush1.msra.mxu0 0.0
    %1052 = vmatprep.subr.mxu0 0.0
    %1053 = vmatpush1.msra.mxu0 0.0
    %1054 = vmatprep.subr.mxu0 0.0
    %1055 = vmatpush1.msra.mxu0 0.0
    %1056 = vmatprep.subr.mxu0 0.0
    %1057 = vmatpush1.msra.mxu0 0.0
    %1058 = vmatprep.subr.mxu0 0.0
    %1059 = vmatpush1.msra.mxu0 0.0
    %1060 = vmatprep.subr.mxu0 0.0
    %1061 = vmatpush1.msra.mxu0 0.0
    %1062 = vmatprep.subr.mxu0 0.0
    %1063 = vmatpush1.msra.mxu0 0.0
    %1064 = vmatprep.mubr.f32.mxu0 0.0
    %1065 = vmatmul.mubr.f32.gmra.mrb[0].mxu0 %v998
    %v1066 = vpop.f32.mrb[0].mxu0
    %v1067 = vadd.f32 %v995, %v1066
    %v1068 = vpop.f32.mrb[0].mxu0
    %1069 = vdwg.mxu0
    %v1071 = vrot.slane %v1067, 1
    %v1072 = vrot.slane %v1067, 2
    %v1073 = vrot.slane %v1067, 3
    %v1074 = vrot.slane %v1067, 4
    %v1075 = vrot.slane %v1067, 5
    %v1076 = vrot.slane %v1067, 6
    %v1077 = vrot.slane %v1067, 7
    %v1086 = vadd.f32 %v948, %v1067
    %v1087 = vadd.f32 %v953, %v1071
    %v1088 = vadd.f32 %v958, %v1072
    %v1089 = vadd.f32 %v963, %v1073
    %v1090 = vadd.f32 %v968, %v1074
    %v1091 = vadd.f32 %v973, %v1075
    %v1092 = vadd.f32 %v978, %v1076
    %v1093 = vadd.f32 %v983, %v1077
    %v1094 = vxor.u32 %v1086, 2147483648
    %v1095 = vxor.u32 %v1087, 2147483648
    %v1096 = vxor.u32 %v1088, 2147483648
    %v1097 = vxor.u32 %v1089, 2147483648
    %v1098 = vxor.u32 %v1090, 2147483648
    %v1099 = vxor.u32 %v1091, 2147483648
    %v1100 = vxor.u32 %v1092, 2147483648
    %v1101 = vxor.u32 %v1093, 2147483648
    %v1102 = vmul.f32 %v1094, 1.442695
    %v1103 = vpow.pop %v1102
    %v1104 = vmul.f32 %v1095, 1.442695
    %v1105 = vpow.pop %v1104
    %v1106 = vmul.f32 %v1096, 1.442695
    %v1107 = vpow.pop %v1106
    %v1108 = vmul.f32 %v1097, 1.442695
    %v1109 = vpow.pop %v1108
    %v1110 = vmul.f32 %v1098, 1.442695
    %v1111 = vpow.pop %v1110
    %v1112 = vmul.f32 %v1099, 1.442695
    %v1113 = vpow.pop %v1112
    %v1114 = vmul.f32 %v1100, 1.442695
    %v1115 = vpow.pop %v1114
    %v1116 = vmul.f32 %v1101, 1.442695
    %v1117 = vpow.pop %v1116
    %v1118 = vadd.f32 %v1103, 1.0
    %v1119 = vadd.f32 %v1105, 1.0
    %v1120 = vadd.f32 %v1107, 1.0
    %v1121 = vadd.f32 %v1109, 1.0
    %v1122 = vadd.f32 %v1111, 1.0
    %v1123 = vadd.f32 %v1113, 1.0
    %v1124 = vadd.f32 %v1115, 1.0
    %v1125 = vadd.f32 %v1117, 1.0
    %v1126 = vrcp.pop %v1118
    %v1127 = vmul.f32 1.0, %v1126
    %v1128 = vrcp.pop %v1119
    %v1129 = vmul.f32 1.0, %v1128
    %v1130 = vrcp.pop %v1120
    %v1131 = vmul.f32 1.0, %v1130
    %v1132 = vrcp.pop %v1121
    %v1133 = vmul.f32 1.0, %v1132
    %v1134 = vrcp.pop %v1122
    %v1135 = vmul.f32 1.0, %v1134
    %v1136 = vrcp.pop %v1123
    %v1137 = vmul.f32 1.0, %v1136
    %v1138 = vrcp.pop %v1124
    %v1139 = vmul.f32 1.0, %v1138
    %v1140 = vrcp.pop %v1125
    %v1141 = vmul.f32 1.0, %v1140
    %1142 = vrot.lane.b32.xlu0 %v1067, 64
    %v1143 = vpop.permute.xlu0 %1142
    %1144 = vrot.lane.b32.xlu0 %v1071, 64
    %v1145 = vpop.permute.xlu0 %1144
    %1146 = vrot.lane.b32.xlu0 %v1072, 64
    %v1147 = vpop.permute.xlu0 %1146
    %1148 = vrot.lane.b32.xlu0 %v1073, 64
    %v1149 = vpop.permute.xlu0 %1148
    %1150 = vrot.lane.b32.xlu0 %v1074, 64
    %v1151 = vpop.permute.xlu0 %1150
    %1152 = vrot.lane.b32.xlu0 %v1075, 64
    %v1153 = vpop.permute.xlu0 %1152
    %1154 = vrot.lane.b32.xlu0 %v1076, 64
    %v1155 = vpop.permute.xlu0 %1154
    %1156 = vrot.lane.b32.xlu0 %v1077, 64
    %v1157 = vpop.permute.xlu0 %1156
    %v1166 = vmul.f32 %v1127, %v1143
    %v1167 = vmul.f32 %v1129, %v1145
    %v1168 = vmul.f32 %v1131, %v1147
    %v1169 = vmul.f32 %v1133, %v1149
    %v1170 = vmul.f32 %v1135, %v1151
    %v1171 = vmul.f32 %v1137, %v1153
    %v1172 = vmul.f32 %v1139, %v1155
    %v1173 = vmul.f32 %v1141, %v1157
    %1182 = vrot.lane.b32.xlu0 %v1166, 64
    %v1183 = vpop.permute.xlu0 %1182
    %1184 = vrot.lane.b32.xlu0 %v1167, 64
    %v1185 = vpop.permute.xlu0 %1184
    %1186 = vrot.lane.b32.xlu0 %v1168, 64
    %v1187 = vpop.permute.xlu0 %1186
    %1188 = vrot.lane.b32.xlu0 %v1169, 64
    %v1189 = vpop.permute.xlu0 %1188
    %1190 = vrot.lane.b32.xlu0 %v1170, 64
    %v1191 = vpop.permute.xlu0 %1190
    %1192 = vrot.lane.b32.xlu0 %v1171, 64
    %v1193 = vpop.permute.xlu0 %1192
    %1194 = vrot.lane.b32.xlu0 %v1172, 64
    %v1195 = vpop.permute.xlu0 %1194
    %1196 = vrot.lane.b32.xlu0 %v1173, 64
    %v1197 = vpop.permute.xlu0 %1196
    %v1206 = vadd.f32 %v948, %v1183
    %v1207 = vadd.f32 %v953, %v1185
    %v1208 = vadd.f32 %v958, %v1187
    %v1209 = vadd.f32 %v963, %v1189
    %v1210 = vadd.f32 %v968, %v1191
    %v1211 = vadd.f32 %v973, %v1193
    %v1212 = vadd.f32 %v978, %v1195
    %v1213 = vadd.f32 %v983, %v1197
    %v1214 = vtanh.pop %v1206
    %v1215 = vtanh.pop %v1207
    %v1216 = vtanh.pop %v1208
    %v1217 = vtanh.pop %v1209
    %v1218 = vtanh.pop %v1210
    %v1219 = vtanh.pop %v1211
    %v1220 = vtanh.pop %v1212
    %v1221 = vtanh.pop %v1213
    %v1222 = vsub.f32 1.0, %v1127
    %v1223 = vsub.f32 1.0, %v1129
    %v1224 = vsub.f32 1.0, %v1131
    %v1225 = vsub.f32 1.0, %v1133
    %v1226 = vsub.f32 1.0, %v1135
    %v1227 = vsub.f32 1.0, %v1137
    %v1228 = vsub.f32 1.0, %v1139
    %v1229 = vsub.f32 1.0, %v1141
    %1238 = vrot.lane.b32.xlu0 %v1214, 96
    %v1239 = vpop.permute.xlu0 %1238
    %1240 = vrot.lane.b32.xlu0 %v1215, 96
    %v1241 = vpop.permute.xlu0 %1240
    %1242 = vrot.lane.b32.xlu0 %v1216, 96
    %v1243 = vpop.permute.xlu0 %1242
    %1244 = vrot.lane.b32.xlu0 %v1217, 96
    %v1245 = vpop.permute.xlu0 %1244
    %1246 = vrot.lane.b32.xlu0 %v1218, 96
    %v1247 = vpop.permute.xlu0 %1246
    %1248 = vrot.lane.b32.xlu0 %v1219, 96
    %v1249 = vpop.permute.xlu0 %1248
    %1250 = vrot.lane.b32.xlu0 %v1220, 96
    %v1251 = vpop.permute.xlu0 %1250
    %1252 = vrot.lane.b32.xlu0 %v1221, 96
    %v1253 = vpop.permute.xlu0 %1252
    %v1262 = vmul.f32 %v1222, %v1239
    %v1263 = vmul.f32 %v1223, %v1241
    %v1264 = vmul.f32 %v1224, %v1243
    %v1265 = vmul.f32 %v1225, %v1245
    %v1266 = vmul.f32 %v1226, %v1247
    %v1267 = vmul.f32 %v1227, %v1249
    %v1268 = vmul.f32 %v1228, %v1251
    %v1269 = vmul.f32 %v1229, %v1253
    %v1270 = vmul.f32 %v1127, 0.0
    %v1271 = vmul.f32 %v1129, 0.0
    %v1272 = vmul.f32 %v1131, 0.0
    %v1273 = vmul.f32 %v1133, 0.0
    %v1274 = vmul.f32 %v1135, 0.0
    %v1275 = vmul.f32 %v1137, 0.0
    %v1276 = vmul.f32 %v1139, 0.0
    %v1277 = vmul.f32 %v1141, 0.0
    %v1278 = vadd.f32 %v1262, %v1270
    %v1279 = vadd.f32 %v1263, %v1271
    %v1280 = vadd.f32 %v1264, %v1272
    %v1281 = vadd.f32 %v1265, %v1273
    %v1282 = vadd.f32 %v1266, %v1274
    %v1283 = vadd.f32 %v1267, %v1275
    %v1284 = vadd.f32 %v1268, %v1276
    %v1285 = vadd.f32 %v1269, %v1277
    %v1294 = vrot.slane %v1279, 7
    %v1295 = vsel %vm816, %v1294, %v1278
    %v1296 = vrot.slane %v1280, 6
    %v1297 = vsel %vm818, %v1296, %v1295
    %v1298 = vrot.slane %v1281, 5
    %v1299 = vsel %vm820, %v1298, %v1297
    %v1300 = vrot.slane %v1282, 4
    %v1301 = vsel %vm822, %v1300, %v1299
    %v1302 = vrot.slane %v1283, 3
    %v1303 = vsel %vm824, %v1302, %v1301
    %v1304 = vrot.slane %v1284, 2
    %v1305 = vsel %vm826, %v1304, %v1303
    %v1306 = vrot.slane %v1285, 1
    %v1307 = vsel %vm828, %v1306, %v1305
    %1308 = vrot.lane.b32.xlu0 %v1307, 96
    %v1309 = vpop.permute.xlu0 %1308
    %v1310 = vsel %vm520, %v1309, 0
    %1312 = vmatprep.subr.mxu0 0.0
    %1313 = vmatpush1.msra.mxu0 %v986
    %1314 = vmatprep.subr.mxu0 0.0
    %1315 = vmatpush1.msra.mxu0 %v987
    %1316 = vmatprep.subr.mxu0 0.0
    %1317 = vmatpush1.msra.mxu0 %v988
    %1318 = vmatprep.subr.mxu0 0.0
    %1319 = vmatpush1.msra.mxu0 %v989
    %1320 = vmatprep.subr.mxu0 0.0
    %1321 = vmatpush1.msra.mxu0 0.0
    %1322 = vmatprep.subr.mxu0 0.0
    %1323 = vmatpush1.msra.mxu0 0.0
    %1324 = vmatprep.subr.mxu0 0.0
    %1325 = vmatpush1.msra.mxu0 0.0
    %1326 = vmatprep.subr.mxu0 0.0
    %1327 = vmatpush1.msra.mxu0 0.0
    %1328 = vmatprep.subr.mxu0 0.0
    %1329 = vmatpush1.msra.mxu0 0.0
    %1330 = vmatprep.subr.mxu0 0.0
    %1331 = vmatpush1.msra.mxu0 0.0
    %1332 = vmatprep.subr.mxu0 0.0
    %1333 = vmatpush1.msra.mxu0 0.0
    %1334 = vmatprep.subr.mxu0 0.0
    %1335 = vmatpush1.msra.mxu0 0.0
    %1336 = vmatprep.subr.mxu0 0.0
    %1337 = vmatpush1.msra.mxu0 0.0
    %1338 = vmatprep.subr.mxu0 0.0
    %1339 = vmatpush1.msra.mxu0 0.0
    %1340 = vmatprep.subr.mxu0 0.0
    %1341 = vmatpush1.msra.mxu0 0.0
    %1342 = vmatprep.subr.mxu0 0.0
    %1343 = vmatpush1.msra.mxu0 0.0
    %1344 = vmatprep.subr.mxu0 0.0
    %1345 = vmatpush1.msra.mxu0 0.0
    %1346 = vmatprep.subr.mxu0 0.0
    %1347 = vmatpush1.msra.mxu0 0.0
    %1348 = vmatprep.subr.mxu0 0.0
    %1349 = vmatpush1.msra.mxu0 0.0
    %1350 = vmatprep.subr.mxu0 0.0
    %1351 = vmatpush1.msra.mxu0 0.0
    %1352 = vmatprep.subr.mxu0 0.0
    %1353 = vmatpush1.msra.mxu0 0.0
    %1354 = vmatprep.subr.mxu0 0.0
    %1355 = vmatpush1.msra.mxu0 0.0
    %1356 = vmatprep.subr.mxu0 0.0
    %1357 = vmatpush1.msra.mxu0 0.0
    %1358 = vmatprep.subr.mxu0 0.0
    %1359 = vmatpush1.msra.mxu0 0.0
    %1360 = vmatprep.subr.mxu0 0.0
    %1361 = vmatpush1.msra.mxu0 0.0
    %1362 = vmatprep.subr.mxu0 0.0
    %1363 = vmatpush1.msra.mxu0 0.0
    %1364 = vmatprep.subr.mxu0 0.0
    %1365 = vmatpush1.msra.mxu0 0.0
    %1366 = vmatprep.subr.mxu0 0.0
    %1367 = vmatpush1.msra.mxu0 0.0
    %1368 = vmatprep.subr.mxu0 0.0
    %1369 = vmatpush1.msra.mxu0 0.0
    %1370 = vmatprep.subr.mxu0 0.0
    %1371 = vmatpush1.msra.mxu0 0.0
    %1372 = vmatprep.subr.mxu0 0.0
    %1373 = vmatpush1.msra.mxu0 0.0
    %1374 = vmatprep.subr.mxu0 0.0
    %1375 = vmatpush1.msra.mxu0 0.0
    %1376 = vmatprep.mubr.f32.mxu0 0.0
    %1377 = vmatmul.mubr.f32.gmra.mrb[0].mxu0 %v1310
    %v1378 = vpop.f32.mrb[0].mxu0
    %v1379 = vadd.f32 %v995, %v1378
    %v1380 = vpop.f32.mrb[0].mxu0
    %1381 = vdwg.mxu0
    %v1383 = vrot.slane %v1379, 7
    %v1384 = vrot.slane %v1379, 1
    %v1385 = vrot.slane %v1379, 2
    %v1386 = vrot.slane %v1379, 3
    %v1387 = vrot.slane %v1379, 4
    %v1388 = vrot.slane %v1379, 5
    %v1389 = vrot.slane %v1379, 6
    %v1398 = vadd.f32 %v948, %v1383
    %v1399 = vadd.f32 %v953, %v1379
    %v1400 = vadd.f32 %v958, %v1384
    %v1401 = vadd.f32 %v963, %v1385
    %v1402 = vadd.f32 %v968, %v1386
    %v1403 = vadd.f32 %v973, %v1387
    %v1404 = vadd.f32 %v978, %v1388
    %v1405 = vadd.f32 %v983, %v1389
    %v1406 = vxor.u32 %v1398, 2147483648
    %v1407 = vxor.u32 %v1399, 2147483648
    %v1408 = vxor.u32 %v1400, 2147483648
    %v1409 = vxor.u32 %v1401, 2147483648
    %v1410 = vxor.u32 %v1402, 2147483648
    %v1411 = vxor.u32 %v1403, 2147483648
    %v1412 = vxor.u32 %v1404, 2147483648
    %v1413 = vxor.u32 %v1405, 2147483648
    %v1414 = vmul.f32 %v1406, 1.442695
    %v1415 = vpow.pop %v1414
    %v1416 = vmul.f32 %v1407, 1.442695
    %v1417 = vpow.pop %v1416
    %v1418 = vmul.f32 %v1408, 1.442695
    %v1419 = vpow.pop %v1418
    %v1420 = vmul.f32 %v1409, 1.442695
    %v1421 = vpow.pop %v1420
    %v1422 = vmul.f32 %v1410, 1.442695
    %v1423 = vpow.pop %v1422
    %v1424 = vmul.f32 %v1411, 1.442695
    %v1425 = vpow.pop %v1424
    %v1426 = vmul.f32 %v1412, 1.442695
    %v1427 = vpow.pop %v1426
    %v1428 = vmul.f32 %v1413, 1.442695
    %v1429 = vpow.pop %v1428
    %v1430 = vadd.f32 %v1415, 1.0
    %v1431 = vadd.f32 %v1417, 1.0
    %v1432 = vadd.f32 %v1419, 1.0
    %v1433 = vadd.f32 %v1421, 1.0
    %v1434 = vadd.f32 %v1423, 1.0
    %v1435 = vadd.f32 %v1425, 1.0
    %v1436 = vadd.f32 %v1427, 1.0
    %v1437 = vadd.f32 %v1429, 1.0
    %v1438 = vrcp.pop %v1430
    %v1439 = vmul.f32 1.0, %v1438
    %v1440 = vrcp.pop %v1431
    %v1441 = vmul.f32 1.0, %v1440
    %v1442 = vrcp.pop %v1432
    %v1443 = vmul.f32 1.0, %v1442
    %v1444 = vrcp.pop %v1433
    %v1445 = vmul.f32 1.0, %v1444
    %v1446 = vrcp.pop %v1434
    %v1447 = vmul.f32 1.0, %v1446
    %v1448 = vrcp.pop %v1435
    %v1449 = vmul.f32 1.0, %v1448
    %v1450 = vrcp.pop %v1436
    %v1451 = vmul.f32 1.0, %v1450
    %v1452 = vrcp.pop %v1437
    %v1453 = vmul.f32 1.0, %v1452
    %1454 = vrot.lane.b32.xlu0 %v1383, 64
    %v1455 = vpop.permute.xlu0 %1454
    %1456 = vrot.lane.b32.xlu0 %v1379, 64
    %v1457 = vpop.permute.xlu0 %1456
    %1458 = vrot.lane.b32.xlu0 %v1384, 64
    %v1459 = vpop.permute.xlu0 %1458
    %1460 = vrot.lane.b32.xlu0 %v1385, 64
    %v1461 = vpop.permute.xlu0 %1460
    %1462 = vrot.lane.b32.xlu0 %v1386, 64
    %v1463 = vpop.permute.xlu0 %1462
    %1464 = vrot.lane.b32.xlu0 %v1387, 64
    %v1465 = vpop.permute.xlu0 %1464
    %1466 = vrot.lane.b32.xlu0 %v1388, 64
    %v1467 = vpop.permute.xlu0 %1466
    %1468 = vrot.lane.b32.xlu0 %v1389, 64
    %v1469 = vpop.permute.xlu0 %1468
    %v1478 = vmul.f32 %v1439, %v1455
    %v1479 = vmul.f32 %v1441, %v1457
    %v1480 = vmul.f32 %v1443, %v1459
    %v1481 = vmul.f32 %v1445, %v1461
    %v1482 = vmul.f32 %v1447, %v1463
    %v1483 = vmul.f32 %v1449, %v1465
    %v1484 = vmul.f32 %v1451, %v1467
    %v1485 = vmul.f32 %v1453, %v1469
    %1494 = vrot.lane.b32.xlu0 %v1478, 64
    %v1495 = vpop.permute.xlu0 %1494
    %1496 = vrot.lane.b32.xlu0 %v1479, 64
    %v1497 = vpop.permute.xlu0 %1496
    %1498 = vrot.lane.b32.xlu0 %v1480, 64
    %v1499 = vpop.permute.xlu0 %1498
    %1500 = vrot.lane.b32.xlu0 %v1481, 64
    %v1501 = vpop.permute.xlu0 %1500
    %1502 = vrot.lane.b32.xlu0 %v1482, 64
    %v1503 = vpop.permute.xlu0 %1502
    %1504 = vrot.lane.b32.xlu0 %v1483, 64
    %v1505 = vpop.permute.xlu0 %1504
    %1506 = vrot.lane.b32.xlu0 %v1484, 64
    %v1507 = vpop.permute.xlu0 %1506
    %1508 = vrot.lane.b32.xlu0 %v1485, 64
    %v1509 = vpop.permute.xlu0 %1508
    %v1518 = vadd.f32 %v948, %v1495
    %v1519 = vadd.f32 %v953, %v1497
    %v1520 = vadd.f32 %v958, %v1499
    %v1521 = vadd.f32 %v963, %v1501
    %v1522 = vadd.f32 %v968, %v1503
    %v1523 = vadd.f32 %v973, %v1505
    %v1524 = vadd.f32 %v978, %v1507
    %v1525 = vadd.f32 %v983, %v1509
    %v1526 = vtanh.pop %v1518
    %v1527 = vtanh.pop %v1519
    %v1528 = vtanh.pop %v1520
    %v1529 = vtanh.pop %v1521
    %v1530 = vtanh.pop %v1522
    %v1531 = vtanh.pop %v1523
    %v1532 = vtanh.pop %v1524
    %v1533 = vtanh.pop %v1525
    %v1534 = vsub.f32 1.0, %v1439
    %v1535 = vsub.f32 1.0, %v1441
    %v1536 = vsub.f32 1.0, %v1443
    %v1537 = vsub.f32 1.0, %v1445
    %v1538 = vsub.f32 1.0, %v1447
    %v1539 = vsub.f32 1.0, %v1449
    %v1540 = vsub.f32 1.0, %v1451
    %v1541 = vsub.f32 1.0, %v1453
    %1550 = vrot.lane.b32.xlu0 %v1526, 96
    %v1551 = vpop.permute.xlu0 %1550
    %1552 = vrot.lane.b32.xlu0 %v1527, 96
    %v1553 = vpop.permute.xlu0 %1552
    %1554 = vrot.lane.b32.xlu0 %v1528, 96
    %v1555 = vpop.permute.xlu0 %1554
    %1556 = vrot.lane.b32.xlu0 %v1529, 96
    %v1557 = vpop.permute.xlu0 %1556
    %1558 = vrot.lane.b32.xlu0 %v1530, 96
    %v1559 = vpop.permute.xlu0 %1558
    %1560 = vrot.lane.b32.xlu0 %v1531, 96
    %v1561 = vpop.permute.xlu0 %1560
    %1562 = vrot.lane.b32.xlu0 %v1532, 96
    %v1563 = vpop.permute.xlu0 %1562
    %1564 = vrot.lane.b32.xlu0 %v1533, 96
    %v1565 = vpop.permute.xlu0 %1564
    %v1574 = vmul.f32 %v1534, %v1551
    %v1575 = vmul.f32 %v1535, %v1553
    %v1576 = vmul.f32 %v1536, %v1555
    %v1577 = vmul.f32 %v1537, %v1557
    %v1578 = vmul.f32 %v1538, %v1559
    %v1579 = vmul.f32 %v1539, %v1561
    %v1580 = vmul.f32 %v1540, %v1563
    %v1581 = vmul.f32 %v1541, %v1565
    %v1582 = vrot.slane %v1278, 7
    %v1583 = vrot.slane %v1280, 7
    %v1584 = vrot.slane %v1281, 7
    %v1585 = vrot.slane %v1282, 7
    %v1586 = vrot.slane %v1283, 7
    %v1587 = vrot.slane %v1284, 7
    %v1588 = vrot.slane %v1285, 7
    %v1597 = vmul.f32 %v1439, %v1582
    %v1598 = vmul.f32 %v1441, %v1294
    %v1599 = vmul.f32 %v1443, %v1583
    %v1600 = vmul.f32 %v1445, %v1584
    %v1601 = vmul.f32 %v1447, %v1585
    %v1602 = vmul.f32 %v1449, %v1586
    %v1603 = vmul.f32 %v1451, %v1587
    %v1604 = vmul.f32 %v1453, %v1588
    %v1605 = vadd.f32 %v1574, %v1597
    %v1606 = vadd.f32 %v1575, %v1598
    %v1607 = vadd.f32 %v1576, %v1599
    %v1608 = vadd.f32 %v1577, %v1600
    %v1609 = vadd.f32 %v1578, %v1601
    %v1610 = vadd.f32 %v1579, %v1602
    %v1611 = vadd.f32 %v1580, %v1603
    %v1612 = vadd.f32 %v1581, %v1604
    %v1621 = vrot.slane %v1605, 1
    %v1622 = vsel %vm816, %v1606, %v1621
    %v1623 = vrot.slane %v1607, 7
    %v1624 = vsel %vm818, %v1623, %v1622
    %v1625 = vrot.slane %v1608, 6
    %v1626 = vsel %vm820, %v1625, %v1624
    %v1627 = vrot.slane %v1609, 5
    %v1628 = vsel %vm822, %v1627, %v1626
    %v1629 = vrot.slane %v1610, 4
    %v1630 = vsel %vm824, %v1629, %v1628
    %v1631 = vrot.slane %v1611, 3
    %v1632 = vsel %vm826, %v1631, %v1630
    %v1633 = vrot.slane %v1612, 2
    %v1634 = vsel %vm828, %v1633, %v1632
    %1635 = vrot.lane.b32.xlu0 %v1634, 96
    %v1636 = vpop.permute.xlu0 %1635
    %v1637 = vsel %vm520, %v1636, 0
    %1639 = vmatprep.subr.mxu0 0.0
    %1640 = vmatpush1.msra.mxu0 %v986
    %1641 = vmatprep.subr.mxu0 0.0
    %1642 = vmatpush1.msra.mxu0 %v987
    %1643 = vmatprep.subr.mxu0 0.0
    %1644 = vmatpush1.msra.mxu0 %v988
    %1645 = vmatprep.subr.mxu0 0.0
    %1646 = vmatpush1.msra.mxu0 %v989
    %1647 = vmatprep.subr.mxu0 0.0
    %1648 = vmatpush1.msra.mxu0 0.0
    %1649 = vmatprep.subr.mxu0 0.0
    %1650 = vmatpush1.msra.mxu0 0.0
    %1651 = vmatprep.subr.mxu0 0.0
    %1652 = vmatpush1.msra.mxu0 0.0
    %1653 = vmatprep.subr.mxu0 0.0
    %1654 = vmatpush1.msra.mxu0 0.0
    %1655 = vmatprep.subr.mxu0 0.0
    %1656 = vmatpush1.msra.mxu0 0.0
    %1657 = vmatprep.subr.mxu0 0.0
    %1658 = vmatpush1.msra.mxu0 0.0
    %1659 = vmatprep.subr.mxu0 0.0
    %1660 = vmatpush1.msra.mxu0 0.0
    %1661 = vmatprep.subr.mxu0 0.0
    %1662 = vmatpush1.msra.mxu0 0.0
    %1663 = vmatprep.subr.mxu0 0.0
    %1664 = vmatpush1.msra.mxu0 0.0
    %1665 = vmatprep.subr.mxu0 0.0
    %1666 = vmatpush1.msra.mxu0 0.0
    %1667 = vmatprep.subr.mxu0 0.0
    %1668 = vmatpush1.msra.mxu0 0.0
    %1669 = vmatprep.subr.mxu0 0.0
    %1670 = vmatpush1.msra.mxu0 0.0
    %1671 = vmatprep.subr.mxu0 0.0
    %1672 = vmatpush1.msra.mxu0 0.0
    %1673 = vmatprep.subr.mxu0 0.0
    %1674 = vmatpush1.msra.mxu0 0.0
    %1675 = vmatprep.subr.mxu0 0.0
    %1676 = vmatpush1.msra.mxu0 0.0
    %1677 = vmatprep.subr.mxu0 0.0
    %1678 = vmatpush1.msra.mxu0 0.0
    %1679 = vmatprep.subr.mxu0 0.0
    %1680 = vmatpush1.msra.mxu0 0.0
    %1681 = vmatprep.subr.mxu0 0.0
    %1682 = vmatpush1.msra.mxu0 0.0
    %1683 = vmatprep.subr.mxu0 0.0
    %1684 = vmatpush1.msra.mxu0 0.0
    %1685 = vmatprep.subr.mxu0 0.0
    %1686 = vmatpush1.msra.mxu0 0.0
    %1687 = vmatprep.subr.mxu0 0.0
    %1688 = vmatpush1.msra.mxu0 0.0
    %1689 = vmatprep.subr.mxu0 0.0
    %1690 = vmatpush1.msra.mxu0 0.0
    %1691 = vmatprep.subr.mxu0 0.0
    %1692 = vmatpush1.msra.mxu0 0.0
    %1693 = vmatprep.subr.mxu0 0.0
    %1694 = vmatpush1.msra.mxu0 0.0
    %1695 = vmatprep.subr.mxu0 0.0
    %1696 = vmatpush1.msra.mxu0 0.0
    %1697 = vmatprep.subr.mxu0 0.0
    %1698 = vmatpush1.msra.mxu0 0.0
    %1699 = vmatprep.subr.mxu0 0.0
    %1700 = vmatpush1.msra.mxu0 0.0
    %1701 = vmatprep.subr.mxu0 0.0
    %1702 = vmatpush1.msra.mxu0 0.0
    %1703 = vmatprep.mubr.f32.mxu0 0.0
    %1704 = vmatmul.mubr.f32.gmra.mrb[0].mxu0 %v1637
    %v1705 = vpop.f32.mrb[0].mxu0
    %v1706 = vadd.f32 %v995, %v1705
    %v1707 = vpop.f32.mrb[0].mxu0
    %1708 = vdwg.mxu0
    %v1710 = vrot.slane %v1706, 6
    %v1711 = vrot.slane %v1706, 7
    %v1712 = vrot.slane %v1706, 1
    %v1713 = vrot.slane %v1706, 2
    %v1714 = vrot.slane %v1706, 3
    %v1715 = vrot.slane %v1706, 4
    %v1716 = vrot.slane %v1706, 5
    %v1725 = vadd.f32 %v948, %v1710
    %v1726 = vadd.f32 %v953, %v1711
    %v1727 = vadd.f32 %v958, %v1706
    %v1728 = vadd.f32 %v963, %v1712
    %v1729 = vadd.f32 %v968, %v1713
    %v1730 = vadd.f32 %v973, %v1714
    %v1731 = vadd.f32 %v978, %v1715
    %v1732 = vadd.f32 %v983, %v1716
    %v1733 = vxor.u32 %v1725, 2147483648
    %v1734 = vxor.u32 %v1726, 2147483648
    %v1735 = vxor.u32 %v1727, 2147483648
    %v1736 = vxor.u32 %v1728, 2147483648
    %v1737 = vxor.u32 %v1729, 2147483648
    %v1738 = vxor.u32 %v1730, 2147483648
    %v1739 = vxor.u32 %v1731, 2147483648
    %v1740 = vxor.u32 %v1732, 2147483648
    %v1741 = vmul.f32 %v1733, 1.442695
    %v1742 = vpow.pop %v1741
    %v1743 = vmul.f32 %v1734, 1.442695
    %v1744 = vpow.pop %v1743
    %v1745 = vmul.f32 %v1735, 1.442695
    %v1746 = vpow.pop %v1745
    %v1747 = vmul.f32 %v1736, 1.442695
    %v1748 = vpow.pop %v1747
    %v1749 = vmul.f32 %v1737, 1.442695
    %v1750 = vpow.pop %v1749
    %v1751 = vmul.f32 %v1738, 1.442695
    %v1752 = vpow.pop %v1751
    %v1753 = vmul.f32 %v1739, 1.442695
    %v1754 = vpow.pop %v1753
    %v1755 = vmul.f32 %v1740, 1.442695
    %v1756 = vpow.pop %v1755
    %v1757 = vadd.f32 %v1742, 1.0
    %v1758 = vadd.f32 %v1744, 1.0
    %v1759 = vadd.f32 %v1746, 1.0
    %v1760 = vadd.f32 %v1748, 1.0
    %v1761 = vadd.f32 %v1750, 1.0
    %v1762 = vadd.f32 %v1752, 1.0
    %v1763 = vadd.f32 %v1754, 1.0
    %v1764 = vadd.f32 %v1756, 1.0
    %v1765 = vrcp.pop %v1757
    %v1766 = vmul.f32 1.0, %v1765
    %v1767 = vrcp.pop %v1758
    %v1768 = vmul.f32 1.0, %v1767
    %v1769 = vrcp.pop %v1759
    %v1770 = vmul.f32 1.0, %v1769
    %v1771 = vrcp.pop %v1760
    %v1772 = vmul.f32 1.0, %v1771
    %v1773 = vrcp.pop %v1761
    %v1774 = vmul.f32 1.0, %v1773
    %v1775 = vrcp.pop %v1762
    %v1776 = vmul.f32 1.0, %v1775
    %v1777 = vrcp.pop %v1763
    %v1778 = vmul.f32 1.0, %v1777
    %v1779 = vrcp.pop %v1764
    %v1780 = vmul.f32 1.0, %v1779
    %1781 = vrot.lane.b32.xlu0 %v1710, 64
    %v1782 = vpop.permute.xlu0 %1781
    %1783 = vrot.lane.b32.xlu0 %v1711, 64
    %v1784 = vpop.permute.xlu0 %1783
    %1785 = vrot.lane.b32.xlu0 %v1706, 64
    %v1786 = vpop.permute.xlu0 %1785
    %1787 = vrot.lane.b32.xlu0 %v1712, 64
    %v1788 = vpop.permute.xlu0 %1787
    %1789 = vrot.lane.b32.xlu0 %v1713, 64
    %v1790 = vpop.permute.xlu0 %1789
    %1791 = vrot.lane.b32.xlu0 %v1714, 64
    %v1792 = vpop.permute.xlu0 %1791
    %1793 = vrot.lane.b32.xlu0 %v1715, 64
    %v1794 = vpop.permute.xlu0 %1793
    %1795 = vrot.lane.b32.xlu0 %v1716, 64
    %v1796 = vpop.permute.xlu0 %1795
    %v1805 = vmul.f32 %v1766, %v1782
    %v1806 = vmul.f32 %v1768, %v1784
    %v1807 = vmul.f32 %v1770, %v1786
    %v1808 = vmul.f32 %v1772, %v1788
    %v1809 = vmul.f32 %v1774, %v1790
    %v1810 = vmul.f32 %v1776, %v1792
    %v1811 = vmul.f32 %v1778, %v1794
    %v1812 = vmul.f32 %v1780, %v1796
    %1821 = vrot.lane.b32.xlu0 %v1805, 64
    %v1822 = vpop.permute.xlu0 %1821
    %1823 = vrot.lane.b32.xlu0 %v1806, 64
    %v1824 = vpop.permute.xlu0 %1823
    %1825 = vrot.lane.b32.xlu0 %v1807, 64
    %v1826 = vpop.permute.xlu0 %1825
    %1827 = vrot.lane.b32.xlu0 %v1808, 64
    %v1828 = vpop.permute.xlu0 %1827
    %1829 = vrot.lane.b32.xlu0 %v1809, 64
    %v1830 = vpop.permute.xlu0 %1829
    %1831 = vrot.lane.b32.xlu0 %v1810, 64
    %v1832 = vpop.permute.xlu0 %1831
    %1833 = vrot.lane.b32.xlu0 %v1811, 64
    %v1834 = vpop.permute.xlu0 %1833
    %1835 = vrot.lane.b32.xlu0 %v1812, 64
    %v1836 = vpop.permute.xlu0 %1835
    %v1845 = vadd.f32 %v948, %v1822
    %v1846 = vadd.f32 %v953, %v1824
    %v1847 = vadd.f32 %v958, %v1826
    %v1848 = vadd.f32 %v963, %v1828
    %v1849 = vadd.f32 %v968, %v1830
    %v1850 = vadd.f32 %v973, %v1832
    %v1851 = vadd.f32 %v978, %v1834
    %v1852 = vadd.f32 %v983, %v1836
    %v1853 = vtanh.pop %v1845
    %v1854 = vtanh.pop %v1846
    %v1855 = vtanh.pop %v1847
    %v1856 = vtanh.pop %v1848
    %v1857 = vtanh.pop %v1849
    %v1858 = vtanh.pop %v1850
    %v1859 = vtanh.pop %v1851
    %v1860 = vtanh.pop %v1852
    %v1861 = vsub.f32 1.0, %v1766
    %v1862 = vsub.f32 1.0, %v1768
    %v1863 = vsub.f32 1.0, %v1770
    %v1864 = vsub.f32 1.0, %v1772
    %v1865 = vsub.f32 1.0, %v1774
    %v1866 = vsub.f32 1.0, %v1776
    %v1867 = vsub.f32 1.0, %v1778
    %v1868 = vsub.f32 1.0, %v1780
    %1877 = vrot.lane.b32.xlu0 %v1853, 96
    %v1878 = vpop.permute.xlu0 %1877
    %1879 = vrot.lane.b32.xlu0 %v1854, 96
    %v1880 = vpop.permute.xlu0 %1879
    %1881 = vrot.lane.b32.xlu0 %v1855, 96
    %v1882 = vpop.permute.xlu0 %1881
    %1883 = vrot.lane.b32.xlu0 %v1856, 96
    %v1884 = vpop.permute.xlu0 %1883
    %1885 = vrot.lane.b32.xlu0 %v1857, 96
    %v1886 = vpop.permute.xlu0 %1885
    %1887 = vrot.lane.b32.xlu0 %v1858, 96
    %v1888 = vpop.permute.xlu0 %1887
    %1889 = vrot.lane.b32.xlu0 %v1859, 96
    %v1890 = vpop.permute.xlu0 %1889
    %1891 = vrot.lane.b32.xlu0 %v1860, 96
    %v1892 = vpop.permute.xlu0 %1891
    %v1901 = vmul.f32 %v1861, %v1878
    %v1902 = vmul.f32 %v1862, %v1880
    %v1903 = vmul.f32 %v1863, %v1882
    %v1904 = vmul.f32 %v1864, %v1884
    %v1905 = vmul.f32 %v1865, %v1886
    %v1906 = vmul.f32 %v1866, %v1888
    %v1907 = vmul.f32 %v1867, %v1890
    %v1908 = vmul.f32 %v1868, %v1892
    %v1909 = vrot.slane %v1605, 7
    %v1910 = vrot.slane %v1606, 7
    %v1911 = vrot.slane %v1608, 7
    %v1912 = vrot.slane %v1609, 7
    %v1913 = vrot.slane %v1610, 7
    %v1914 = vrot.slane %v1611, 7
    %v1915 = vrot.slane %v1612, 7
    %v1924 = vmul.f32 %v1766, %v1909
    %v1925 = vmul.f32 %v1768, %v1910
    %v1926 = vmul.f32 %v1770, %v1623
    %v1927 = vmul.f32 %v1772, %v1911
    %v1928 = vmul.f32 %v1774, %v1912
    %v1929 = vmul.f32 %v1776, %v1913
    %v1930 = vmul.f32 %v1778, %v1914
    %v1931 = vmul.f32 %v1780, %v1915
    %v1932 = vadd.f32 %v1901, %v1924
    %v1933 = vadd.f32 %v1902, %v1925
    %v1934 = vadd.f32 %v1903, %v1926
    %v1935 = vadd.f32 %v1904, %v1927
    %v1936 = vadd.f32 %v1905, %v1928
    %v1937 = vadd.f32 %v1906, %v1929
    %v1938 = vadd.f32 %v1907, %v1930
    %v1939 = vadd.f32 %v1908, %v1931
    %v1948 = vrot.slane %v1932, 2
    %v1949 = vrot.slane %v1933, 1
    %v1950 = vsel %vm816, %v1949, %v1948
    %v1951 = vsel %vm818, %v1934, %v1950
    %v1952 = vrot.slane %v1935, 7
    %v1953 = vsel %vm820, %v1952, %v1951
    %v1954 = vrot.slane %v1936, 6
    %v1955 = vsel %vm822, %v1954, %v1953
    %v1956 = vrot.slane %v1937, 5
    %v1957 = vsel %vm824, %v1956, %v1955
    %v1958 = vrot.slane %v1938, 4
    %v1959 = vsel %vm826, %v1958, %v1957
    %v1960 = vrot.slane %v1939, 3
    %v1961 = vsel %vm828, %v1960, %v1959
    %1962 = vrot.lane.b32.xlu0 %v1961, 96
    %v1963 = vpop.permute.xlu0 %1962
    %v1964 = vsel %vm520, %v1963, 0
    %1966 = vmatprep.subr.mxu0 0.0
    %1967 = vmatpush1.msra.mxu0 %v986
    %1968 = vmatprep.subr.mxu0 0.0
    %1969 = vmatpush1.msra.mxu0 %v987
    %1970 = vmatprep.subr.mxu0 0.0
    %1971 = vmatpush1.msra.mxu0 %v988
    %1972 = vmatprep.subr.mxu0 0.0
    %1973 = vmatpush1.msra.mxu0 %v989
    %1974 = vmatprep.subr.mxu0 0.0
    %1975 = vmatpush1.msra.mxu0 0.0
    %1976 = vmatprep.subr.mxu0 0.0
    %1977 = vmatpush1.msra.mxu0 0.0
    %1978 = vmatprep.subr.mxu0 0.0
    %1979 = vmatpush1.msra.mxu0 0.0
    %1980 = vmatprep.subr.mxu0 0.0
    %1981 = vmatpush1.msra.mxu0 0.0
    %1982 = vmatprep.subr.mxu0 0.0
    %1983 = vmatpush1.msra.mxu0 0.0
    %1984 = vmatprep.subr.mxu0 0.0
    %1985 = vmatpush1.msra.mxu0 0.0
    %1986 = vmatprep.subr.mxu0 0.0
    %1987 = vmatpush1.msra.mxu0 0.0
    %1988 = vmatprep.subr.mxu0 0.0
    %1989 = vmatpush1.msra.mxu0 0.0
    %1990 = vmatprep.subr.mxu0 0.0
    %1991 = vmatpush1.msra.mxu0 0.0
    %1992 = vmatprep.subr.mxu0 0.0
    %1993 = vmatpush1.msra.mxu0 0.0
    %1994 = vmatprep.subr.mxu0 0.0
    %1995 = vmatpush1.msra.mxu0 0.0
    %1996 = vmatprep.subr.mxu0 0.0
    %1997 = vmatpush1.msra.mxu0 0.0
    %1998 = vmatprep.subr.mxu0 0.0
    %1999 = vmatpush1.msra.mxu0 0.0
    %2000 = vmatprep.subr.mxu0 0.0
    %2001 = vmatpush1.msra.mxu0 0.0
    %2002 = vmatprep.subr.mxu0 0.0
    %2003 = vmatpush1.msra.mxu0 0.0
    %2004 = vmatprep.subr.mxu0 0.0
    %2005 = vmatpush1.msra.mxu0 0.0
    %2006 = vmatprep.subr.mxu0 0.0
    %2007 = vmatpush1.msra.mxu0 0.0
    %2008 = vmatprep.subr.mxu0 0.0
    %2009 = vmatpush1.msra.mxu0 0.0
    %2010 = vmatprep.subr.mxu0 0.0
    %2011 = vmatpush1.msra.mxu0 0.0
    %2012 = vmatprep.subr.mxu0 0.0
    %2013 = vmatpush1.msra.mxu0 0.0
    %2014 = vmatprep.subr.mxu0 0.0
    %2015 = vmatpush1.msra.mxu0 0.0
    %2016 = vmatprep.subr.mxu0 0.0
    %2017 = vmatpush1.msra.mxu0 0.0
    %2018 = vmatprep.subr.mxu0 0.0
    %2019 = vmatpush1.msra.mxu0 0.0
    %2020 = vmatprep.subr.mxu0 0.0
    %2021 = vmatpush1.msra.mxu0 0.0
    %2022 = vmatprep.subr.mxu0 0.0
    %2023 = vmatpush1.msra.mxu0 0.0
    %2024 = vmatprep.subr.mxu0 0.0
    %2025 = vmatpush1.msra.mxu0 0.0
    %2026 = vmatprep.subr.mxu0 0.0
    %2027 = vmatpush1.msra.mxu0 0.0
    %2028 = vmatprep.subr.mxu0 0.0
    %2029 = vmatpush1.msra.mxu0 0.0
    %2030 = vmatprep.mubr.f32.mxu0 0.0
    %2031 = vmatmul.mubr.f32.gmra.mrb[0].mxu0 %v1964
    %v2032 = vpop.f32.mrb[0].mxu0
    %v2033 = vadd.f32 %v995, %v2032
    %v2034 = vpop.f32.mrb[0].mxu0
    %2035 = vdwg.mxu0
    %v2037 = vrot.slane %v2033, 5
    %v2038 = vrot.slane %v2033, 6
    %v2039 = vrot.slane %v2033, 7
    %v2040 = vrot.slane %v2033, 1
    %v2041 = vrot.slane %v2033, 2
    %v2042 = vrot.slane %v2033, 3
    %v2043 = vrot.slane %v2033, 4
    %v2052 = vadd.f32 %v948, %v2037
    %v2053 = vadd.f32 %v953, %v2038
    %v2054 = vadd.f32 %v958, %v2039
    %v2055 = vadd.f32 %v963, %v2033
    %v2056 = vadd.f32 %v968, %v2040
    %v2057 = vadd.f32 %v973, %v2041
    %v2058 = vadd.f32 %v978, %v2042
    %v2059 = vadd.f32 %v983, %v2043
    %v2060 = vxor.u32 %v2052, 2147483648
    %v2061 = vxor.u32 %v2053, 2147483648
    %v2062 = vxor.u32 %v2054, 2147483648
    %v2063 = vxor.u32 %v2055, 2147483648
    %v2064 = vxor.u32 %v2056, 2147483648
    %v2065 = vxor.u32 %v2057, 2147483648
    %v2066 = vxor.u32 %v2058, 2147483648
    %v2067 = vxor.u32 %v2059, 2147483648
    %v2068 = vmul.f32 %v2060, 1.442695
    %v2069 = vpow.pop %v2068
    %v2070 = vmul.f32 %v2061, 1.442695
    %v2071 = vpow.pop %v2070
    %v2072 = vmul.f32 %v2062, 1.442695
    %v2073 = vpow.pop %v2072
    %v2074 = vmul.f32 %v2063, 1.442695
    %v2075 = vpow.pop %v2074
    %v2076 = vmul.f32 %v2064, 1.442695
    %v2077 = vpow.pop %v2076
    %v2078 = vmul.f32 %v2065, 1.442695
    %v2079 = vpow.pop %v2078
    %v2080 = vmul.f32 %v2066, 1.442695
    %v2081 = vpow.pop %v2080
    %v2082 = vmul.f32 %v2067, 1.442695
    %v2083 = vpow.pop %v2082
    %v2084 = vadd.f32 %v2069, 1.0
    %v2085 = vadd.f32 %v2071, 1.0
    %v2086 = vadd.f32 %v2073, 1.0
    %v2087 = vadd.f32 %v2075, 1.0
    %v2088 = vadd.f32 %v2077, 1.0
    %v2089 = vadd.f32 %v2079, 1.0
    %v2090 = vadd.f32 %v2081, 1.0
    %v2091 = vadd.f32 %v2083, 1.0
    %v2092 = vrcp.pop %v2084
    %v2093 = vmul.f32 1.0, %v2092
    %v2094 = vrcp.pop %v2085
    %v2095 = vmul.f32 1.0, %v2094
    %v2096 = vrcp.pop %v2086
    %v2097 = vmul.f32 1.0, %v2096
    %v2098 = vrcp.pop %v2087
    %v2099 = vmul.f32 1.0, %v2098
    %v2100 = vrcp.pop %v2088
    %v2101 = vmul.f32 1.0, %v2100
    %v2102 = vrcp.pop %v2089
    %v2103 = vmul.f32 1.0, %v2102
    %v2104 = vrcp.pop %v2090
    %v2105 = vmul.f32 1.0, %v2104
    %v2106 = vrcp.pop %v2091
    %v2107 = vmul.f32 1.0, %v2106
    %2108 = vrot.lane.b32.xlu0 %v2037, 64
    %v2109 = vpop.permute.xlu0 %2108
    %2110 = vrot.lane.b32.xlu0 %v2038, 64
    %v2111 = vpop.permute.xlu0 %2110
    %2112 = vrot.lane.b32.xlu0 %v2039, 64
    %v2113 = vpop.permute.xlu0 %2112
    %2114 = vrot.lane.b32.xlu0 %v2033, 64
    %v2115 = vpop.permute.xlu0 %2114
    %2116 = vrot.lane.b32.xlu0 %v2040, 64
    %v2117 = vpop.permute.xlu0 %2116
    %2118 = vrot.lane.b32.xlu0 %v2041, 64
    %v2119 = vpop.permute.xlu0 %2118
    %2120 = vrot.lane.b32.xlu0 %v2042, 64
    %v2121 = vpop.permute.xlu0 %2120
    %2122 = vrot.lane.b32.xlu0 %v2043, 64
    %v2123 = vpop.permute.xlu0 %2122
    %v2132 = vmul.f32 %v2093, %v2109
    %v2133 = vmul.f32 %v2095, %v2111
    %v2134 = vmul.f32 %v2097, %v2113
    %v2135 = vmul.f32 %v2099, %v2115
    %v2136 = vmul.f32 %v2101, %v2117
    %v2137 = vmul.f32 %v2103, %v2119
    %v2138 = vmul.f32 %v2105, %v2121
    %v2139 = vmul.f32 %v2107, %v2123
    %2148 = vrot.lane.b32.xlu0 %v2132, 64
    %v2149 = vpop.permute.xlu0 %2148
    %2150 = vrot.lane.b32.xlu0 %v2133, 64
    %v2151 = vpop.permute.xlu0 %2150
    %2152 = vrot.lane.b32.xlu0 %v2134, 64
    %v2153 = vpop.permute.xlu0 %2152
    %2154 = vrot.lane.b32.xlu0 %v2135, 64
    %v2155 = vpop.permute.xlu0 %2154
    %2156 = vrot.lane.b32.xlu0 %v2136, 64
    %v2157 = vpop.permute.xlu0 %2156
    %2158 = vrot.lane.b32.xlu0 %v2137, 64
    %v2159 = vpop.permute.xlu0 %2158
    %2160 = vrot.lane.b32.xlu0 %v2138, 64
    %v2161 = vpop.permute.xlu0 %2160
    %2162 = vrot.lane.b32.xlu0 %v2139, 64
    %v2163 = vpop.permute.xlu0 %2162
    %v2172 = vadd.f32 %v948, %v2149
    %v2173 = vadd.f32 %v953, %v2151
    %v2174 = vadd.f32 %v958, %v2153
    %v2175 = vadd.f32 %v963, %v2155
    %v2176 = vadd.f32 %v968, %v2157
    %v2177 = vadd.f32 %v973, %v2159
    %v2178 = vadd.f32 %v978, %v2161
    %v2179 = vadd.f32 %v983, %v2163
    %v2180 = vtanh.pop %v2172
    %v2181 = vtanh.pop %v2173
    %v2182 = vtanh.pop %v2174
    %v2183 = vtanh.pop %v2175
    %v2184 = vtanh.pop %v2176
    %v2185 = vtanh.pop %v2177
    %v2186 = vtanh.pop %v2178
    %v2187 = vtanh.pop %v2179
    %v2188 = vsub.f32 1.0, %v2093
    %v2189 = vsub.f32 1.0, %v2095
    %v2190 = vsub.f32 1.0, %v2097
    %v2191 = vsub.f32 1.0, %v2099
    %v2192 = vsub.f32 1.0, %v2101
    %v2193 = vsub.f32 1.0, %v2103
    %v2194 = vsub.f32 1.0, %v2105
    %v2195 = vsub.f32 1.0, %v2107
    %2204 = vrot.lane.b32.xlu0 %v2180, 96
    %v2205 = vpop.permute.xlu0 %2204
    %2206 = vrot.lane.b32.xlu0 %v2181, 96
    %v2207 = vpop.permute.xlu0 %2206
    %2208 = vrot.lane.b32.xlu0 %v2182, 96
    %v2209 = vpop.permute.xlu0 %2208
    %2210 = vrot.lane.b32.xlu0 %v2183, 96
    %v2211 = vpop.permute.xlu0 %2210
    %2212 = vrot.lane.b32.xlu0 %v2184, 96
    %v2213 = vpop.permute.xlu0 %2212
    %2214 = vrot.lane.b32.xlu0 %v2185, 96
    %v2215 = vpop.permute.xlu0 %2214
    %2216 = vrot.lane.b32.xlu0 %v2186, 96
    %v2217 = vpop.permute.xlu0 %2216
    %2218 = vrot.lane.b32.xlu0 %v2187, 96
    %v2219 = vpop.permute.xlu0 %2218
    %v2228 = vmul.f32 %v2188, %v2205
    %v2229 = vmul.f32 %v2189, %v2207
    %v2230 = vmul.f32 %v2190, %v2209
    %v2231 = vmul.f32 %v2191, %v2211
    %v2232 = vmul.f32 %v2192, %v2213
    %v2233 = vmul.f32 %v2193, %v2215
    %v2234 = vmul.f32 %v2194, %v2217
    %v2235 = vmul.f32 %v2195, %v2219
    %v2236 = vrot.slane %v1932, 7
    %v2237 = vrot.slane %v1933, 7
    %v2238 = vrot.slane %v1934, 7
    %v2239 = vrot.slane %v1936, 7
    %v2240 = vrot.slane %v1937, 7
    %v2241 = vrot.slane %v1938, 7
    %v2242 = vrot.slane %v1939, 7
    %v2251 = vmul.f32 %v2093, %v2236
    %v2252 = vmul.f32 %v2095, %v2237
    %v2253 = vmul.f32 %v2097, %v2238
    %v2254 = vmul.f32 %v2099, %v1952
    %v2255 = vmul.f32 %v2101, %v2239
    %v2256 = vmul.f32 %v2103, %v2240
    %v2257 = vmul.f32 %v2105, %v2241
    %v2258 = vmul.f32 %v2107, %v2242
    %v2259 = vadd.f32 %v2228, %v2251
    %v2260 = vadd.f32 %v2229, %v2252
    %v2261 = vadd.f32 %v2230, %v2253
    %v2262 = vadd.f32 %v2231, %v2254
    %v2263 = vadd.f32 %v2232, %v2255
    %v2264 = vadd.f32 %v2233, %v2256
    %v2265 = vadd.f32 %v2234, %v2257
    %v2266 = vadd.f32 %v2235, %v2258
    %v2275 = vrot.slane %v2259, 3
    %v2276 = vrot.slane %v2260, 2
    %v2277 = vsel %vm816, %v2276, %v2275
    %v2278 = vrot.slane %v2261, 1
    %v2279 = vsel %vm818, %v2278, %v2277
    %v2280 = vsel %vm820, %v2262, %v2279
    %v2281 = vrot.slane %v2263, 7
    %v2282 = vsel %vm822, %v2281, %v2280
    %v2283 = vrot.slane %v2264, 6
    %v2284 = vsel %vm824, %v2283, %v2282
    %v2285 = vrot.slane %v2265, 5
    %v2286 = vsel %vm826, %v2285, %v2284
    %v2287 = vrot.slane %v2266, 4
    %v2288 = vsel %vm828, %v2287, %v2286
    %2289 = vrot.lane.b32.xlu0 %v2288, 96
    %v2290 = vpop.permute.xlu0 %2289
    %v2291 = vsel %vm520, %v2290, 0
    %2293 = vmatprep.subr.mxu0 0.0
    %2294 = vmatpush1.msra.mxu0 %v986
    %2295 = vmatprep.subr.mxu0 0.0
    %2296 = vmatpush1.msra.mxu0 %v987
    %2297 = vmatprep.subr.mxu0 0.0
    %2298 = vmatpush1.msra.mxu0 %v988
    %2299 = vmatprep.subr.mxu0 0.0
    %2300 = vmatpush1.msra.mxu0 %v989
    %2301 = vmatprep.subr.mxu0 0.0
    %2302 = vmatpush1.msra.mxu0 0.0
    %2303 = vmatprep.subr.mxu0 0.0
    %2304 = vmatpush1.msra.mxu0 0.0
    %2305 = vmatprep.subr.mxu0 0.0
    %2306 = vmatpush1.msra.mxu0 0.0
    %2307 = vmatprep.subr.mxu0 0.0
    %2308 = vmatpush1.msra.mxu0 0.0
    %2309 = vmatprep.subr.mxu0 0.0
    %2310 = vmatpush1.msra.mxu0 0.0
    %2311 = vmatprep.subr.mxu0 0.0
    %2312 = vmatpush1.msra.mxu0 0.0
    %2313 = vmatprep.subr.mxu0 0.0
    %2314 = vmatpush1.msra.mxu0 0.0
    %2315 = vmatprep.subr.mxu0 0.0
    %2316 = vmatpush1.msra.mxu0 0.0
    %2317 = vmatprep.subr.mxu0 0.0
    %2318 = vmatpush1.msra.mxu0 0.0
    %2319 = vmatprep.subr.mxu0 0.0
    %2320 = vmatpush1.msra.mxu0 0.0
    %2321 = vmatprep.subr.mxu0 0.0
    %2322 = vmatpush1.msra.mxu0 0.0
    %2323 = vmatprep.subr.mxu0 0.0
    %2324 = vmatpush1.msra.mxu0 0.0
    %2325 = vmatprep.subr.mxu0 0.0
    %2326 = vmatpush1.msra.mxu0 0.0
    %2327 = vmatprep.subr.mxu0 0.0
    %2328 = vmatpush1.msra.mxu0 0.0
    %2329 = vmatprep.subr.mxu0 0.0
    %2330 = vmatpush1.msra.mxu0 0.0
    %2331 = vmatprep.subr.mxu0 0.0
    %2332 = vmatpush1.msra.mxu0 0.0
    %2333 = vmatprep.subr.mxu0 0.0
    %2334 = vmatpush1.msra.mxu0 0.0
    %2335 = vmatprep.subr.mxu0 0.0
    %2336 = vmatpush1.msra.mxu0 0.0
    %2337 = vmatprep.subr.mxu0 0.0
    %2338 = vmatpush1.msra.mxu0 0.0
    %2339 = vmatprep.subr.mxu0 0.0
    %2340 = vmatpush1.msra.mxu0 0.0
    %2341 = vmatprep.subr.mxu0 0.0
    %2342 = vmatpush1.msra.mxu0 0.0
    %2343 = vmatprep.subr.mxu0 0.0
    %2344 = vmatpush1.msra.mxu0 0.0
    %2345 = vmatprep.subr.mxu0 0.0
    %2346 = vmatpush1.msra.mxu0 0.0
    %2347 = vmatprep.subr.mxu0 0.0
    %2348 = vmatpush1.msra.mxu0 0.0
    %2349 = vmatprep.subr.mxu0 0.0
    %2350 = vmatpush1.msra.mxu0 0.0
    %2351 = vmatprep.subr.mxu0 0.0
    %2352 = vmatpush1.msra.mxu0 0.0
    %2353 = vmatprep.subr.mxu0 0.0
    %2354 = vmatpush1.msra.mxu0 0.0
    %2355 = vmatprep.subr.mxu0 0.0
    %2356 = vmatpush1.msra.mxu0 0.0
    %2357 = vmatprep.mubr.f32.mxu0 0.0
    %2358 = vmatmul.mubr.f32.gmra.mrb[0].mxu0 %v2291
    %v2359 = vpop.f32.mrb[0].mxu0
    %v2360 = vadd.f32 %v995, %v2359
    %v2361 = vpop.f32.mrb[0].mxu0
    %2362 = vdwg.mxu0
    %v2364 = vrot.slane %v2360, 4
    %v2365 = vrot.slane %v2360, 5
    %v2366 = vrot.slane %v2360, 6
    %v2367 = vrot.slane %v2360, 7
    %v2368 = vrot.slane %v2360, 1
    %v2369 = vrot.slane %v2360, 2
    %v2370 = vrot.slane %v2360, 3
    %v2379 = vadd.f32 %v948, %v2364
    %v2380 = vadd.f32 %v953, %v2365
    %v2381 = vadd.f32 %v958, %v2366
    %v2382 = vadd.f32 %v963, %v2367
    %v2383 = vadd.f32 %v968, %v2360
    %v2384 = vadd.f32 %v973, %v2368
    %v2385 = vadd.f32 %v978, %v2369
    %v2386 = vadd.f32 %v983, %v2370
    %v2387 = vxor.u32 %v2379, 2147483648
    %v2388 = vxor.u32 %v2380, 2147483648
    %v2389 = vxor.u32 %v2381, 2147483648
    %v2390 = vxor.u32 %v2382, 2147483648
    %v2391 = vxor.u32 %v2383, 2147483648
    %v2392 = vxor.u32 %v2384, 2147483648
    %v2393 = vxor.u32 %v2385, 2147483648
    %v2394 = vxor.u32 %v2386, 2147483648
    %v2395 = vmul.f32 %v2387, 1.442695
    %v2396 = vpow.pop %v2395
    %v2397 = vmul.f32 %v2388, 1.442695
    %v2398 = vpow.pop %v2397
    %v2399 = vmul.f32 %v2389, 1.442695
    %v2400 = vpow.pop %v2399
    %v2401 = vmul.f32 %v2390, 1.442695
    %v2402 = vpow.pop %v2401
    %v2403 = vmul.f32 %v2391, 1.442695
    %v2404 = vpow.pop %v2403
    %v2405 = vmul.f32 %v2392, 1.442695
    %v2406 = vpow.pop %v2405
    %v2407 = vmul.f32 %v2393, 1.442695
    %v2408 = vpow.pop %v2407
    %v2409 = vmul.f32 %v2394, 1.442695
    %v2410 = vpow.pop %v2409
    %v2411 = vadd.f32 %v2396, 1.0
    %v2412 = vadd.f32 %v2398, 1.0
    %v2413 = vadd.f32 %v2400, 1.0
    %v2414 = vadd.f32 %v2402, 1.0
    %v2415 = vadd.f32 %v2404, 1.0
    %v2416 = vadd.f32 %v2406, 1.0
    %v2417 = vadd.f32 %v2408, 1.0
    %v2418 = vadd.f32 %v2410, 1.0
    %v2419 = vrcp.pop %v2411
    %v2420 = vmul.f32 1.0, %v2419
    %v2421 = vrcp.pop %v2412
    %v2422 = vmul.f32 1.0, %v2421
    %v2423 = vrcp.pop %v2413
    %v2424 = vmul.f32 1.0, %v2423
    %v2425 = vrcp.pop %v2414
    %v2426 = vmul.f32 1.0, %v2425
    %v2427 = vrcp.pop %v2415
    %v2428 = vmul.f32 1.0, %v2427
    %v2429 = vrcp.pop %v2416
    %v2430 = vmul.f32 1.0, %v2429
    %v2431 = vrcp.pop %v2417
    %v2432 = vmul.f32 1.0, %v2431
    %v2433 = vrcp.pop %v2418
    %v2434 = vmul.f32 1.0, %v2433
    %2435 = vrot.lane.b32.xlu0 %v2364, 64
    %v2436 = vpop.permute.xlu0 %2435
    %2437 = vrot.lane.b32.xlu0 %v2365, 64
    %v2438 = vpop.permute.xlu0 %2437
    %2439 = vrot.lane.b32.xlu0 %v2366, 64
    %v2440 = vpop.permute.xlu0 %2439
    %2441 = vrot.lane.b32.xlu0 %v2367, 64
    %v2442 = vpop.permute.xlu0 %2441
    %2443 = vrot.lane.b32.xlu0 %v2360, 64
    %v2444 = vpop.permute.xlu0 %2443
    %2445 = vrot.lane.b32.xlu0 %v2368, 64
    %v2446 = vpop.permute.xlu0 %2445
    %2447 = vrot.lane.b32.xlu0 %v2369, 64
    %v2448 = vpop.permute.xlu0 %2447
    %2449 = vrot.lane.b32.xlu0 %v2370, 64
    %v2450 = vpop.permute.xlu0 %2449
    %v2459 = vmul.f32 %v2420, %v2436
    %v2460 = vmul.f32 %v2422, %v2438
    %v2461 = vmul.f32 %v2424, %v2440
    %v2462 = vmul.f32 %v2426, %v2442
    %v2463 = vmul.f32 %v2428, %v2444
    %v2464 = vmul.f32 %v2430, %v2446
    %v2465 = vmul.f32 %v2432, %v2448
    %v2466 = vmul.f32 %v2434, %v2450
    %2475 = vrot.lane.b32.xlu0 %v2459, 64
    %v2476 = vpop.permute.xlu0 %2475
    %2477 = vrot.lane.b32.xlu0 %v2460, 64
    %v2478 = vpop.permute.xlu0 %2477
    %2479 = vrot.lane.b32.xlu0 %v2461, 64
    %v2480 = vpop.permute.xlu0 %2479
    %2481 = vrot.lane.b32.xlu0 %v2462, 64
    %v2482 = vpop.permute.xlu0 %2481
    %2483 = vrot.lane.b32.xlu0 %v2463, 64
    %v2484 = vpop.permute.xlu0 %2483
    %2485 = vrot.lane.b32.xlu0 %v2464, 64
    %v2486 = vpop.permute.xlu0 %2485
    %2487 = vrot.lane.b32.xlu0 %v2465, 64
    %v2488 = vpop.permute.xlu0 %2487
    %2489 = vrot.lane.b32.xlu0 %v2466, 64
    %v2490 = vpop.permute.xlu0 %2489
    %v2499 = vadd.f32 %v948, %v2476
    %v2500 = vadd.f32 %v953, %v2478
    %v2501 = vadd.f32 %v958, %v2480
    %v2502 = vadd.f32 %v963, %v2482
    %v2503 = vadd.f32 %v968, %v2484
    %v2504 = vadd.f32 %v973, %v2486
    %v2505 = vadd.f32 %v978, %v2488
    %v2506 = vadd.f32 %v983, %v2490
    %v2507 = vtanh.pop %v2499
    %v2508 = vtanh.pop %v2500
    %v2509 = vtanh.pop %v2501
    %v2510 = vtanh.pop %v2502
    %v2511 = vtanh.pop %v2503
    %v2512 = vtanh.pop %v2504
    %v2513 = vtanh.pop %v2505
    %v2514 = vtanh.pop %v2506
    %v2515 = vsub.f32 1.0, %v2420
    %v2516 = vsub.f32 1.0, %v2422
    %v2517 = vsub.f32 1.0, %v2424
    %v2518 = vsub.f32 1.0, %v2426
    %v2519 = vsub.f32 1.0, %v2428
    %v2520 = vsub.f32 1.0, %v2430
    %v2521 = vsub.f32 1.0, %v2432
    %v2522 = vsub.f32 1.0, %v2434
    %2531 = vrot.lane.b32.xlu0 %v2507, 96
    %v2532 = vpop.permute.xlu0 %2531
    %2533 = vrot.lane.b32.xlu0 %v2508, 96
    %v2534 = vpop.permute.xlu0 %2533
    %2535 = vrot.lane.b32.xlu0 %v2509, 96
    %v2536 = vpop.permute.xlu0 %2535
    %2537 = vrot.lane.b32.xlu0 %v2510, 96
    %v2538 = vpop.permute.xlu0 %2537
    %2539 = vrot.lane.b32.xlu0 %v2511, 96
    %v2540 = vpop.permute.xlu0 %2539
    %2541 = vrot.lane.b32.xlu0 %v2512, 96
    %v2542 = vpop.permute.xlu0 %2541
    %2543 = vrot.lane.b32.xlu0 %v2513, 96
    %v2544 = vpop.permute.xlu0 %2543
    %2545 = vrot.lane.b32.xlu0 %v2514, 96
    %v2546 = vpop.permute.xlu0 %2545
    %v2555 = vmul.f32 %v2515, %v2532
    %v2556 = vmul.f32 %v2516, %v2534
    %v2557 = vmul.f32 %v2517, %v2536
    %v2558 = vmul.f32 %v2518, %v2538
    %v2559 = vmul.f32 %v2519, %v2540
    %v2560 = vmul.f32 %v2520, %v2542
    %v2561 = vmul.f32 %v2521, %v2544
    %v2562 = vmul.f32 %v2522, %v2546
    %v2563 = vrot.slane %v2259, 7
    %v2564 = vrot.slane %v2260, 7
    %v2565 = vrot.slane %v2261, 7
    %v2566 = vrot.slane %v2262, 7
    %v2567 = vrot.slane %v2264, 7
    %v2568 = vrot.slane %v2265, 7
    %v2569 = vrot.slane %v2266, 7
    %v2578 = vmul.f32 %v2420, %v2563
    %v2579 = vmul.f32 %v2422, %v2564
    %v2580 = vmul.f32 %v2424, %v2565
    %v2581 = vmul.f32 %v2426, %v2566
    %v2582 = vmul.f32 %v2428, %v2281
    %v2583 = vmul.f32 %v2430, %v2567
    %v2584 = vmul.f32 %v2432, %v2568
    %v2585 = vmul.f32 %v2434, %v2569
    %v2586 = vadd.f32 %v2555, %v2578
    %v2587 = vadd.f32 %v2556, %v2579
    %v2588 = vadd.f32 %v2557, %v2580
    %v2589 = vadd.f32 %v2558, %v2581
    %v2590 = vadd.f32 %v2559, %v2582
    %v2591 = vadd.f32 %v2560, %v2583
    %v2592 = vadd.f32 %v2561, %v2584
    %v2593 = vadd.f32 %v2562, %v2585
    %v2602 = vrot.slane %v2586, 4
    %v2603 = vrot.slane %v2587, 3
    %v2604 = vsel %vm816, %v2603, %v2602
    %v2605 = vrot.slane %v2588, 2
    %v2606 = vsel %vm818, %v2605, %v2604
    %v2607 = vrot.slane %v2589, 1
    %v2608 = vsel %vm820, %v2607, %v2606
    %v2609 = vsel %vm822, %v2590, %v2608
    %v2610 = vrot.slane %v2591, 7
    %v2611 = vsel %vm824, %v2610, %v2609
    %v2612 = vrot.slane %v2592, 6
    %v2613 = vsel %vm826, %v2612, %v2611
    %v2614 = vrot.slane %v2593, 5
    %v2615 = vsel %vm828, %v2614, %v2613
    %2616 = vrot.lane.b32.xlu0 %v2615, 96
    %v2617 = vpop.permute.xlu0 %2616
    %v2618 = vsel %vm520, %v2617, 0
    %2620 = vmatprep.subr.mxu0 0.0
    %2621 = vmatpush1.msra.mxu0 %v986
    %2622 = vmatprep.subr.mxu0 0.0
    %2623 = vmatpush1.msra.mxu0 %v987
    %2624 = vmatprep.subr.mxu0 0.0
    %2625 = vmatpush1.msra.mxu0 %v988
    %2626 = vmatprep.subr.mxu0 0.0
    %2627 = vmatpush1.msra.mxu0 %v989
    %2628 = vmatprep.subr.mxu0 0.0
    %2629 = vmatpush1.msra.mxu0 0.0
    %2630 = vmatprep.subr.mxu0 0.0
    %2631 = vmatpush1.msra.mxu0 0.0
    %2632 = vmatprep.subr.mxu0 0.0
    %2633 = vmatpush1.msra.mxu0 0.0
    %2634 = vmatprep.subr.mxu0 0.0
    %2635 = vmatpush1.msra.mxu0 0.0
    %2636 = vmatprep.subr.mxu0 0.0
    %2637 = vmatpush1.msra.mxu0 0.0
    %2638 = vmatprep.subr.mxu0 0.0
    %2639 = vmatpush1.msra.mxu0 0.0
    %2640 = vmatprep.subr.mxu0 0.0
    %2641 = vmatpush1.msra.mxu0 0.0
    %2642 = vmatprep.subr.mxu0 0.0
    %2643 = vmatpush1.msra.mxu0 0.0
    %2644 = vmatprep.subr.mxu0 0.0
    %2645 = vmatpush1.msra.mxu0 0.0
    %2646 = vmatprep.subr.mxu0 0.0
    %2647 = vmatpush1.msra.mxu0 0.0
    %2648 = vmatprep.subr.mxu0 0.0
    %2649 = vmatpush1.msra.mxu0 0.0
    %2650 = vmatprep.subr.mxu0 0.0
    %2651 = vmatpush1.msra.mxu0 0.0
    %2652 = vmatprep.subr.mxu0 0.0
    %2653 = vmatpush1.msra.mxu0 0.0
    %2654 = vmatprep.subr.mxu0 0.0
    %2655 = vmatpush1.msra.mxu0 0.0
    %2656 = vmatprep.subr.mxu0 0.0
    %2657 = vmatpush1.msra.mxu0 0.0
    %2658 = vmatprep.subr.mxu0 0.0
    %2659 = vmatpush1.msra.mxu0 0.0
    %2660 = vmatprep.subr.mxu0 0.0
    %2661 = vmatpush1.msra.mxu0 0.0
    %2662 = vmatprep.subr.mxu0 0.0
    %2663 = vmatpush1.msra.mxu0 0.0
    %2664 = vmatprep.subr.mxu0 0.0
    %2665 = vmatpush1.msra.mxu0 0.0
    %2666 = vmatprep.subr.mxu0 0.0
    %2667 = vmatpush1.msra.mxu0 0.0
    %2668 = vmatprep.subr.mxu0 0.0
    %2669 = vmatpush1.msra.mxu0 0.0
    %2670 = vmatprep.subr.mxu0 0.0
    %2671 = vmatpush1.msra.mxu0 0.0
    %2672 = vmatprep.subr.mxu0 0.0
    %2673 = vmatpush1.msra.mxu0 0.0
    %2674 = vmatprep.subr.mxu0 0.0
    %2675 = vmatpush1.msra.mxu0 0.0
    %2676 = vmatprep.subr.mxu0 0.0
    %2677 = vmatpush1.msra.mxu0 0.0
    %2678 = vmatprep.subr.mxu0 0.0
    %2679 = vmatpush1.msra.mxu0 0.0
    %2680 = vmatprep.subr.mxu0 0.0
    %2681 = vmatpush1.msra.mxu0 0.0
    %2682 = vmatprep.subr.mxu0 0.0
    %2683 = vmatpush1.msra.mxu0 0.0
    %2684 = vmatprep.mubr.f32.mxu0 0.0
    %2685 = vmatmul.mubr.f32.gmra.mrb[0].mxu0 %v2618
    %v2686 = vpop.f32.mrb[0].mxu0
    %v2687 = vadd.f32 %v995, %v2686
    %v2688 = vpop.f32.mrb[0].mxu0
    %2689 = vdwg.mxu0
    %v2691 = vrot.slane %v2687, 3
    %v2692 = vrot.slane %v2687, 4
    %v2693 = vrot.slane %v2687, 5
    %v2694 = vrot.slane %v2687, 6
    %v2695 = vrot.slane %v2687, 7
    %v2696 = vrot.slane %v2687, 1
    %v2697 = vrot.slane %v2687, 2
    %v2706 = vadd.f32 %v948, %v2691
    %v2707 = vadd.f32 %v953, %v2692
    %v2708 = vadd.f32 %v958, %v2693
    %v2709 = vadd.f32 %v963, %v2694
    %v2710 = vadd.f32 %v968, %v2695
    %v2711 = vadd.f32 %v973, %v2687
    %v2712 = vadd.f32 %v978, %v2696
    %v2713 = vadd.f32 %v983, %v2697
    %v2714 = vxor.u32 %v2706, 2147483648
    %v2715 = vxor.u32 %v2707, 2147483648
    %v2716 = vxor.u32 %v2708, 2147483648
    %v2717 = vxor.u32 %v2709, 2147483648
    %v2718 = vxor.u32 %v2710, 2147483648
    %v2719 = vxor.u32 %v2711, 2147483648
    %v2720 = vxor.u32 %v2712, 2147483648
    %v2721 = vxor.u32 %v2713, 2147483648
    %v2722 = vmul.f32 %v2714, 1.442695
    %v2723 = vpow.pop %v2722
    %v2724 = vmul.f32 %v2715, 1.442695
    %v2725 = vpow.pop %v2724
    %v2726 = vmul.f32 %v2716, 1.442695
    %v2727 = vpow.pop %v2726
    %v2728 = vmul.f32 %v2717, 1.442695
    %v2729 = vpow.pop %v2728
    %v2730 = vmul.f32 %v2718, 1.442695
    %v2731 = vpow.pop %v2730
    %v2732 = vmul.f32 %v2719, 1.442695
    %v2733 = vpow.pop %v2732
    %v2734 = vmul.f32 %v2720, 1.442695
    %v2735 = vpow.pop %v2734
    %v2736 = vmul.f32 %v2721, 1.442695
    %v2737 = vpow.pop %v2736
    %v2738 = vadd.f32 %v2723, 1.0
    %v2739 = vadd.f32 %v2725, 1.0
    %v2740 = vadd.f32 %v2727, 1.0
    %v2741 = vadd.f32 %v2729, 1.0
    %v2742 = vadd.f32 %v2731, 1.0
    %v2743 = vadd.f32 %v2733, 1.0
    %v2744 = vadd.f32 %v2735, 1.0
    %v2745 = vadd.f32 %v2737, 1.0
    %v2746 = vrcp.pop %v2738
    %v2747 = vmul.f32 1.0, %v2746
    %v2748 = vrcp.pop %v2739
    %v2749 = vmul.f32 1.0, %v2748
    %v2750 = vrcp.pop %v2740
    %v2751 = vmul.f32 1.0, %v2750
    %v2752 = vrcp.pop %v2741
    %v2753 = vmul.f32 1.0, %v2752
    %v2754 = vrcp.pop %v2742
    %v2755 = vmul.f32 1.0, %v2754
    %v2756 = vrcp.pop %v2743
    %v2757 = vmul.f32 1.0, %v2756
    %v2758 = vrcp.pop %v2744
    %v2759 = vmul.f32 1.0, %v2758
    %v2760 = vrcp.pop %v2745
    %v2761 = vmul.f32 1.0, %v2760
    %2762 = vrot.lane.b32.xlu0 %v2691, 64
    %v2763 = vpop.permute.xlu0 %2762
    %2764 = vrot.lane.b32.xlu0 %v2692, 64
    %v2765 = vpop.permute.xlu0 %2764
    %2766 = vrot.lane.b32.xlu0 %v2693, 64
    %v2767 = vpop.permute.xlu0 %2766
    %2768 = vrot.lane.b32.xlu0 %v2694, 64
    %v2769 = vpop.permute.xlu0 %2768
    %2770 = vrot.lane.b32.xlu0 %v2695, 64
    %v2771 = vpop.permute.xlu0 %2770
    %2772 = vrot.lane.b32.xlu0 %v2687, 64
    %v2773 = vpop.permute.xlu0 %2772
    %2774 = vrot.lane.b32.xlu0 %v2696, 64
    %v2775 = vpop.permute.xlu0 %2774
    %2776 = vrot.lane.b32.xlu0 %v2697, 64
    %v2777 = vpop.permute.xlu0 %2776
    %v2786 = vmul.f32 %v2747, %v2763
    %v2787 = vmul.f32 %v2749, %v2765
    %v2788 = vmul.f32 %v2751, %v2767
    %v2789 = vmul.f32 %v2753, %v2769
    %v2790 = vmul.f32 %v2755, %v2771
    %v2791 = vmul.f32 %v2757, %v2773
    %v2792 = vmul.f32 %v2759, %v2775
    %v2793 = vmul.f32 %v2761, %v2777
    %2802 = vrot.lane.b32.xlu0 %v2786, 64
    %v2803 = vpop.permute.xlu0 %2802
    %2804 = vrot.lane.b32.xlu0 %v2787, 64
    %v2805 = vpop.permute.xlu0 %2804
    %2806 = vrot.lane.b32.xlu0 %v2788, 64
    %v2807 = vpop.permute.xlu0 %2806
    %2808 = vrot.lane.b32.xlu0 %v2789, 64
    %v2809 = vpop.permute.xlu0 %2808
    %2810 = vrot.lane.b32.xlu0 %v2790, 64
    %v2811 = vpop.permute.xlu0 %2810
    %2812 = vrot.lane.b32.xlu0 %v2791, 64
    %v2813 = vpop.permute.xlu0 %2812
    %2814 = vrot.lane.b32.xlu0 %v2792, 64
    %v2815 = vpop.permute.xlu0 %2814
    %2816 = vrot.lane.b32.xlu0 %v2793, 64
    %v2817 = vpop.permute.xlu0 %2816
    %v2826 = vadd.f32 %v948, %v2803
    %v2827 = vadd.f32 %v953, %v2805
    %v2828 = vadd.f32 %v958, %v2807
    %v2829 = vadd.f32 %v963, %v2809
    %v2830 = vadd.f32 %v968, %v2811
    %v2831 = vadd.f32 %v973, %v2813
    %v2832 = vadd.f32 %v978, %v2815
    %v2833 = vadd.f32 %v983, %v2817
    %v2834 = vtanh.pop %v2826
    %v2835 = vtanh.pop %v2827
    %v2836 = vtanh.pop %v2828
    %v2837 = vtanh.pop %v2829
    %v2838 = vtanh.pop %v2830
    %v2839 = vtanh.pop %v2831
    %v2840 = vtanh.pop %v2832
    %v2841 = vtanh.pop %v2833
    %v2842 = vsub.f32 1.0, %v2747
    %v2843 = vsub.f32 1.0, %v2749
    %v2844 = vsub.f32 1.0, %v2751
    %v2845 = vsub.f32 1.0, %v2753
    %v2846 = vsub.f32 1.0, %v2755
    %v2847 = vsub.f32 1.0, %v2757
    %v2848 = vsub.f32 1.0, %v2759
    %v2849 = vsub.f32 1.0, %v2761
    %2858 = vrot.lane.b32.xlu0 %v2834, 96
    %v2859 = vpop.permute.xlu0 %2858
    %2860 = vrot.lane.b32.xlu0 %v2835, 96
    %v2861 = vpop.permute.xlu0 %2860
    %2862 = vrot.lane.b32.xlu0 %v2836, 96
    %v2863 = vpop.permute.xlu0 %2862
    %2864 = vrot.lane.b32.xlu0 %v2837, 96
    %v2865 = vpop.permute.xlu0 %2864
    %2866 = vrot.lane.b32.xlu0 %v2838, 96
    %v2867 = vpop.permute.xlu0 %2866
    %2868 = vrot.lane.b32.xlu0 %v2839, 96
    %v2869 = vpop.permute.xlu0 %2868
    %2870 = vrot.lane.b32.xlu0 %v2840, 96
    %v2871 = vpop.permute.xlu0 %2870
    %2872 = vrot.lane.b32.xlu0 %v2841, 96
    %v2873 = vpop.permute.xlu0 %2872
    %v2882 = vmul.f32 %v2842, %v2859
    %v2883 = vmul.f32 %v2843, %v2861
    %v2884 = vmul.f32 %v2844, %v2863
    %v2885 = vmul.f32 %v2845, %v2865
    %v2886 = vmul.f32 %v2846, %v2867
    %v2887 = vmul.f32 %v2847, %v2869
    %v2888 = vmul.f32 %v2848, %v2871
    %v2889 = vmul.f32 %v2849, %v2873
    %v2890 = vrot.slane %v2586, 7
    %v2891 = vrot.slane %v2587, 7
    %v2892 = vrot.slane %v2588, 7
    %v2893 = vrot.slane %v2589, 7
    %v2894 = vrot.slane %v2590, 7
    %v2895 = vrot.slane %v2592, 7
    %v2896 = vrot.slane %v2593, 7
    %v2905 = vmul.f32 %v2747, %v2890
    %v2906 = vmul.f32 %v2749, %v2891
    %v2907 = vmul.f32 %v2751, %v2892
    %v2908 = vmul.f32 %v2753, %v2893
    %v2909 = vmul.f32 %v2755, %v2894
    %v2910 = vmul.f32 %v2757, %v2610
    %v2911 = vmul.f32 %v2759, %v2895
    %v2912 = vmul.f32 %v2761, %v2896
    %v2913 = vadd.f32 %v2882, %v2905
    %v2914 = vadd.f32 %v2883, %v2906
    %v2915 = vadd.f32 %v2884, %v2907
    %v2916 = vadd.f32 %v2885, %v2908
    %v2917 = vadd.f32 %v2886, %v2909
    %v2918 = vadd.f32 %v2887, %v2910
    %v2919 = vadd.f32 %v2888, %v2911
    %v2920 = vadd.f32 %v2889, %v2912
    %v2929 = vrot.slane %v2913, 5
    %v2930 = vrot.slane %v2914, 4
    %v2931 = vsel %vm816, %v2930, %v2929
    %v2932 = vrot.slane %v2915, 3
    %v2933 = vsel %vm818, %v2932, %v2931
    %v2934 = vrot.slane %v2916, 2
    %v2935 = vsel %vm820, %v2934, %v2933
    %v2936 = vrot.slane %v2917, 1
    %v2937 = vsel %vm822, %v2936, %v2935
    %v2938 = vsel %vm824, %v2918, %v2937
    %v2939 = vrot.slane %v2919, 7
    %v2940 = vsel %vm826, %v2939, %v2938
    %v2941 = vrot.slane %v2920, 6
    %v2942 = vsel %vm828, %v2941, %v2940
    %2943 = vrot.lane.b32.xlu0 %v2942, 96
    %v2944 = vpop.permute.xlu0 %2943
    %v2945 = vsel %vm520, %v2944, 0
    %2947 = vmatprep.subr.mxu0 0.0
    %2948 = vmatpush1.msra.mxu0 %v986
    %2949 = vmatprep.subr.mxu0 0.0
    %2950 = vmatpush1.msra.mxu0 %v987
    %2951 = vmatprep.subr.mxu0 0.0
    %2952 = vmatpush1.msra.mxu0 %v988
    %2953 = vmatprep.subr.mxu0 0.0
    %2954 = vmatpush1.msra.mxu0 %v989
    %2955 = vmatprep.subr.mxu0 0.0
    %2956 = vmatpush1.msra.mxu0 0.0
    %2957 = vmatprep.subr.mxu0 0.0
    %2958 = vmatpush1.msra.mxu0 0.0
    %2959 = vmatprep.subr.mxu0 0.0
    %2960 = vmatpush1.msra.mxu0 0.0
    %2961 = vmatprep.subr.mxu0 0.0
    %2962 = vmatpush1.msra.mxu0 0.0
    %2963 = vmatprep.subr.mxu0 0.0
    %2964 = vmatpush1.msra.mxu0 0.0
    %2965 = vmatprep.subr.mxu0 0.0
    %2966 = vmatpush1.msra.mxu0 0.0
    %2967 = vmatprep.subr.mxu0 0.0
    %2968 = vmatpush1.msra.mxu0 0.0
    %2969 = vmatprep.subr.mxu0 0.0
    %2970 = vmatpush1.msra.mxu0 0.0
    %2971 = vmatprep.subr.mxu0 0.0
    %2972 = vmatpush1.msra.mxu0 0.0
    %2973 = vmatprep.subr.mxu0 0.0
    %2974 = vmatpush1.msra.mxu0 0.0
    %2975 = vmatprep.subr.mxu0 0.0
    %2976 = vmatpush1.msra.mxu0 0.0
    %2977 = vmatprep.subr.mxu0 0.0
    %2978 = vmatpush1.msra.mxu0 0.0
    %2979 = vmatprep.subr.mxu0 0.0
    %2980 = vmatpush1.msra.mxu0 0.0
    %2981 = vmatprep.subr.mxu0 0.0
    %2982 = vmatpush1.msra.mxu0 0.0
    %2983 = vmatprep.subr.mxu0 0.0
    %2984 = vmatpush1.msra.mxu0 0.0
    %2985 = vmatprep.subr.mxu0 0.0
    %2986 = vmatpush1.msra.mxu0 0.0
    %2987 = vmatprep.subr.mxu0 0.0
    %2988 = vmatpush1.msra.mxu0 0.0
    %2989 = vmatprep.subr.mxu0 0.0
    %2990 = vmatpush1.msra.mxu0 0.0
    %2991 = vmatprep.subr.mxu0 0.0
    %2992 = vmatpush1.msra.mxu0 0.0
    %2993 = vmatprep.subr.mxu0 0.0
    %2994 = vmatpush1.msra.mxu0 0.0
    %2995 = vmatprep.subr.mxu0 0.0
    %2996 = vmatpush1.msra.mxu0 0.0
    %2997 = vmatprep.subr.mxu0 0.0
    %2998 = vmatpush1.msra.mxu0 0.0
    %2999 = vmatprep.subr.mxu0 0.0
    %3000 = vmatpush1.msra.mxu0 0.0
    %3001 = vmatprep.subr.mxu0 0.0
    %3002 = vmatpush1.msra.mxu0 0.0
    %3003 = vmatprep.subr.mxu0 0.0
    %3004 = vmatpush1.msra.mxu0 0.0
    %3005 = vmatprep.subr.mxu0 0.0
    %3006 = vmatpush1.msra.mxu0 0.0
    %3007 = vmatprep.subr.mxu0 0.0
    %3008 = vmatpush1.msra.mxu0 0.0
    %3009 = vmatprep.subr.mxu0 0.0
    %3010 = vmatpush1.msra.mxu0 0.0
    %3011 = vmatprep.mubr.f32.mxu0 0.0
    %3012 = vmatmul.mubr.f32.gmra.mrb[0].mxu0 %v2945
    %v3013 = vpop.f32.mrb[0].mxu0
    %v3014 = vadd.f32 %v995, %v3013
    %v3015 = vpop.f32.mrb[0].mxu0
    %3016 = vdwg.mxu0
    %v3018 = vrot.slane %v3014, 2
    %v3019 = vrot.slane %v3014, 3
    %v3020 = vrot.slane %v3014, 4
    %v3021 = vrot.slane %v3014, 5
    %v3022 = vrot.slane %v3014, 6
    %v3023 = vrot.slane %v3014, 7
    %v3024 = vrot.slane %v3014, 1
    %v3033 = vadd.f32 %v948, %v3018
    %v3034 = vadd.f32 %v953, %v3019
    %v3035 = vadd.f32 %v958, %v3020
    %v3036 = vadd.f32 %v963, %v3021
    %v3037 = vadd.f32 %v968, %v3022
    %v3038 = vadd.f32 %v973, %v3023
    %v3039 = vadd.f32 %v978, %v3014
    %v3040 = vadd.f32 %v983, %v3024
    %v3041 = vxor.u32 %v3033, 2147483648
    %v3042 = vxor.u32 %v3034, 2147483648
    %v3043 = vxor.u32 %v3035, 2147483648
    %v3044 = vxor.u32 %v3036, 2147483648
    %v3045 = vxor.u32 %v3037, 2147483648
    %v3046 = vxor.u32 %v3038, 2147483648
    %v3047 = vxor.u32 %v3039, 2147483648
    %v3048 = vxor.u32 %v3040, 2147483648
    %v3049 = vmul.f32 %v3041, 1.442695
    %v3050 = vpow.pop %v3049
    %v3051 = vmul.f32 %v3042, 1.442695
    %v3052 = vpow.pop %v3051
    %v3053 = vmul.f32 %v3043, 1.442695
    %v3054 = vpow.pop %v3053
    %v3055 = vmul.f32 %v3044, 1.442695
    %v3056 = vpow.pop %v3055
    %v3057 = vmul.f32 %v3045, 1.442695
    %v3058 = vpow.pop %v3057
    %v3059 = vmul.f32 %v3046, 1.442695
    %v3060 = vpow.pop %v3059
    %v3061 = vmul.f32 %v3047, 1.442695
    %v3062 = vpow.pop %v3061
    %v3063 = vmul.f32 %v3048, 1.442695
    %v3064 = vpow.pop %v3063
    %v3065 = vadd.f32 %v3050, 1.0
    %v3066 = vadd.f32 %v3052, 1.0
    %v3067 = vadd.f32 %v3054, 1.0
    %v3068 = vadd.f32 %v3056, 1.0
    %v3069 = vadd.f32 %v3058, 1.0
    %v3070 = vadd.f32 %v3060, 1.0
    %v3071 = vadd.f32 %v3062, 1.0
    %v3072 = vadd.f32 %v3064, 1.0
    %v3073 = vrcp.pop %v3065
    %v3074 = vmul.f32 1.0, %v3073
    %v3075 = vrcp.pop %v3066
    %v3076 = vmul.f32 1.0, %v3075
    %v3077 = vrcp.pop %v3067
    %v3078 = vmul.f32 1.0, %v3077
    %v3079 = vrcp.pop %v3068
    %v3080 = vmul.f32 1.0, %v3079
    %v3081 = vrcp.pop %v3069
    %v3082 = vmul.f32 1.0, %v3081
    %v3083 = vrcp.pop %v3070
    %v3084 = vmul.f32 1.0, %v3083
    %v3085 = vrcp.pop %v3071
    %v3086 = vmul.f32 1.0, %v3085
    %v3087 = vrcp.pop %v3072
    %v3088 = vmul.f32 1.0, %v3087
    %3089 = vrot.lane.b32.xlu0 %v3018, 64
    %v3090 = vpop.permute.xlu0 %3089
    %3091 = vrot.lane.b32.xlu0 %v3019, 64
    %v3092 = vpop.permute.xlu0 %3091
    %3093 = vrot.lane.b32.xlu0 %v3020, 64
    %v3094 = vpop.permute.xlu0 %3093
    %3095 = vrot.lane.b32.xlu0 %v3021, 64
    %v3096 = vpop.permute.xlu0 %3095
    %3097 = vrot.lane.b32.xlu0 %v3022, 64
    %v3098 = vpop.permute.xlu0 %3097
    %3099 = vrot.lane.b32.xlu0 %v3023, 64
    %v3100 = vpop.permute.xlu0 %3099
    %3101 = vrot.lane.b32.xlu0 %v3014, 64
    %v3102 = vpop.permute.xlu0 %3101
    %3103 = vrot.lane.b32.xlu0 %v3024, 64
    %v3104 = vpop.permute.xlu0 %3103
    %v3113 = vmul.f32 %v3074, %v3090
    %v3114 = vmul.f32 %v3076, %v3092
    %v3115 = vmul.f32 %v3078, %v3094
    %v3116 = vmul.f32 %v3080, %v3096
    %v3117 = vmul.f32 %v3082, %v3098
    %v3118 = vmul.f32 %v3084, %v3100
    %v3119 = vmul.f32 %v3086, %v3102
    %v3120 = vmul.f32 %v3088, %v3104
    %3129 = vrot.lane.b32.xlu0 %v3113, 64
    %v3130 = vpop.permute.xlu0 %3129
    %3131 = vrot.lane.b32.xlu0 %v3114, 64
    %v3132 = vpop.permute.xlu0 %3131
    %3133 = vrot.lane.b32.xlu0 %v3115, 64
    %v3134 = vpop.permute.xlu0 %3133
    %3135 = vrot.lane.b32.xlu0 %v3116, 64
    %v3136 = vpop.permute.xlu0 %3135
    %3137 = vrot.lane.b32.xlu0 %v3117, 64
    %v3138 = vpop.permute.xlu0 %3137
    %3139 = vrot.lane.b32.xlu0 %v3118, 64
    %v3140 = vpop.permute.xlu0 %3139
    %3141 = vrot.lane.b32.xlu0 %v3119, 64
    %v3142 = vpop.permute.xlu0 %3141
    %3143 = vrot.lane.b32.xlu0 %v3120, 64
    %v3144 = vpop.permute.xlu0 %3143
    %v3153 = vadd.f32 %v948, %v3130
    %v3154 = vadd.f32 %v953, %v3132
    %v3155 = vadd.f32 %v958, %v3134
    %v3156 = vadd.f32 %v963, %v3136
    %v3157 = vadd.f32 %v968, %v3138
    %v3158 = vadd.f32 %v973, %v3140
    %v3159 = vadd.f32 %v978, %v3142
    %v3160 = vadd.f32 %v983, %v3144
    %v3161 = vtanh.pop %v3153
    %v3162 = vtanh.pop %v3154
    %v3163 = vtanh.pop %v3155
    %v3164 = vtanh.pop %v3156
    %v3165 = vtanh.pop %v3157
    %v3166 = vtanh.pop %v3158
    %v3167 = vtanh.pop %v3159
    %v3168 = vtanh.pop %v3160
    %v3169 = vsub.f32 1.0, %v3074
    %v3170 = vsub.f32 1.0, %v3076
    %v3171 = vsub.f32 1.0, %v3078
    %v3172 = vsub.f32 1.0, %v3080
    %v3173 = vsub.f32 1.0, %v3082
    %v3174 = vsub.f32 1.0, %v3084
    %v3175 = vsub.f32 1.0, %v3086
    %v3176 = vsub.f32 1.0, %v3088
    %3185 = vrot.lane.b32.xlu0 %v3161, 96
    %v3186 = vpop.permute.xlu0 %3185
    %3187 = vrot.lane.b32.xlu0 %v3162, 96
    %v3188 = vpop.permute.xlu0 %3187
    %3189 = vrot.lane.b32.xlu0 %v3163, 96
    %v3190 = vpop.permute.xlu0 %3189
    %3191 = vrot.lane.b32.xlu0 %v3164, 96
    %v3192 = vpop.permute.xlu0 %3191
    %3193 = vrot.lane.b32.xlu0 %v3165, 96
    %v3194 = vpop.permute.xlu0 %3193
    %3195 = vrot.lane.b32.xlu0 %v3166, 96
    %v3196 = vpop.permute.xlu0 %3195
    %3197 = vrot.lane.b32.xlu0 %v3167, 96
    %v3198 = vpop.permute.xlu0 %3197
    %3199 = vrot.lane.b32.xlu0 %v3168, 96
    %v3200 = vpop.permute.xlu0 %3199
    %v3209 = vmul.f32 %v3169, %v3186
    %v3210 = vmul.f32 %v3170, %v3188
    %v3211 = vmul.f32 %v3171, %v3190
    %v3212 = vmul.f32 %v3172, %v3192
    %v3213 = vmul.f32 %v3173, %v3194
    %v3214 = vmul.f32 %v3174, %v3196
    %v3215 = vmul.f32 %v3175, %v3198
    %v3216 = vmul.f32 %v3176, %v3200
    %v3217 = vrot.slane %v2913, 7
    %v3218 = vrot.slane %v2914, 7
    %v3219 = vrot.slane %v2915, 7
    %v3220 = vrot.slane %v2916, 7
    %v3221 = vrot.slane %v2917, 7
    %v3222 = vrot.slane %v2918, 7
    %v3223 = vrot.slane %v2920, 7
    %v3232 = vmul.f32 %v3074, %v3217
    %v3233 = vmul.f32 %v3076, %v3218
    %v3234 = vmul.f32 %v3078, %v3219
    %v3235 = vmul.f32 %v3080, %v3220
    %v3236 = vmul.f32 %v3082, %v3221
    %v3237 = vmul.f32 %v3084, %v3222
    %v3238 = vmul.f32 %v3086, %v2939
    %v3239 = vmul.f32 %v3088, %v3223
    %v3240 = vadd.f32 %v3209, %v3232
    %v3241 = vadd.f32 %v3210, %v3233
    %v3242 = vadd.f32 %v3211, %v3234
    %v3243 = vadd.f32 %v3212, %v3235
    %v3244 = vadd.f32 %v3213, %v3236
    %v3245 = vadd.f32 %v3214, %v3237
    %v3246 = vadd.f32 %v3215, %v3238
    %v3247 = vadd.f32 %v3216, %v3239
    %v3256 = vrot.slane %v3240, 6
    %v3257 = vrot.slane %v3241, 5
    %v3258 = vsel %vm816, %v3257, %v3256
    %v3259 = vrot.slane %v3242, 4
    %v3260 = vsel %vm818, %v3259, %v3258
    %v3261 = vrot.slane %v3243, 3
    %v3262 = vsel %vm820, %v3261, %v3260
    %v3263 = vrot.slane %v3244, 2
    %v3264 = vsel %vm822, %v3263, %v3262
    %v3265 = vrot.slane %v3245, 1
    %v3266 = vsel %vm824, %v3265, %v3264
    %v3267 = vsel %vm826, %v3246, %v3266
    %v3268 = vrot.slane %v3247, 7
    %v3269 = vsel %vm828, %v3268, %v3267
    %3270 = vrot.lane.b32.xlu0 %v3269, 96
    %v3271 = vpop.permute.xlu0 %3270
    %v3272 = vsel %vm520, %v3271, 0
    %3274 = vmatprep.subr.mxu0 0.0
    %3275 = vmatpush1.msra.mxu0 %v986
    %3276 = vmatprep.subr.mxu0 0.0
    %3277 = vmatpush1.msra.mxu0 %v987
    %3278 = vmatprep.subr.mxu0 0.0
    %3279 = vmatpush1.msra.mxu0 %v988
    %3280 = vmatprep.subr.mxu0 0.0
    %3281 = vmatpush1.msra.mxu0 %v989
    %3282 = vmatprep.subr.mxu0 0.0
    %3283 = vmatpush1.msra.mxu0 0.0
    %3284 = vmatprep.subr.mxu0 0.0
    %3285 = vmatpush1.msra.mxu0 0.0
    %3286 = vmatprep.subr.mxu0 0.0
    %3287 = vmatpush1.msra.mxu0 0.0
    %3288 = vmatprep.subr.mxu0 0.0
    %3289 = vmatpush1.msra.mxu0 0.0
    %3290 = vmatprep.subr.mxu0 0.0
    %3291 = vmatpush1.msra.mxu0 0.0
    %3292 = vmatprep.subr.mxu0 0.0
    %3293 = vmatpush1.msra.mxu0 0.0
    %3294 = vmatprep.subr.mxu0 0.0
    %3295 = vmatpush1.msra.mxu0 0.0
    %3296 = vmatprep.subr.mxu0 0.0
    %3297 = vmatpush1.msra.mxu0 0.0
    %3298 = vmatprep.subr.mxu0 0.0
    %3299 = vmatpush1.msra.mxu0 0.0
    %3300 = vmatprep.subr.mxu0 0.0
    %3301 = vmatpush1.msra.mxu0 0.0
    %3302 = vmatprep.subr.mxu0 0.0
    %3303 = vmatpush1.msra.mxu0 0.0
    %3304 = vmatprep.subr.mxu0 0.0
    %3305 = vmatpush1.msra.mxu0 0.0
    %3306 = vmatprep.subr.mxu0 0.0
    %3307 = vmatpush1.msra.mxu0 0.0
    %3308 = vmatprep.subr.mxu0 0.0
    %3309 = vmatpush1.msra.mxu0 0.0
    %3310 = vmatprep.subr.mxu0 0.0
    %3311 = vmatpush1.msra.mxu0 0.0
    %3312 = vmatprep.subr.mxu0 0.0
    %3313 = vmatpush1.msra.mxu0 0.0
    %3314 = vmatprep.subr.mxu0 0.0
    %3315 = vmatpush1.msra.mxu0 0.0
    %3316 = vmatprep.subr.mxu0 0.0
    %3317 = vmatpush1.msra.mxu0 0.0
    %3318 = vmatprep.subr.mxu0 0.0
    %3319 = vmatpush1.msra.mxu0 0.0
    %3320 = vmatprep.subr.mxu0 0.0
    %3321 = vmatpush1.msra.mxu0 0.0
    %3322 = vmatprep.subr.mxu0 0.0
    %3323 = vmatpush1.msra.mxu0 0.0
    %3324 = vmatprep.subr.mxu0 0.0
    %3325 = vmatpush1.msra.mxu0 0.0
    %3326 = vmatprep.subr.mxu0 0.0
    %3327 = vmatpush1.msra.mxu0 0.0
    %3328 = vmatprep.subr.mxu0 0.0
    %3329 = vmatpush1.msra.mxu0 0.0
    %3330 = vmatprep.subr.mxu0 0.0
    %3331 = vmatpush1.msra.mxu0 0.0
    %3332 = vmatprep.subr.mxu0 0.0
    %3333 = vmatpush1.msra.mxu0 0.0
    %3334 = vmatprep.subr.mxu0 0.0
    %3335 = vmatpush1.msra.mxu0 0.0
    %3336 = vmatprep.subr.mxu0 0.0
    %3337 = vmatpush1.msra.mxu0 0.0
    %3338 = vmatprep.mubr.f32.mxu0 0.0
    %3339 = vmatmul.mubr.f32.gmra.mrb[0].mxu0 %v3272
    %v3340 = vpop.f32.mrb[0].mxu0
    %v3341 = vadd.f32 %v995, %v3340
    %v3342 = vpop.f32.mrb[0].mxu0
    %3343 = vdwg.mxu0
    %v3345 = vrot.slane %v3341, 1
    %v3346 = vrot.slane %v3341, 2
    %v3347 = vrot.slane %v3341, 3
    %v3348 = vrot.slane %v3341, 4
    %v3349 = vrot.slane %v3341, 5
    %v3350 = vrot.slane %v3341, 6
    %v3351 = vrot.slane %v3341, 7
    %v3360 = vadd.f32 %v948, %v3345
    %v3361 = vadd.f32 %v953, %v3346
    %v3362 = vadd.f32 %v958, %v3347
    %v3363 = vadd.f32 %v963, %v3348
    %v3364 = vadd.f32 %v968, %v3349
    %v3365 = vadd.f32 %v973, %v3350
    %v3366 = vadd.f32 %v978, %v3351
    %v3367 = vadd.f32 %v983, %v3341
    %v3368 = vxor.u32 %v3360, 2147483648
    %v3369 = vxor.u32 %v3361, 2147483648
    %v3370 = vxor.u32 %v3362, 2147483648
    %v3371 = vxor.u32 %v3363, 2147483648
    %v3372 = vxor.u32 %v3364, 2147483648
    %v3373 = vxor.u32 %v3365, 2147483648
    %v3374 = vxor.u32 %v3366, 2147483648
    %v3375 = vxor.u32 %v3367, 2147483648
    %v3376 = vmul.f32 %v3368, 1.442695
    %v3377 = vpow.pop %v3376
    %v3378 = vmul.f32 %v3369, 1.442695
    %v3379 = vpow.pop %v3378
    %v3380 = vmul.f32 %v3370, 1.442695
    %v3381 = vpow.pop %v3380
    %v3382 = vmul.f32 %v3371, 1.442695
    %v3383 = vpow.pop %v3382
    %v3384 = vmul.f32 %v3372, 1.442695
    %v3385 = vpow.pop %v3384
    %v3386 = vmul.f32 %v3373, 1.442695
    %v3387 = vpow.pop %v3386
    %v3388 = vmul.f32 %v3374, 1.442695
    %v3389 = vpow.pop %v3388
    %v3390 = vmul.f32 %v3375, 1.442695
    %v3391 = vpow.pop %v3390
    %v3392 = vadd.f32 %v3377, 1.0
    %v3393 = vadd.f32 %v3379, 1.0
    %v3394 = vadd.f32 %v3381, 1.0
    %v3395 = vadd.f32 %v3383, 1.0
    %v3396 = vadd.f32 %v3385, 1.0
    %v3397 = vadd.f32 %v3387, 1.0
    %v3398 = vadd.f32 %v3389, 1.0
    %v3399 = vadd.f32 %v3391, 1.0
    %v3400 = vrcp.pop %v3392
    %v3401 = vmul.f32 1.0, %v3400
    %v3402 = vrcp.pop %v3393
    %v3403 = vmul.f32 1.0, %v3402
    %v3404 = vrcp.pop %v3394
    %v3405 = vmul.f32 1.0, %v3404
    %v3406 = vrcp.pop %v3395
    %v3407 = vmul.f32 1.0, %v3406
    %v3408 = vrcp.pop %v3396
    %v3409 = vmul.f32 1.0, %v3408
    %v3410 = vrcp.pop %v3397
    %v3411 = vmul.f32 1.0, %v3410
    %v3412 = vrcp.pop %v3398
    %v3413 = vmul.f32 1.0, %v3412
    %v3414 = vrcp.pop %v3399
    %v3415 = vmul.f32 1.0, %v3414
    %3416 = vrot.lane.b32.xlu0 %v3345, 64
    %v3417 = vpop.permute.xlu0 %3416
    %3418 = vrot.lane.b32.xlu0 %v3346, 64
    %v3419 = vpop.permute.xlu0 %3418
    %3420 = vrot.lane.b32.xlu0 %v3347, 64
    %v3421 = vpop.permute.xlu0 %3420
    %3422 = vrot.lane.b32.xlu0 %v3348, 64
    %v3423 = vpop.permute.xlu0 %3422
    %3424 = vrot.lane.b32.xlu0 %v3349, 64
    %v3425 = vpop.permute.xlu0 %3424
    %3426 = vrot.lane.b32.xlu0 %v3350, 64
    %v3427 = vpop.permute.xlu0 %3426
    %3428 = vrot.lane.b32.xlu0 %v3351, 64
    %v3429 = vpop.permute.xlu0 %3428
    %3430 = vrot.lane.b32.xlu0 %v3341, 64
    %v3431 = vpop.permute.xlu0 %3430
    %v3440 = vmul.f32 %v3401, %v3417
    %v3441 = vmul.f32 %v3403, %v3419
    %v3442 = vmul.f32 %v3405, %v3421
    %v3443 = vmul.f32 %v3407, %v3423
    %v3444 = vmul.f32 %v3409, %v3425
    %v3445 = vmul.f32 %v3411, %v3427
    %v3446 = vmul.f32 %v3413, %v3429
    %v3447 = vmul.f32 %v3415, %v3431
    %3456 = vrot.lane.b32.xlu0 %v3440, 64
    %v3457 = vpop.permute.xlu0 %3456
    %3458 = vrot.lane.b32.xlu0 %v3441, 64
    %v3459 = vpop.permute.xlu0 %3458
    %3460 = vrot.lane.b32.xlu0 %v3442, 64
    %v3461 = vpop.permute.xlu0 %3460
    %3462 = vrot.lane.b32.xlu0 %v3443, 64
    %v3463 = vpop.permute.xlu0 %3462
    %3464 = vrot.lane.b32.xlu0 %v3444, 64
    %v3465 = vpop.permute.xlu0 %3464
    %3466 = vrot.lane.b32.xlu0 %v3445, 64
    %v3467 = vpop.permute.xlu0 %3466
    %3468 = vrot.lane.b32.xlu0 %v3446, 64
    %v3469 = vpop.permute.xlu0 %3468
    %3470 = vrot.lane.b32.xlu0 %v3447, 64
    %v3471 = vpop.permute.xlu0 %3470
    %v3480 = vadd.f32 %v948, %v3457
    %v3481 = vadd.f32 %v953, %v3459
    %v3482 = vadd.f32 %v958, %v3461
    %v3483 = vadd.f32 %v963, %v3463
    %v3484 = vadd.f32 %v968, %v3465
    %v3485 = vadd.f32 %v973, %v3467
    %v3486 = vadd.f32 %v978, %v3469
    %v3487 = vadd.f32 %v983, %v3471
    %v3488 = vtanh.pop %v3480
    %v3489 = vtanh.pop %v3481
    %v3490 = vtanh.pop %v3482
    %v3491 = vtanh.pop %v3483
    %v3492 = vtanh.pop %v3484
    %v3493 = vtanh.pop %v3485
    %v3494 = vtanh.pop %v3486
    %v3495 = vtanh.pop %v3487
    %v3496 = vsub.f32 1.0, %v3401
    %v3497 = vsub.f32 1.0, %v3403
    %v3498 = vsub.f32 1.0, %v3405
    %v3499 = vsub.f32 1.0, %v3407
    %v3500 = vsub.f32 1.0, %v3409
    %v3501 = vsub.f32 1.0, %v3411
    %v3502 = vsub.f32 1.0, %v3413
    %v3503 = vsub.f32 1.0, %v3415
    %3512 = vrot.lane.b32.xlu0 %v3488, 96
    %v3513 = vpop.permute.xlu0 %3512
    %3514 = vrot.lane.b32.xlu0 %v3489, 96
    %v3515 = vpop.permute.xlu0 %3514
    %3516 = vrot.lane.b32.xlu0 %v3490, 96
    %v3517 = vpop.permute.xlu0 %3516
    %3518 = vrot.lane.b32.xlu0 %v3491, 96
    %v3519 = vpop.permute.xlu0 %3518
    %3520 = vrot.lane.b32.xlu0 %v3492, 96
    %v3521 = vpop.permute.xlu0 %3520
    %3522 = vrot.lane.b32.xlu0 %v3493, 96
    %v3523 = vpop.permute.xlu0 %3522
    %3524 = vrot.lane.b32.xlu0 %v3494, 96
    %v3525 = vpop.permute.xlu0 %3524
    %3526 = vrot.lane.b32.xlu0 %v3495, 96
    %v3527 = vpop.permute.xlu0 %3526
    %v3536 = vmul.f32 %v3496, %v3513
    %v3537 = vmul.f32 %v3497, %v3515
    %v3538 = vmul.f32 %v3498, %v3517
    %v3539 = vmul.f32 %v3499, %v3519
    %v3540 = vmul.f32 %v3500, %v3521
    %v3541 = vmul.f32 %v3501, %v3523
    %v3542 = vmul.f32 %v3502, %v3525
    %v3543 = vmul.f32 %v3503, %v3527
    %v3544 = vrot.slane %v3240, 7
    %v3545 = vrot.slane %v3241, 7
    %v3546 = vrot.slane %v3242, 7
    %v3547 = vrot.slane %v3243, 7
    %v3548 = vrot.slane %v3244, 7
    %v3549 = vrot.slane %v3245, 7
    %v3550 = vrot.slane %v3246, 7
    %v3559 = vmul.f32 %v3401, %v3544
    %v3560 = vmul.f32 %v3403, %v3545
    %v3561 = vmul.f32 %v3405, %v3546
    %v3562 = vmul.f32 %v3407, %v3547
    %v3563 = vmul.f32 %v3409, %v3548
    %v3564 = vmul.f32 %v3411, %v3549
    %v3565 = vmul.f32 %v3413, %v3550
    %v3566 = vmul.f32 %v3415, %v3268
    %v3567 = vadd.f32 %v3536, %v3559
    %v3568 = vadd.f32 %v3537, %v3560
    %v3569 = vadd.f32 %v3538, %v3561
    %v3570 = vadd.f32 %v3539, %v3562
    %v3571 = vadd.f32 %v3540, %v3563
    %v3572 = vadd.f32 %v3541, %v3564
    %v3573 = vadd.f32 %v3542, %v3565
    %v3574 = vadd.f32 %v3543, %v3566
    %v3583 = vrot.slane %v3567, 7
    %v3584 = vrot.slane %v3568, 6
    %v3585 = vsel %vm816, %v3584, %v3583
    %v3586 = vrot.slane %v3569, 5
    %v3587 = vsel %vm818, %v3586, %v3585
    %v3588 = vrot.slane %v3570, 4
    %v3589 = vsel %vm820, %v3588, %v3587
    %v3590 = vrot.slane %v3571, 3
    %v3591 = vsel %vm822, %v3590, %v3589
    %v3592 = vrot.slane %v3572, 2
    %v3593 = vsel %vm824, %v3592, %v3591
    %v3594 = vrot.slane %v3573, 1
    %v3595 = vsel %vm826, %v3594, %v3593
    %v3596 = vsel %vm828, %v3574, %v3595
    %3597 = vrot.lane.b32.xlu0 %v3596, 32
    %v3598 = vpop.permute.xlu0 %3597
    %vm3600 = vcmask 523264
    %v3601 = vsel %vm3600, %v849, %v3598
    %v3602 = vlaneseq
    %v3603 = vshrl.u32 %v3602, 7
    %v3604 = vsub.s32 0, %v3603
    %v3605 = vrot.slane %v164, %v3604
    %v3606 = vld [vmem:[%s11] sm:$0xff]
    %v3607 = vld [vmem:[%s11 + $0x8] sm:$0xff]
    %v3608 = vld [vmem:[%s11 + $0x10] sm:$0xff]
    %v3609 = vld [vmem:[%s11 + $0x18] sm:$0xff]
    %v3610 = vld [vmem:[%s11 + $0x20] sm:$0xff]
    %v3611 = vld [vmem:[%s11 + $0x28] sm:$0xff]
    %v3612 = vld [vmem:[%s11 + $0x30] sm:$0xff]
    %v3613 = vld [vmem:[%s11 + $0x38] sm:$0xff]
    %v3614 = vld [vmem:[%s11 + $0x40] sm:$0xff]
    %v3615 = vld [vmem:[%s11 + $0x48] sm:$0xff]
    %v3616 = vld [vmem:[%s11 + $0x50] sm:$0xff]
    %v3617 = vld [vmem:[%s11 + $0x58] sm:$0xff]
    %v3618 = vld [vmem:[%s11 + $0x60] sm:$0xff]
    %v3619 = vld [vmem:[%s11 + $0x68] sm:$0xff]
    %v3620 = vld [vmem:[%s11 + $0x70] sm:$0xff]
    %v3621 = vld [vmem:[%s11 + $0x78] sm:$0xff]
    %v3622 = vld [vmem:[%s11 + $0x80] sm:$0xff]
    %v3623 = vld [vmem:[%s11 + $0x88] sm:$0xff]
    %v3624 = vld [vmem:[%s11 + $0x90] sm:$0xff]
    %v3625 = vld [vmem:[%s11 + $0x98] sm:$0xff]
    %v3626 = vld [vmem:[%s11 + $0xa0] sm:$0xff]
    %v3627 = vld [vmem:[%s11 + $0xa8] sm:$0xff]
    %v3628 = vld [vmem:[%s11 + $0xb0] sm:$0xff]
    %v3629 = vld [vmem:[%s11 + $0xb8] sm:$0xff]
    %v3630 = vld [vmem:[%s12] sm:$0xff]
    %v3631 = vld [vmem:[%s12 + $0x8] sm:$0xff]
    %v3632 = vld [vmem:[%s12 + $0x10] sm:$0xff]
    %v3633 = vld [vmem:[%s12 + $0x18] sm:$0xff]
    %v3634 = vld [vmem:[%s12 + $0x20] sm:$0xff]
    %v3635 = vld [vmem:[%s12 + $0x28] sm:$0xff]
    %v3636 = vld [vmem:[%s12 + $0x30] sm:$0xff]
    %v3637 = vld [vmem:[%s12 + $0x38] sm:$0xff]
    %v3638 = vld [vmem:[%s12 + $0x40] sm:$0xff]
    %v3639 = vld [vmem:[%s12 + $0x48] sm:$0xff]
    %v3640 = vld [vmem:[%s12 + $0x50] sm:$0xff]
    %v3641 = vld [vmem:[%s12 + $0x58] sm:$0xff]
    %v3642 = vld [vmem:[%s12 + $0x60] sm:$0xff]
    %v3643 = vld [vmem:[%s12 + $0x68] sm:$0xff]
    %v3644 = vld [vmem:[%s12 + $0x70] sm:$0xff]
    %v3645 = vld [vmem:[%s12 + $0x78] sm:$0xff]
    %v3647 = vsel %vm3600, %v3605, 0
    %3649 = vmatprep.subr.mxu0 %v3631
    %3650 = vmatpush1.msra.mxu0 %v3630
    %3651 = vmatprep.subr.mxu0 %v3633
    %3652 = vmatpush1.msra.mxu0 %v3632
    %3653 = vmatprep.subr.mxu0 %v3635
    %3654 = vmatpush1.msra.mxu0 %v3634
    %3655 = vmatprep.subr.mxu0 %v3637
    %3656 = vmatpush1.msra.mxu0 %v3636
    %3657 = vmatprep.subr.mxu0 %v3639
    %3658 = vmatpush1.msra.mxu0 %v3638
    %3659 = vmatprep.subr.mxu0 %v3641
    %3660 = vmatpush1.msra.mxu0 %v3640
    %3661 = vmatprep.subr.mxu0 %v3643
    %3662 = vmatpush1.msra.mxu0 %v3642
    %3663 = vmatprep.subr.mxu0 %v3645
    %3664 = vmatpush1.msra.mxu0 %v3644
    %3665 = vmatprep.subr.mxu0 0.0
    %3666 = vmatpush1.msra.mxu0 0.0
    %3667 = vmatprep.subr.mxu0 0.0
    %3668 = vmatpush1.msra.mxu0 0.0
    %3669 = vmatprep.subr.mxu0 0.0
    %3670 = vmatpush1.msra.mxu0 0.0
    %3671 = vmatprep.subr.mxu0 0.0
    %3672 = vmatpush1.msra.mxu0 0.0
    %3673 = vmatprep.subr.mxu0 0.0
    %3674 = vmatpush1.msra.mxu0 0.0
    %3675 = vmatprep.subr.mxu0 0.0
    %3676 = vmatpush1.msra.mxu0 0.0
    %3677 = vmatprep.subr.mxu0 0.0
    %3678 = vmatpush1.msra.mxu0 0.0
    %3679 = vmatprep.subr.mxu0 0.0
    %3680 = vmatpush1.msra.mxu0 0.0
    %3681 = vmatprep.subr.mxu0 0.0
    %3682 = vmatpush1.msra.mxu0 0.0
    %3683 = vmatprep.subr.mxu0 0.0
    %3684 = vmatpush1.msra.mxu0 0.0
    %3685 = vmatprep.subr.mxu0 0.0
    %3686 = vmatpush1.msra.mxu0 0.0
    %3687 = vmatprep.subr.mxu0 0.0
    %3688 = vmatpush1.msra.mxu0 0.0
    %3689 = vmatprep.subr.mxu0 0.0
    %3690 = vmatpush1.msra.mxu0 0.0
    %3691 = vmatprep.subr.mxu0 0.0
    %3692 = vmatpush1.msra.mxu0 0.0
    %3693 = vmatprep.subr.mxu0 0.0
    %3694 = vmatpush1.msra.mxu0 0.0
    %3695 = vmatprep.subr.mxu0 0.0
    %3696 = vmatpush1.msra.mxu0 0.0
    %3697 = vmatprep.subr.mxu0 0.0
    %3698 = vmatpush1.msra.mxu0 0.0
    %3699 = vmatprep.subr.mxu0 0.0
    %3700 = vmatpush1.msra.mxu0 0.0
    %3701 = vmatprep.subr.mxu0 0.0
    %3702 = vmatpush1.msra.mxu0 0.0
    %3703 = vmatprep.subr.mxu0 0.0
    %3704 = vmatpush1.msra.mxu0 0.0
    %3705 = vmatprep.subr.mxu0 0.0
    %3706 = vmatpush1.msra.mxu0 0.0
    %3707 = vmatprep.subr.mxu0 0.0
    %3708 = vmatpush1.msra.mxu0 0.0
    %3709 = vmatprep.subr.mxu0 0.0
    %3710 = vmatpush1.msra.mxu0 0.0
    %3711 = vmatprep.subr.mxu0 0.0
    %3712 = vmatpush1.msra.mxu0 0.0
    %3713 = vmatprep.mubr.f32.mxu0 0.0
    %3714 = vmatmul.mubr.f32.gmra.mrb[0].mxu0 %v3647
    %v3715 = vpop.f32.mrb[0].mxu0
    %v3716 = vadd.f32 0.0, %v3715
    %v3717 = vpop.f32.mrb[0].mxu0
    %v3718 = vadd.f32 0.0, %v3717
    %3719 = vdwg.mxu0
    %vm3720 = vcmask 785408
    %v3722 = vsel %vm3720, %v3601, 0
    %3724 = vmatprep.subr.mxu0 %v3607
    %3725 = vmatpush1.msra.mxu0 %v3606
    %3726 = vmatprep.subr.mxu0 %v3609
    %3727 = vmatpush1.msra.mxu0 %v3608
    %3728 = vmatprep.subr.mxu0 %v3611
    %3729 = vmatpush1.msra.mxu0 %v3610
    %3730 = vmatprep.subr.mxu0 %v3613
    %3731 = vmatpush1.msra.mxu0 %v3612
    %3732 = vmatprep.subr.mxu0 %v3615
    %3733 = vmatpush1.msra.mxu0 %v3614
    %3734 = vmatprep.subr.mxu0 %v3617
    %3735 = vmatpush1.msra.mxu0 %v3616
    %3736 = vmatprep.subr.mxu0 %v3619
    %3737 = vmatpush1.msra.mxu0 %v3618
    %3738 = vmatprep.subr.mxu0 %v3621
    %3739 = vmatpush1.msra.mxu0 %v3620
    %3740 = vmatprep.subr.mxu0 %v3623
    %3741 = vmatpush1.msra.mxu0 %v3622
    %3742 = vmatprep.subr.mxu0 %v3625
    %3743 = vmatpush1.msra.mxu0 %v3624
    %3744 = vmatprep.subr.mxu0 %v3627
    %3745 = vmatpush1.msra.mxu0 %v3626
    %3746 = vmatprep.subr.mxu0 %v3629
    %3747 = vmatpush1.msra.mxu0 %v3628
    %3748 = vmatprep.subr.mxu0 0.0
    %3749 = vmatpush1.msra.mxu0 0.0
    %3750 = vmatprep.subr.mxu0 0.0
    %3751 = vmatpush1.msra.mxu0 0.0
    %3752 = vmatprep.subr.mxu0 0.0
    %3753 = vmatpush1.msra.mxu0 0.0
    %3754 = vmatprep.subr.mxu0 0.0
    %3755 = vmatpush1.msra.mxu0 0.0
    %3756 = vmatprep.subr.mxu0 0.0
    %3757 = vmatpush1.msra.mxu0 0.0
    %3758 = vmatprep.subr.mxu0 0.0
    %3759 = vmatpush1.msra.mxu0 0.0
    %3760 = vmatprep.subr.mxu0 0.0
    %3761 = vmatpush1.msra.mxu0 0.0
    %3762 = vmatprep.subr.mxu0 0.0
    %3763 = vmatpush1.msra.mxu0 0.0
    %3764 = vmatprep.subr.mxu0 0.0
    %3765 = vmatpush1.msra.mxu0 0.0
    %3766 = vmatprep.subr.mxu0 0.0
    %3767 = vmatpush1.msra.mxu0 0.0
    %3768 = vmatprep.subr.mxu0 0.0
    %3769 = vmatpush1.msra.mxu0 0.0
    %3770 = vmatprep.subr.mxu0 0.0
    %3771 = vmatpush1.msra.mxu0 0.0
    %3772 = vmatprep.subr.mxu0 0.0
    %3773 = vmatpush1.msra.mxu0 0.0
    %3774 = vmatprep.subr.mxu0 0.0
    %3775 = vmatpush1.msra.mxu0 0.0
    %3776 = vmatprep.subr.mxu0 0.0
    %3777 = vmatpush1.msra.mxu0 0.0
    %3778 = vmatprep.subr.mxu0 0.0
    %3779 = vmatpush1.msra.mxu0 0.0
    %3780 = vmatprep.subr.mxu0 0.0
    %3781 = vmatpush1.msra.mxu0 0.0
    %3782 = vmatprep.subr.mxu0 0.0
    %3783 = vmatpush1.msra.mxu0 0.0
    %3784 = vmatprep.subr.mxu0 0.0
    %3785 = vmatpush1.msra.mxu0 0.0
    %3786 = vmatprep.subr.mxu0 0.0
    %3787 = vmatpush1.msra.mxu0 0.0
    %3788 = vmatprep.mubr.f32.mxu0 0.0
    %3789 = vmatmul.mubr.f32.gmra.mrb[0].mxu0 %v3722
    %v3790 = vpop.f32.mrb[0].mxu0
    %v3791 = vadd.f32 %v3716, %v3790
    %v3792 = vpop.f32.mrb[0].mxu0
    %v3793 = vadd.f32 %v3718, %v3792
    %3794 = vdwg.mxu0
    %v3795 = vld [vmem:[%s13] sm:$0x3]
    %v3797 = vlaneseq
    %v3798 = vshrl.u32 %v3797, 7
    %v3799 = vsub.s32 0, %v3798
    %v3800 = vrot.slane %v3795, %v3799
    %v3801 = vlaneseq
    %v3802 = vshrl.u32 %v3801, 7
    %v3803 = vsub.s32 1, %v3802
    %v3804 = vrot.slane %v3795, %v3803
    %v3807 = vadd.f32 %v3791, %v3800
    %v3808 = vadd.f32 %v3793, %v3804
    %v3809 = vxor.u32 %v3807, 2147483648
    %v3810 = vmul.f32 %v3809, 1.442695
    %v3811 = vpow.pop %v3810
    %v3812 = vadd.f32 %v3811, 1.0
    %v3813 = vrcp.pop %v3812
    %v3814 = vmul.f32 1.0, %v3813
    %v3815 = vtanh.pop %v3808
    %v3816 = vxor.u32 %v3808, 2147483648
    %v3817 = vmul.f32 %v3816, 1.442695
    %v3818 = vpow.pop %v3817
    %v3819 = vadd.f32 %v3818, 1.0
    %v3820 = vrcp.pop %v3819
    %v3821 = vmul.f32 1.0, %v3820
    %v3822 = vmul.f32 %v3814, 0.0
    %v3823 = vmul.f32 %v3814, %v3815
    %3825 = vrot.lane.b32.xlu0 %v3823, 64
    %v3826 = vpop.permute.xlu0 %3825
    %v3828 = vadd.f32 %v3822, %v3826
    %v3829 = vtanh.pop %v3828
    %v3830 = vmul.f32 %v3821, %v3829
    %v3831 = vld [vmem:[%s14] sm:$0x1]
    %v3833 = vlaneseq
    %v3834 = vshrl.u32 %v3833, 7
    %v3835 = vsub.s32 0, %v3834
    %v3836 = vrot.slane %v3831, %v3835
    %3837 = vrot.lane.b32.xlu0 %v3836, 64
    %v3838 = vpop.permute.xlu0 %3837
    %v3840 = vmul.f32 %v3830, %v3838
    %3842 = vrot.lane.b32.xlu0 %v3840, 64
    %v3843 = vpop.permute.xlu0 %3842
    %v3845 = vsel %vm3600, %v3843, 0.0
    %3846 = vadd.xlane.f32.xlu0 %v3845
    %v3847 = vpop.xlane.xlu0 %3846
    %v3848 = vld [vmem:[#allocation2] sm:$0x1]
    %v3850 = vlaneseq
    %v3851 = vshrl.u32 %v3850, 7
    %v3852 = vsub.s32 0, %v3851
    %v3853 = vrot.slane %v3848, %v3852
    %v3855 = vadd.f32 %v3847, %v3853
    %v3856 = vxor.u32 %v3855, 2147483648
    %v3857 = vmul.f32 %v3856, 1.442695
    %v3858 = vpow.pop %v3857
    %v3859 = vadd.f32 %v3858, 1.0
    %v3860 = vrcp.pop %v3859
    %v3861 = vmul.f32 1.0, %v3860
    %3863 = vset.pattern.permute.xlu0 0
    %3864 = vperm.xlu0 %3863, %v3861
    %v3865 = vpop.permute.xlu0 %3864
    %3868 = vrot.lane.b32.xlu0 %v3830, 64
    %v3869 = vpop.permute.xlu0 %3868
    %v3871 = vsel %vm3600, %v3869, %v3828
    %v3872 = vsel %vm3600, %v164, %v3865
    %3873 = vst [vmem:[#allocation3] sm:$0xff] %v3871
    %3874 = vst [vmem:[#allocation3 + $0x8] sm:$0xff] %v3872
    // Predicated region
    $region66: #{tpu_custom_call.1} parent=1 // pred_check
      _
    $region67: #{tpu_custom_call.1} parent=1 // pred_check_branch
      %3876 = sbr.rel (0) target = $region69
    $region68: #{tpu_custom_call.1} parent=1 // pred_region
      %s3878 = ssub.s32 256, 256
      %3879 = vsyncadd [#allocation4], %s3878
      %s3881 = sshll.u32 [#allocation3], 4
      %s3882 = int_to_ptr.vmem [resolvable:$true] %s3881
      %3884 = dma.vmem_to_hbm [thread:$0]  %s3882, 256, %s16, [#allocation4]
    $region69: #{tpu_custom_call.1} parent=1 // pred_fallthru
      _
    // Predicated region
    $region70: #{tpu_custom_call.1} parent=1 // pred_check
      _
    $region71: #{tpu_custom_call.1} parent=1 // pred_check_branch
      %3886 = sbr.rel (0) target = $region73
    $region72: #{tpu_custom_call.1} parent=1 // pred_region
      %3887 = dma.done [#allocation4], 256
    $region73: #{tpu_custom_call.1} parent=1 // pred_fallthru
      _
    %3888 = vsyncpa [#allocation4], 1

</llo_original>
